<compile_context>
chip_gen: v6e
topology: v6e:2x2x1
jax: 0.10.0
libtpu: 0.0.40
codegen_flags: <defaults>
</compile_context>

<pallas_src>
import functools

import jax
import jax.numpy as jnp
from jax.experimental import pallas as pl
from jax.experimental.pallas import tpu as pltpu

NB_MOVIES = 256      # synthetic "number of movies" (feature dim), multiple of 128
H1 = 20
H2 = 10
HPAD = 128           # hidden dims zero-padded to one full lane width
MIN_TILE = 128       # batch tile granularity (sublane/lane friendly)
MAX_TILE = 1024      # mem-bound roofline ~saturates around 512-1024-row tiles
N_CORES = 2          # v7x has 2 TensorCores; a >=2-step grid is harmless on v5e/v6e

_DEFAULT_SCOPED_VMEM = 10 * 1024 * 1024   # stay under v5e's 16 MiB default with margin


def sae_kernel(x_ref,
               w1_ref, b1_ref,
               w2_ref, b2_ref,
               w3_ref, b3_ref,
               w4_ref, b4_ref,
               out_ref):
    """All four Linear layers + sigmoids fused, per batch tile.

    x / weights are bf16 (halved HBM traffic, native MXU rate); every jnp.dot
    accumulates in f32; biases are added in f32; result is stored as f32.
    """
    bf16 = jnp.bfloat16
    x = x_ref[...]                                                          # bf16 [tb, F]
    h = jax.nn.sigmoid(jnp.dot(x, w1_ref[...],
                               preferred_element_type=jnp.float32) + b1_ref[...])   # [tb,128]
    h = jax.nn.sigmoid(jnp.dot(h.astype(bf16), w2_ref[...],
                               preferred_element_type=jnp.float32) + b2_ref[...])   # [tb,128]
    h = jax.nn.sigmoid(jnp.dot(h.astype(bf16), w3_ref[...],
                               preferred_element_type=jnp.float32) + b3_ref[...])   # [tb,128]
    out = jnp.dot(h.astype(bf16), w4_ref[...],
                  preferred_element_type=jnp.float32) + b4_ref[...]                  # [tb, F]
    out_ref[...] = out.astype(out_ref.dtype)


def _round_up(a, m):
    return (a + m - 1) // m * m


def _pad_to(a, shape):
    pads = [(0, t - s) for s, t in zip(a.shape, shape)]
    return jnp.pad(a, pads)


def _choose_block_b(B):
    """Biggest useful tile that still gives >=2 grid steps (both v7x cores)."""
    per_core = _round_up(pl.cdiv(B, N_CORES), MIN_TILE)
    return max(MIN_TILE, min(MAX_TILE, per_core))


def _vmem_bytes_estimate(block_b, F):
    """Working set: pipeline I/O buffers + resident weights + live f32 values."""
    fmax = max(F, HPAD)
    x_tiles = 2 * block_b * F * 2                              # bf16 x tile, 2-deep
    out_tiles = 2 * block_b * F * 4                            # f32 out tile, 2-deep
    weights = (F * HPAD + 2 * HPAD * HPAD + HPAD * F) * 2      # bf16 weights
    biases = (3 * HPAD + F) * 4                                # f32 biases
    live = 3 * block_b * fmax * 4                              # f32 intermediates in body
    return x_tiles + out_tiles + 2 * weights + biases + live   # weights worst-case 2-deep


def _vmem_limit_bytes(block_b, F):
    est = _vmem_bytes_estimate(block_b, F)
    if est <= _DEFAULT_SCOPED_VMEM:
        return None
    try:
        phys = pltpu.get_tpu_info().vmem_capacity_bytes
    except Exception:
        phys = 64 * 1024 * 1024                                # assume smallest (v7x)
    cap = min(int(phys * 0.7), 100 * 1024 * 1024)              # ~44 MiB v7x, <=100 MiB v5e/v6e
    return min(max(int(est * 3 // 2), 16 * 1024 * 1024), cap)


def _resident_spec(shape, single_buffered):
    """Full-array block with constant index_map -> stays resident in VMEM."""
    if single_buffered:
        try:
            return pl.BlockSpec(shape, lambda i: (0, 0),
                                pipeline_mode=pl.Buffered(1))
        except Exception:
            pass
    return pl.BlockSpec(shape, lambda i: (0, 0))


def prepare_params(params, nb_movies):
    """One-time prep (outside the per-call hot path): zero-pad hidden dims to
    HPAD and cast weights to bf16.  Padded weight rows/cols are zero, so the
    sigmoid(0)=0.5 values living in padded lanes contribute nothing downstream.
    Biases stay f32 (tiny; added after the f32 accumulation)."""
    F = nb_movies
    bf16 = jnp.bfloat16
    return {
        "w1": _pad_to(params["w1"], (F, HPAD)).astype(bf16),
        "b1": _pad_to(params["b1"], (1, HPAD)).astype(jnp.float32),
        "w2": _pad_to(params["w2"], (HPAD, HPAD)).astype(bf16),
        "b2": _pad_to(params["b2"], (1, HPAD)).astype(jnp.float32),
        "w3": _pad_to(params["w3"], (HPAD, HPAD)).astype(bf16),
        "b3": _pad_to(params["b3"], (1, HPAD)).astype(jnp.float32),
        "w4": _pad_to(params["w4"], (HPAD, F)).astype(bf16),
        "b4": params["b4"].astype(jnp.float32),
    }


@functools.partial(jax.jit, static_argnames=("single_buffered_weights",))
def sae_forward(x, pp, *, single_buffered_weights=True):
    """x: [B, F] float32.  pp: prepare_params() output (padded bf16 weights)."""
    B, F = x.shape
    block_b = _choose_block_b(B)
    grid_b = pl.cdiv(B, block_b)           # partial last tile handled (masked) by Pallas

    xb = x.astype(jnp.bfloat16)            # halve streaming HBM bytes; f32 accum in-kernel
    res = lambda a: _resident_spec(a.shape, single_buffered_weights)

    out = pl.pallas_call(
        sae_kernel,
        out_shape=jax.ShapeDtypeStruct((B, F), jnp.float32),
        grid_spec=pltpu.PrefetchScalarGridSpec(
            num_scalar_prefetch=0,
            grid=(grid_b,),
            in_specs=[
                pl.BlockSpec((block_b, F), lambda i: (i, 0)),   # x tile (streams)
                res(pp["w1"]), res(pp["b1"]),
                res(pp["w2"]), res(pp["b2"]),
                res(pp["w3"]), res(pp["b3"]),
                res(pp["w4"]), res(pp["b4"]),
            ],
            out_specs=pl.BlockSpec((block_b, F), lambda i: (i, 0)),
        ),
        compiler_params=pltpu.CompilerParams(
            dimension_semantics=("parallel",),
            vmem_limit_bytes=_vmem_limit_bytes(block_b, F)),
    )(xb, pp["w1"], pp["b1"], pp["w2"], pp["b2"],
      pp["w3"], pp["b3"], pp["w4"], pp["b4"])
    return out


def init_params(key, nb_movies):
    """Deterministic init mimicking nn.Linear's U(-1/sqrt(fan_in), 1/sqrt(fan_in)).

    PyTorch stores weight as [out, in]; we store the transpose [in, out].
    """
    def linear(k, fan_in, fan_out):
        kw, kb = jax.random.split(k)
        bound = 1.0 / jnp.sqrt(jnp.float32(fan_in))
        w = jax.random.uniform(kw, (fan_in, fan_out), jnp.float32, -bound, bound)
        b = jax.random.uniform(kb, (1, fan_out), jnp.float32, -bound, bound)
        return w, b

    k1, k2, k3, k4 = jax.random.split(key, 4)
    w1, b1 = linear(k1, nb_movies, H1)
    w2, b2 = linear(k2, H1, H2)
    w3, b3 = linear(k3, H2, H1)
    w4, b4 = linear(k4, H1, nb_movies)
    return {"w1": w1, "b1": b1, "w2": w2, "b2": b2,
            "w3": w3, "b3": b3, "w4": w4, "b4": b4}


def sae_reference(x, p):
    """Pure-JAX f32 reference matching the PyTorch forward exactly (unpadded)."""
    h = jax.nn.sigmoid(x @ p["w1"] + p["b1"])
    h = jax.nn.sigmoid(h @ p["w2"] + p["b2"])
    h = jax.nn.sigmoid(h @ p["w3"] + p["b3"])
    return h @ p["w4"] + p["b4"]


if __name__ == "__main__":
    key = jax.random.PRNGKey(0)
    kx, kp = jax.random.split(key)

    # 500 users x 256 movies: exercises the core-aware tile selection, a 2-step
    # grid (both v7x TensorCores), and the partial (non-divisible) last tile.
    B = 500
    x = jax.random.uniform(kx, (B, NB_MOVIES), jnp.float32, 0.0, 5.0)
    params = init_params(kp, NB_MOVIES)
    pp = prepare_params(params, NB_MOVIES)   # one-time pad + bf16 cast, outside hot path

    try:
        out = jax.block_until_ready(sae_forward(x, pp, single_buffered_weights=True))
    except Exception:
        # Fallback if this runtime rejects pl.Buffered(1) on the resident weights.
        out = jax.block_until_ready(sae_forward(x, pp, single_buffered_weights=False))

    ref = sae_reference(x, params)
    assert out.shape == (B, NB_MOVIES)
    # bf16 inputs with f32 accumulation: compare against the f32 reference at ~1e-2.
    err = float(jnp.max(jnp.abs(out - ref)))
    assert jnp.allclose(out, ref, atol=2e-2, rtol=2e-2), \
        f"mismatch vs JAX reference (max abs err {err:.4g})"

    print("KERNEL_OK")
</pallas_src>

<mosaic_0001>
module attributes {stable_mosaic.version = 11 : i64} {
  func.func @sae_kernel(%arg0: i32, %arg1: memref<256x256xbf16, #tpu.memory_space<vmem>>, %arg2: memref<256x128xbf16, #tpu.memory_space<vmem>>, %arg3: memref<1x128xf32, #tpu.memory_space<vmem>>, %arg4: memref<128x128xbf16, #tpu.memory_space<vmem>>, %arg5: memref<1x128xf32, #tpu.memory_space<vmem>>, %arg6: memref<128x128xbf16, #tpu.memory_space<vmem>>, %arg7: memref<1x128xf32, #tpu.memory_space<vmem>>, %arg8: memref<128x256xbf16, #tpu.memory_space<vmem>>, %arg9: memref<1x256xf32, #tpu.memory_space<vmem>>, %arg10: memref<256x256xf32, #tpu.memory_space<vmem>>) attributes {dimension_semantics = [#tpu.dimension_semantics<parallel>], iteration_bounds = array<i64: 2>, scalar_prefetch = 0 : i64, scratch_operands = 0 : i64, tpu.core_type = #tpu.core_type<tc>, window_params = [{transform_indices = @transform_0, window_bounds = array<i64: 256, 256>}, {pipeline_mode = #tpu.pipeline_mode<synchronous>, transform_indices = @transform_1, window_bounds = array<i64: 256, 128>}, {pipeline_mode = #tpu.pipeline_mode<synchronous>, transform_indices = @transform_2, window_bounds = array<i64: 1, 128>}, {pipeline_mode = #tpu.pipeline_mode<synchronous>, transform_indices = @transform_3, window_bounds = array<i64: 128, 128>}, {pipeline_mode = #tpu.pipeline_mode<synchronous>, transform_indices = @transform_4, window_bounds = array<i64: 1, 128>}, {pipeline_mode = #tpu.pipeline_mode<synchronous>, transform_indices = @transform_5, window_bounds = array<i64: 128, 128>}, {pipeline_mode = #tpu.pipeline_mode<synchronous>, transform_indices = @transform_6, window_bounds = array<i64: 1, 128>}, {pipeline_mode = #tpu.pipeline_mode<synchronous>, transform_indices = @transform_7, window_bounds = array<i64: 128, 256>}, {pipeline_mode = #tpu.pipeline_mode<synchronous>, transform_indices = @transform_8, window_bounds = array<i64: 1, 256>}, {transform_indices = @transform_9, window_bounds = array<i64: 256, 256>}]} {
    %c0 = arith.constant 0 : index
    %c0_0 = arith.constant 0 : index
    %0 = vector.load %arg1[%c0, %c0_0] : memref<256x256xbf16, #tpu.memory_space<vmem>>, vector<256x256xbf16>
    %c0_1 = arith.constant 0 : index
    %c0_2 = arith.constant 0 : index
    %1 = vector.load %arg2[%c0_1, %c0_2] : memref<256x128xbf16, #tpu.memory_space<vmem>>, vector<256x128xbf16>
    %cst = arith.constant dense<0.000000e+00> : vector<256x128xf32>
    %2 = tpu.matmul %0, %1, %cst {dimension_numbers = #tpu.dot_dimension_numbers<[1], [0], [0], [1], [0, 0, 1, 1], [], []>} : vector<256x256xbf16>, vector<256x128xbf16>, vector<256x128xf32> -> vector<256x128xf32>
    %c0_3 = arith.constant 0 : index
    %c0_4 = arith.constant 0 : index
    %3 = vector.load %arg3[%c0_3, %c0_4] : memref<1x128xf32, #tpu.memory_space<vmem>>, vector<1x128xf32>
    %4 = vector.broadcast %3 : vector<1x128xf32> to vector<256x128xf32>
    %5 = arith.addf %2, %4 : vector<256x128xf32>
    %6 = arith.negf %5 : vector<256x128xf32>
    %7 = math.exp %6 : vector<256x128xf32>
    %cst_5 = arith.constant 1.000000e+00 : f32
    %8 = vector.broadcast %cst_5 : f32 to vector<256x128xf32>
    %9 = arith.addf %8, %7 : vector<256x128xf32>
    %10 = arith.divf %8, %9 : vector<256x128xf32>
    %11 = arith.truncf %10 : vector<256x128xf32> to vector<256x128xbf16>
    %c0_6 = arith.constant 0 : index
    %c0_7 = arith.constant 0 : index
    %12 = vector.load %arg4[%c0_6, %c0_7] : memref<128x128xbf16, #tpu.memory_space<vmem>>, vector<128x128xbf16>
    %cst_8 = arith.constant dense<0.000000e+00> : vector<256x128xf32>
    %13 = tpu.matmul %11, %12, %cst_8 {dimension_numbers = #tpu.dot_dimension_numbers<[1], [0], [0], [1], [0, 0, 1, 1], [], []>} : vector<256x128xbf16>, vector<128x128xbf16>, vector<256x128xf32> -> vector<256x128xf32>
    %c0_9 = arith.constant 0 : index
    %c0_10 = arith.constant 0 : index
    %14 = vector.load %arg5[%c0_9, %c0_10] : memref<1x128xf32, #tpu.memory_space<vmem>>, vector<1x128xf32>
    %15 = vector.broadcast %14 : vector<1x128xf32> to vector<256x128xf32>
    %16 = arith.addf %13, %15 : vector<256x128xf32>
    %17 = arith.negf %16 : vector<256x128xf32>
    %18 = math.exp %17 : vector<256x128xf32>
    %cst_11 = arith.constant 1.000000e+00 : f32
    %19 = vector.broadcast %cst_11 : f32 to vector<256x128xf32>
    %20 = arith.addf %19, %18 : vector<256x128xf32>
    %21 = arith.divf %19, %20 : vector<256x128xf32>
    %22 = arith.truncf %21 : vector<256x128xf32> to vector<256x128xbf16>
    %c0_12 = arith.constant 0 : index
    %c0_13 = arith.constant 0 : index
    %23 = vector.load %arg6[%c0_12, %c0_13] : memref<128x128xbf16, #tpu.memory_space<vmem>>, vector<128x128xbf16>
    %cst_14 = arith.constant dense<0.000000e+00> : vector<256x128xf32>
    %24 = tpu.matmul %22, %23, %cst_14 {dimension_numbers = #tpu.dot_dimension_numbers<[1], [0], [0], [1], [0, 0, 1, 1], [], []>} : vector<256x128xbf16>, vector<128x128xbf16>, vector<256x128xf32> -> vector<256x128xf32>
    %c0_15 = arith.constant 0 : index
    %c0_16 = arith.constant 0 : index
    %25 = vector.load %arg7[%c0_15, %c0_16] : memref<1x128xf32, #tpu.memory_space<vmem>>, vector<1x128xf32>
    %26 = vector.broadcast %25 : vector<1x128xf32> to vector<256x128xf32>
    %27 = arith.addf %24, %26 : vector<256x128xf32>
    %28 = arith.negf %27 : vector<256x128xf32>
    %29 = math.exp %28 : vector<256x128xf32>
    %cst_17 = arith.constant 1.000000e+00 : f32
    %30 = vector.broadcast %cst_17 : f32 to vector<256x128xf32>
    %31 = arith.addf %30, %29 : vector<256x128xf32>
    %32 = arith.divf %30, %31 : vector<256x128xf32>
    %33 = arith.truncf %32 : vector<256x128xf32> to vector<256x128xbf16>
    %c0_18 = arith.constant 0 : index
    %c0_19 = arith.constant 0 : index
    %34 = vector.load %arg8[%c0_18, %c0_19] : memref<128x256xbf16, #tpu.memory_space<vmem>>, vector<128x256xbf16>
    %cst_20 = arith.constant dense<0.000000e+00> : vector<256x256xf32>
    %35 = tpu.matmul %33, %34, %cst_20 {dimension_numbers = #tpu.dot_dimension_numbers<[1], [0], [0], [1], [0, 0, 1, 1], [], []>} : vector<256x128xbf16>, vector<128x256xbf16>, vector<256x256xf32> -> vector<256x256xf32>
    %c0_21 = arith.constant 0 : index
    %c0_22 = arith.constant 0 : index
    %36 = vector.load %arg9[%c0_21, %c0_22] : memref<1x256xf32, #tpu.memory_space<vmem>>, vector<1x256xf32>
    %37 = vector.broadcast %36 : vector<1x256xf32> to vector<256x256xf32>
    %38 = arith.addf %35, %37 : vector<256x256xf32>
    %c0_23 = arith.constant 0 : index
    %c0_24 = arith.constant 0 : index
    %39 = vector.load %arg10[%c0_23, %c0_24] : memref<256x256xf32, #tpu.memory_space<vmem>>, vector<256x256xf32>
    tpu.vector_store %arg10[%c0_23, %c0_24], %38 {strides = array<i32>} : memref<256x256xf32, #tpu.memory_space<vmem>>, vector<256x256xf32>,
    return
  }
  func.func @transform_0(%arg0: i32) -> (i32, i32) {
    %c0_i32 = arith.constant 0 : i32
    %c0_i32_0 = arith.constant 0 : i32
    return %arg0, %c0_i32 : i32, i32
  }
  func.func @transform_1(%arg0: i32) -> (i32, i32) {
    %c0_i32 = arith.constant 0 : i32
    %c0_i32_0 = arith.constant 0 : i32
    %c0_i32_1 = arith.constant 0 : i32
    return %c0_i32, %c0_i32_0 : i32, i32
  }
  func.func @transform_2(%arg0: i32) -> (i32, i32) {
    %c0_i32 = arith.constant 0 : i32
    %c0_i32_0 = arith.constant 0 : i32
    %c0_i32_1 = arith.constant 0 : i32
    return %c0_i32, %c0_i32_0 : i32, i32
  }
  func.func @transform_3(%arg0: i32) -> (i32, i32) {
    %c0_i32 = arith.constant 0 : i32
    %c0_i32_0 = arith.constant 0 : i32
    %c0_i32_1 = arith.constant 0 : i32
    return %c0_i32, %c0_i32_0 : i32, i32
  }
  func.func @transform_4(%arg0: i32) -> (i32, i32) {
    %c0_i32 = arith.constant 0 : i32
    %c0_i32_0 = arith.constant 0 : i32
    %c0_i32_1 = arith.constant 0 : i32
    return %c0_i32, %c0_i32_0 : i32, i32
  }
  func.func @transform_5(%arg0: i32) -> (i32, i32) {
    %c0_i32 = arith.constant 0 : i32
    %c0_i32_0 = arith.constant 0 : i32
    %c0_i32_1 = arith.constant 0 : i32
    return %c0_i32, %c0_i32_0 : i32, i32
  }
  func.func @transform_6(%arg0: i32) -> (i32, i32) {
    %c0_i32 = arith.constant 0 : i32
    %c0_i32_0 = arith.constant 0 : i32
    %c0_i32_1 = arith.constant 0 : i32
    return %c0_i32, %c0_i32_0 : i32, i32
  }
  func.func @transform_7(%arg0: i32) -> (i32, i32) {
    %c0_i32 = arith.constant 0 : i32
    %c0_i32_0 = arith.constant 0 : i32
    %c0_i32_1 = arith.constant 0 : i32
    return %c0_i32, %c0_i32_0 : i32, i32
  }
  func.func @transform_8(%arg0: i32) -> (i32, i32) {
    %c0_i32 = arith.constant 0 : i32
    %c0_i32_0 = arith.constant 0 : i32
    %c0_i32_1 = arith.constant 0 : i32
    return %c0_i32, %c0_i32_0 : i32, i32
  }
  func.func @transform_9(%arg0: i32) -> (i32, i32) {
    %c0_i32 = arith.constant 0 : i32
    %c0_i32_0 = arith.constant 0 : i32
    return %arg0, %c0_i32 : i32, i32
  }
}

module attributes {stable_mosaic.version = 11 : i64} {
  func.func @sae_kernel(%arg0: i32, %arg1: memref<256x256xbf16, #tpu.memory_space<vmem>>, %arg2: memref<256x128xbf16, #tpu.memory_space<vmem>>, %arg3: memref<1x128xf32, #tpu.memory_space<vmem>>, %arg4: memref<128x128xbf16, #tpu.memory_space<vmem>>, %arg5: memref<1x128xf32, #tpu.memory_space<vmem>>, %arg6: memref<128x128xbf16, #tpu.memory_space<vmem>>, %arg7: memref<1x128xf32, #tpu.memory_space<vmem>>, %arg8: memref<128x256xbf16, #tpu.memory_space<vmem>>, %arg9: memref<1x256xf32, #tpu.memory_space<vmem>>, %arg10: memref<256x256xf32, #tpu.memory_space<vmem>>) attributes {dimension_semantics = [#tpu.dimension_semantics<parallel>], iteration_bounds = array<i64: 2>, scalar_prefetch = 0 : i64, scratch_operands = 0 : i64, tpu.core_type = #tpu.core_type<tc>, window_params = [{transform_indices = @transform_0, window_bounds = array<i64: 256, 256>}, {pipeline_mode = #tpu.pipeline_mode<synchronous>, transform_indices = @transform_1, window_bounds = array<i64: 256, 128>}, {pipeline_mode = #tpu.pipeline_mode<synchronous>, transform_indices = @transform_2, window_bounds = array<i64: 1, 128>}, {pipeline_mode = #tpu.pipeline_mode<synchronous>, transform_indices = @transform_3, window_bounds = array<i64: 128, 128>}, {pipeline_mode = #tpu.pipeline_mode<synchronous>, transform_indices = @transform_4, window_bounds = array<i64: 1, 128>}, {pipeline_mode = #tpu.pipeline_mode<synchronous>, transform_indices = @transform_5, window_bounds = array<i64: 128, 128>}, {pipeline_mode = #tpu.pipeline_mode<synchronous>, transform_indices = @transform_6, window_bounds = array<i64: 1, 128>}, {pipeline_mode = #tpu.pipeline_mode<synchronous>, transform_indices = @transform_7, window_bounds = array<i64: 128, 256>}, {pipeline_mode = #tpu.pipeline_mode<synchronous>, transform_indices = @transform_8, window_bounds = array<i64: 1, 256>}, {transform_indices = @transform_9, window_bounds = array<i64: 256, 256>}]} {
    %c0 = arith.constant 0 : index
    %c0_0 = arith.constant 0 : index
    %0 = vector.load %arg1[%c0, %c0_0] : memref<256x256xbf16, #tpu.memory_space<vmem>>, vector<256x256xbf16>
    %c0_1 = arith.constant 0 : index
    %c0_2 = arith.constant 0 : index
    %1 = vector.load %arg2[%c0_1, %c0_2] : memref<256x128xbf16, #tpu.memory_space<vmem>>, vector<256x128xbf16>
    %cst = arith.constant dense<0.000000e+00> : vector<256x128xf32>
    %2 = tpu.matmul %0, %1, %cst {dimension_numbers = #tpu.dot_dimension_numbers<[1], [0], [0], [1], [0, 0, 1, 1], [], []>} : vector<256x256xbf16>, vector<256x128xbf16>, vector<256x128xf32> -> vector<256x128xf32>
    %c0_3 = arith.constant 0 : index
    %c0_4 = arith.constant 0 : index
    %3 = vector.load %arg3[%c0_3, %c0_4] : memref<1x128xf32, #tpu.memory_space<vmem>>, vector<1x128xf32>
    %4 = vector.broadcast %3 : vector<1x128xf32> to vector<256x128xf32>
    %5 = arith.addf %2, %4 : vector<256x128xf32>
    %6 = arith.negf %5 : vector<256x128xf32>
    %7 = math.exp %6 : vector<256x128xf32>
    %cst_5 = arith.constant 1.000000e+00 : f32
    %8 = vector.broadcast %cst_5 : f32 to vector<256x128xf32>
    %9 = arith.addf %8, %7 : vector<256x128xf32>
    %10 = arith.divf %8, %9 : vector<256x128xf32>
    %11 = arith.truncf %10 : vector<256x128xf32> to vector<256x128xbf16>
    %c0_6 = arith.constant 0 : index
    %c0_7 = arith.constant 0 : index
    %12 = vector.load %arg4[%c0_6, %c0_7] : memref<128x128xbf16, #tpu.memory_space<vmem>>, vector<128x128xbf16>
    %cst_8 = arith.constant dense<0.000000e+00> : vector<256x128xf32>
    %13 = tpu.matmul %11, %12, %cst_8 {dimension_numbers = #tpu.dot_dimension_numbers<[1], [0], [0], [1], [0, 0, 1, 1], [], []>} : vector<256x128xbf16>, vector<128x128xbf16>, vector<256x128xf32> -> vector<256x128xf32>
    %c0_9 = arith.constant 0 : index
    %c0_10 = arith.constant 0 : index
    %14 = vector.load %arg5[%c0_9, %c0_10] : memref<1x128xf32, #tpu.memory_space<vmem>>, vector<1x128xf32>
    %15 = vector.broadcast %14 : vector<1x128xf32> to vector<256x128xf32>
    %16 = arith.addf %13, %15 : vector<256x128xf32>
    %17 = arith.negf %16 : vector<256x128xf32>
    %18 = math.exp %17 : vector<256x128xf32>
    %cst_11 = arith.constant 1.000000e+00 : f32
    %19 = vector.broadcast %cst_11 : f32 to vector<256x128xf32>
    %20 = arith.addf %19, %18 : vector<256x128xf32>
    %21 = arith.divf %19, %20 : vector<256x128xf32>
    %22 = arith.truncf %21 : vector<256x128xf32> to vector<256x128xbf16>
    %c0_12 = arith.constant 0 : index
    %c0_13 = arith.constant 0 : index
    %23 = vector.load %arg6[%c0_12, %c0_13] : memref<128x128xbf16, #tpu.memory_space<vmem>>, vector<128x128xbf16>
    %cst_14 = arith.constant dense<0.000000e+00> : vector<256x128xf32>
    %24 = tpu.matmul %22, %23, %cst_14 {dimension_numbers = #tpu.dot_dimension_numbers<[1], [0], [0], [1], [0, 0, 1, 1], [], []>} : vector<256x128xbf16>, vector<128x128xbf16>, vector<256x128xf32> -> vector<256x128xf32>
    %c0_15 = arith.constant 0 : index
    %c0_16 = arith.constant 0 : index
    %25 = vector.load %arg7[%c0_15, %c0_16] : memref<1x128xf32, #tpu.memory_space<vmem>>, vector<1x128xf32>
    %26 = vector.broadcast %25 : vector<1x128xf32> to vector<256x128xf32>
    %27 = arith.addf %24, %26 : vector<256x128xf32>
    %28 = arith.negf %27 : vector<256x128xf32>
    %29 = math.exp %28 : vector<256x128xf32>
    %cst_17 = arith.constant 1.000000e+00 : f32
    %30 = vector.broadcast %cst_17 : f32 to vector<256x128xf32>
    %31 = arith.addf %30, %29 : vector<256x128xf32>
    %32 = arith.divf %30, %31 : vector<256x128xf32>
    %33 = arith.truncf %32 : vector<256x128xf32> to vector<256x128xbf16>
    %c0_18 = arith.constant 0 : index
    %c0_19 = arith.constant 0 : index
    %34 = vector.load %arg8[%c0_18, %c0_19] : memref<128x256xbf16, #tpu.memory_space<vmem>>, vector<128x256xbf16>
    %cst_20 = arith.constant dense<0.000000e+00> : vector<256x256xf32>
    %35 = tpu.matmul %33, %34, %cst_20 {dimension_numbers = #tpu.dot_dimension_numbers<[1], [0], [0], [1], [0, 0, 1, 1], [], []>} : vector<256x128xbf16>, vector<128x256xbf16>, vector<256x256xf32> -> vector<256x256xf32>
    %c0_21 = arith.constant 0 : index
    %c0_22 = arith.constant 0 : index
    %36 = vector.load %arg9[%c0_21, %c0_22] : memref<1x256xf32, #tpu.memory_space<vmem>>, vector<1x256xf32>
    %37 = vector.broadcast %36 : vector<1x256xf32> to vector<256x256xf32>
    %38 = arith.addf %35, %37 : vector<256x256xf32>
    %c0_23 = arith.constant 0 : index
    %c0_24 = arith.constant 0 : index
    %39 = vector.load %arg10[%c0_23, %c0_24] : memref<256x256xf32, #tpu.memory_space<vmem>>, vector<256x256xf32>
    tpu.vector_store %arg10[%c0_23, %c0_24], %38 {strides = array<i32>} : memref<256x256xf32, #tpu.memory_space<vmem>>, vector<256x256xf32>,
    return
  }
  func.func @transform_0(%arg0: i32) -> (i32, i32) {
    %c0_i32 = arith.constant 0 : i32
    %c0_i32_0 = arith.constant 0 : i32
    return %arg0, %c0_i32 : i32, i32
  }
  func.func @transform_1(%arg0: i32) -> (i32, i32) {
    %c0_i32 = arith.constant 0 : i32
    %c0_i32_0 = arith.constant 0 : i32
    %c0_i32_1 = arith.constant 0 : i32
    return %c0_i32, %c0_i32_0 : i32, i32
  }
  func.func @transform_2(%arg0: i32) -> (i32, i32) {
    %c0_i32 = arith.constant 0 : i32
    %c0_i32_0 = arith.constant 0 : i32
    %c0_i32_1 = arith.constant 0 : i32
    return %c0_i32, %c0_i32_0 : i32, i32
  }
  func.func @transform_3(%arg0: i32) -> (i32, i32) {
    %c0_i32 = arith.constant 0 : i32
    %c0_i32_0 = arith.constant 0 : i32
    %c0_i32_1 = arith.constant 0 : i32
    return %c0_i32, %c0_i32_0 : i32, i32
  }
  func.func @transform_4(%arg0: i32) -> (i32, i32) {
    %c0_i32 = arith.constant 0 : i32
    %c0_i32_0 = arith.constant 0 : i32
    %c0_i32_1 = arith.constant 0 : i32
    return %c0_i32, %c0_i32_0 : i32, i32
  }
  func.func @transform_5(%arg0: i32) -> (i32, i32) {
    %c0_i32 = arith.constant 0 : i32
    %c0_i32_0 = arith.constant 0 : i32
    %c0_i32_1 = arith.constant 0 : i32
    return %c0_i32, %c0_i32_0 : i32, i32
  }
  func.func @transform_6(%arg0: i32) -> (i32, i32) {
    %c0_i32 = arith.constant 0 : i32
    %c0_i32_0 = arith.constant 0 : i32
    %c0_i32_1 = arith.constant 0 : i32
    return %c0_i32, %c0_i32_0 : i32, i32
  }
  func.func @transform_7(%arg0: i32) -> (i32, i32) {
    %c0_i32 = arith.constant 0 : i32
    %c0_i32_0 = arith.constant 0 : i32
    %c0_i32_1 = arith.constant 0 : i32
    return %c0_i32, %c0_i32_0 : i32, i32
  }
  func.func @transform_8(%arg0: i32) -> (i32, i32) {
    %c0_i32 = arith.constant 0 : i32
    %c0_i32_0 = arith.constant 0 : i32
    %c0_i32_1 = arith.constant 0 : i32
    return %c0_i32, %c0_i32_0 : i32, i32
  }
  func.func @transform_9(%arg0: i32) -> (i32, i32) {
    %c0_i32 = arith.constant 0 : i32
    %c0_i32_0 = arith.constant 0 : i32
    return %arg0, %c0_i32 : i32, i32
  }
}

</mosaic_0001>

<llo_original>
// kernel: sae_forward.1
$region0: #{sae_forward.1}
  #allocation0 [shape = 'u32[]', space=smem, size = 0x4, offset = 0x4, fixed_abs, tag = 'smem constant byte address 0x4 - core index']
  #allocation1 [shape = 'u32[144,128]{1,0:T(1,128)}', space=vmem, size = 0x12000, scoped, tag = 'internal scratch']
  %s0 = inlined_call_operand.vmem [shape: bf16[500,256], index: 0, kind: input, shape index: {}]
  %s1 = inlined_call_operand.vmem [shape: bf16[256,128], index: 1, kind: input, shape index: {}]
  %s2 = inlined_call_operand.vmem [shape: f32[1,128], index: 2, kind: input, shape index: {}]
  %s3 = inlined_call_operand.vmem [shape: bf16[128,128], index: 3, kind: input, shape index: {}]
  %s4 = inlined_call_operand.vmem [shape: f32[1,128], index: 4, kind: input, shape index: {}]
  %s5 = inlined_call_operand.vmem [shape: bf16[128,128], index: 5, kind: input, shape index: {}]
  %s6 = inlined_call_operand.vmem [shape: f32[1,128], index: 6, kind: input, shape index: {}]
  %s7 = inlined_call_operand.vmem [shape: bf16[128,256], index: 7, kind: input, shape index: {}]
  %s8 = inlined_call_operand.vmem [shape: f32[1,256], index: 8, kind: input, shape index: {}]
  %s9 = inlined_call_operand.hbm [shape: f32[500,256], index: 9, kind: output, shape index: {}]
  %s10 = sld [smem:[#allocation0]]
  $region69: #{sae_forward.1} parent=0
    _
  %s12 = ssub.s32 1, %s10
  %s13 = scalar_select 0, %s12, %s10
  $region1: #{sae_forward.1} parent=0
    #allocation2 [shape = 'u8[524288]{0}', space=vmem, size = 0x80000, scoped, tag = 'output window, operand 0']
    #allocation3 [shape = 's32[2]{0}', space=sflag, size = 0x8, scoped, tag = 'scoped memory for sae_forward.1']
    %14 = vsyncpa [#allocation3], 0
    %s15 = scalar_lea.sflag [#allocation3], 1
    %16 = vsyncpa %s15, 0
    loop: start=0, step=1, limit=4
    $region2: #{sae_forward.1} parent=1 // loop_pre_header
      _
    $region3: #{sae_forward.1} parent=1 // loop_header
      %s18 = sphi 0, %s22
      %p19 = scmp.ge.s32.totalorder %s18, 4
      %s28 = sphi 0, %s30
      %s31 = sphi 0, %s28
      %s32 = sphi 0, %s31
      %s48 = sphi 0, %s32
      %s52 = sphi 0, %s52
      %s54 = sphi 0, %s52
      %s55 = sphi 0, %s54
      %s69 = sphi 0, %s55
      %s73 = sphi 0, %s73
      %s75 = sphi 0, %s73
      %s76 = sphi 0, %s75
      %s90 = sphi 0, %s76
      %s94 = sphi 0, %s94
      %s96 = sphi 0, %s94
      %s97 = sphi 0, %s96
      %s111 = sphi 0, %s97
      %s115 = sphi 0, %s115
      %s117 = sphi 0, %s115
      %s118 = sphi 0, %s117
      %s132 = sphi 0, %s118
      %s136 = sphi 0, %s136
      %s138 = sphi 0, %s136
      %s139 = sphi 0, %s138
      %s153 = sphi 0, %s139
      %s157 = sphi 0, %s157
      %s159 = sphi 0, %s157
      %s160 = sphi 0, %s159
      %s174 = sphi 0, %s160
      %s178 = sphi 0, %s178
      %s180 = sphi 0, %s178
      %s181 = sphi 0, %s180
      %s195 = sphi 0, %s181
      %s199 = sphi 0, %s199
      %s201 = sphi 0, %s199
      %s202 = sphi 0, %s201
      %s216 = sphi 0, %s202
      %s222 = sphi 0, %s224
      %s225 = sphi 0, %s222
      %s226 = sphi 0, %s225
      %s242 = sphi 0, %s226
    $region4: #{sae_forward.1} parent=1 // loop_header_branch
      %21 = sbr.rel (%p19) target = $region8
    $region5: #{sae_forward.1} parent=1 // loop_body
      %s23 = ssub.s32 %s18, 1
      %s24 = ssub.s32 %s18, 2
      %s25 = sadd.s32 %s18, 1
      %s26 = ssub.s32 %s18, %s25
      %p27 = scmp.eq.s32.totalorder %s26, 0
      %s29 = sadd.s32 %s28, 1
      %s30 = scalar_select %p27, %s28, %s29
      %p33 = pneg %p27
      %p34 = scmp.eq.s32.totalorder %s18, 1
      %p35 = por %p33, %p34
      %p36 = scmp.ne.s32.totalorder %s28, %s31
      %p37 = scmp.eq.s32.totalorder %s18, 0
      %p38 = por %p36, %p37
      %p39 = scmp.ne.s32.totalorder %s28, %s31
      %p40 = scmp.eq.s32.totalorder %s23, 1
      %p41 = por %p39, %p40
      %p42 = scmp.ne.s32.totalorder %s31, %s32
      %p43 = scmp.eq.s32.totalorder %s23, 0
      %p44 = por %p42, %p43
      %p45 = scmp.ne.s32.totalorder %s31, %s32
      %p46 = scmp.eq.s32.totalorder %s24, 1
      %p47 = por %p45, %p46
      %p49 = scmp.ne.s32.totalorder %s32, %s48
      %p50 = scmp.eq.s32.totalorder %s24, 0
      %p51 = por %p49, %p50
      %s53 = sadd.s32 %s52, 1
      %p56 = scmp.eq.s32.totalorder %s18, 1
      %p57 = scmp.ne.s32.totalorder %s52, %s54
      %p58 = scmp.eq.s32.totalorder %s18, 0
      %p59 = por %p57, %p58
      %p60 = scmp.ne.s32.totalorder %s52, %s54
      %p61 = scmp.eq.s32.totalorder %s23, 1
      %p62 = por %p60, %p61
      %p63 = scmp.ne.s32.totalorder %s54, %s55
      %p64 = scmp.eq.s32.totalorder %s23, 0
      %p65 = por %p63, %p64
      %p66 = scmp.ne.s32.totalorder %s54, %s55
      %p67 = scmp.eq.s32.totalorder %s24, 1
      %p68 = por %p66, %p67
      %p70 = scmp.ne.s32.totalorder %s55, %s69
      %p71 = scmp.eq.s32.totalorder %s24, 0
      %p72 = por %p70, %p71
      %s74 = sadd.s32 %s73, 1
      %p77 = scmp.eq.s32.totalorder %s18, 1
      %p78 = scmp.ne.s32.totalorder %s73, %s75
      %p79 = scmp.eq.s32.totalorder %s18, 0
      %p80 = por %p78, %p79
      %p81 = scmp.ne.s32.totalorder %s73, %s75
      %p82 = scmp.eq.s32.totalorder %s23, 1
      %p83 = por %p81, %p82
      %p84 = scmp.ne.s32.totalorder %s75, %s76
      %p85 = scmp.eq.s32.totalorder %s23, 0
      %p86 = por %p84, %p85
      %p87 = scmp.ne.s32.totalorder %s75, %s76
      %p88 = scmp.eq.s32.totalorder %s24, 1
      %p89 = por %p87, %p88
      %p91 = scmp.ne.s32.totalorder %s76, %s90
      %p92 = scmp.eq.s32.totalorder %s24, 0
      %p93 = por %p91, %p92
      %s95 = sadd.s32 %s94, 1
      %p98 = scmp.eq.s32.totalorder %s18, 1
      %p99 = scmp.ne.s32.totalorder %s94, %s96
      %p100 = scmp.eq.s32.totalorder %s18, 0
      %p101 = por %p99, %p100
      %p102 = scmp.ne.s32.totalorder %s94, %s96
      %p103 = scmp.eq.s32.totalorder %s23, 1
      %p104 = por %p102, %p103
      %p105 = scmp.ne.s32.totalorder %s96, %s97
      %p106 = scmp.eq.s32.totalorder %s23, 0
      %p107 = por %p105, %p106
      %p108 = scmp.ne.s32.totalorder %s96, %s97
      %p109 = scmp.eq.s32.totalorder %s24, 1
      %p110 = por %p108, %p109
      %p112 = scmp.ne.s32.totalorder %s97, %s111
      %p113 = scmp.eq.s32.totalorder %s24, 0
      %p114 = por %p112, %p113
      %s116 = sadd.s32 %s115, 1
      %p119 = scmp.eq.s32.totalorder %s18, 1
      %p120 = scmp.ne.s32.totalorder %s115, %s117
      %p121 = scmp.eq.s32.totalorder %s18, 0
      %p122 = por %p120, %p121
      %p123 = scmp.ne.s32.totalorder %s115, %s117
      %p124 = scmp.eq.s32.totalorder %s23, 1
      %p125 = por %p123, %p124
      %p126 = scmp.ne.s32.totalorder %s117, %s118
      %p127 = scmp.eq.s32.totalorder %s23, 0
      %p128 = por %p126, %p127
      %p129 = scmp.ne.s32.totalorder %s117, %s118
      %p130 = scmp.eq.s32.totalorder %s24, 1
      %p131 = por %p129, %p130
      %p133 = scmp.ne.s32.totalorder %s118, %s132
      %p134 = scmp.eq.s32.totalorder %s24, 0
      %p135 = por %p133, %p134
      %s137 = sadd.s32 %s136, 1
      %p140 = scmp.eq.s32.totalorder %s18, 1
      %p141 = scmp.ne.s32.totalorder %s136, %s138
      %p142 = scmp.eq.s32.totalorder %s18, 0
      %p143 = por %p141, %p142
      %p144 = scmp.ne.s32.totalorder %s136, %s138
      %p145 = scmp.eq.s32.totalorder %s23, 1
      %p146 = por %p144, %p145
      %p147 = scmp.ne.s32.totalorder %s138, %s139
      %p148 = scmp.eq.s32.totalorder %s23, 0
      %p149 = por %p147, %p148
      %p150 = scmp.ne.s32.totalorder %s138, %s139
      %p151 = scmp.eq.s32.totalorder %s24, 1
      %p152 = por %p150, %p151
      %p154 = scmp.ne.s32.totalorder %s139, %s153
      %p155 = scmp.eq.s32.totalorder %s24, 0
      %p156 = por %p154, %p155
      %s158 = sadd.s32 %s157, 1
      %p161 = scmp.eq.s32.totalorder %s18, 1
      %p162 = scmp.ne.s32.totalorder %s157, %s159
      %p163 = scmp.eq.s32.totalorder %s18, 0
      %p164 = por %p162, %p163
      %p165 = scmp.ne.s32.totalorder %s157, %s159
      %p166 = scmp.eq.s32.totalorder %s23, 1
      %p167 = por %p165, %p166
      %p168 = scmp.ne.s32.totalorder %s159, %s160
      %p169 = scmp.eq.s32.totalorder %s23, 0
      %p170 = por %p168, %p169
      %p171 = scmp.ne.s32.totalorder %s159, %s160
      %p172 = scmp.eq.s32.totalorder %s24, 1
      %p173 = por %p171, %p172
      %p175 = scmp.ne.s32.totalorder %s160, %s174
      %p176 = scmp.eq.s32.totalorder %s24, 0
      %p177 = por %p175, %p176
      %s179 = sadd.s32 %s178, 1
      %p182 = scmp.eq.s32.totalorder %s18, 1
      %p183 = scmp.ne.s32.totalorder %s178, %s180
      %p184 = scmp.eq.s32.totalorder %s18, 0
      %p185 = por %p183, %p184
      %p186 = scmp.ne.s32.totalorder %s178, %s180
      %p187 = scmp.eq.s32.totalorder %s23, 1
      %p188 = por %p186, %p187
      %p189 = scmp.ne.s32.totalorder %s180, %s181
      %p190 = scmp.eq.s32.totalorder %s23, 0
      %p191 = por %p189, %p190
      %p192 = scmp.ne.s32.totalorder %s180, %s181
      %p193 = scmp.eq.s32.totalorder %s24, 1
      %p194 = por %p192, %p193
      %p196 = scmp.ne.s32.totalorder %s181, %s195
      %p197 = scmp.eq.s32.totalorder %s24, 0
      %p198 = por %p196, %p197
      %s200 = sadd.s32 %s199, 1
      %p203 = scmp.eq.s32.totalorder %s18, 1
      %p204 = scmp.ne.s32.totalorder %s199, %s201
      %p205 = scmp.eq.s32.totalorder %s18, 0
      %p206 = por %p204, %p205
      %p207 = scmp.ne.s32.totalorder %s199, %s201
      %p208 = scmp.eq.s32.totalorder %s23, 1
      %p209 = por %p207, %p208
      %p210 = scmp.ne.s32.totalorder %s201, %s202
      %p211 = scmp.eq.s32.totalorder %s23, 0
      %p212 = por %p210, %p211
      %p213 = scmp.ne.s32.totalorder %s201, %s202
      %p214 = scmp.eq.s32.totalorder %s24, 1
      %p215 = por %p213, %p214
      %p217 = scmp.ne.s32.totalorder %s202, %s216
      %p218 = scmp.eq.s32.totalorder %s24, 0
      %p219 = por %p217, %p218
      %s220 = ssub.s32 %s18, %s25
      %p221 = scmp.eq.s32.totalorder %s220, 0
      %s223 = sadd.s32 %s222, 1
      %s224 = scalar_select %p221, %s222, %s223
      %p227 = pneg %p221
      %p228 = scmp.eq.s32.totalorder %s18, 1
      %p229 = por %p227, %p228
      %p230 = scmp.ne.s32.totalorder %s222, %s225
      %p231 = scmp.eq.s32.totalorder %s18, 0
      %p232 = por %p230, %p231
      %p233 = scmp.ne.s32.totalorder %s222, %s225
      %p234 = scmp.eq.s32.totalorder %s23, 1
      %p235 = por %p233, %p234
      %p236 = scmp.ne.s32.totalorder %s225, %s226
      %p237 = scmp.eq.s32.totalorder %s23, 0
      %p238 = por %p236, %p237
      %p239 = scmp.ne.s32.totalorder %s225, %s226
      %p240 = scmp.eq.s32.totalorder %s24, 1
      %p241 = por %p239, %p240
      %p243 = scmp.ne.s32.totalorder %s226, %s242
      %p244 = scmp.eq.s32.totalorder %s24, 0
      %p245 = por %p243, %p244
      %p246 = scmp.le.s32.totalorder 1, %s18
      %p247 = scmp.lt.s32.totalorder %s18, 3
      %p248 = pnand %p246, %p247
      %p249 = pneg %p248
      // Predicated region
      $region9: #{sae_forward.1} parent=5 // pred_check
        _
      $region10: #{sae_forward.1} parent=5 // pred_check_branch
        %251 = sbr.rel (%p248) target = $region12
      $region11: #{sae_forward.1} parent=5 // pred_region
        %s252 = ssub.s32 %s18, 1
        // Predicated region
        $region13: #{sae_forward.1} parent=11 // pred_check
          %p253 = pneg %p65
        $region14: #{sae_forward.1} parent=11 // pred_check_branch
          %255 = sbr.rel (%p253) target = $region16
        $region15: #{sae_forward.1} parent=11 // pred_region
          _
        $region16: #{sae_forward.1} parent=11 // pred_fallthru
          _
        // Predicated region
        $region17: #{sae_forward.1} parent=11 // pred_check
          %p256 = pneg %p86
        $region18: #{sae_forward.1} parent=11 // pred_check_branch
          %258 = sbr.rel (%p256) target = $region20
        $region19: #{sae_forward.1} parent=11 // pred_region
          _
        $region20: #{sae_forward.1} parent=11 // pred_fallthru
          _
        // Predicated region
        $region21: #{sae_forward.1} parent=11 // pred_check
          %p259 = pneg %p107
        $region22: #{sae_forward.1} parent=11 // pred_check_branch
          %261 = sbr.rel (%p259) target = $region24
        $region23: #{sae_forward.1} parent=11 // pred_region
          _
        $region24: #{sae_forward.1} parent=11 // pred_fallthru
          _
        // Predicated region
        $region25: #{sae_forward.1} parent=11 // pred_check
          %p262 = pneg %p128
        $region26: #{sae_forward.1} parent=11 // pred_check_branch
          %264 = sbr.rel (%p262) target = $region28
        $region27: #{sae_forward.1} parent=11 // pred_region
          _
        $region28: #{sae_forward.1} parent=11 // pred_fallthru
          _
        // Predicated region
        $region29: #{sae_forward.1} parent=11 // pred_check
          %p265 = pneg %p149
        $region30: #{sae_forward.1} parent=11 // pred_check_branch
          %267 = sbr.rel (%p265) target = $region32
        $region31: #{sae_forward.1} parent=11 // pred_region
          _
        $region32: #{sae_forward.1} parent=11 // pred_fallthru
          _
        // Predicated region
        $region33: #{sae_forward.1} parent=11 // pred_check
          %p268 = pneg %p170
        $region34: #{sae_forward.1} parent=11 // pred_check_branch
          %270 = sbr.rel (%p268) target = $region36
        $region35: #{sae_forward.1} parent=11 // pred_region
          _
        $region36: #{sae_forward.1} parent=11 // pred_fallthru
          _
        // Predicated region
        $region37: #{sae_forward.1} parent=11 // pred_check
          %p271 = pneg %p191
        $region38: #{sae_forward.1} parent=11 // pred_check_branch
          %273 = sbr.rel (%p271) target = $region40
        $region39: #{sae_forward.1} parent=11 // pred_region
          _
        $region40: #{sae_forward.1} parent=11 // pred_fallthru
          _
        // Predicated region
        $region41: #{sae_forward.1} parent=11 // pred_check
          %p274 = pneg %p212
        $region42: #{sae_forward.1} parent=11 // pred_check_branch
          %276 = sbr.rel (%p274) target = $region44
        $region43: #{sae_forward.1} parent=11 // pred_region
          _
        $region44: #{sae_forward.1} parent=11 // pred_fallthru
          _
      $region12: #{sae_forward.1} parent=5 // pred_fallthru
        _
      %p277 = scmp.lt.s32.totalorder %s18, 2
      // Predicated region
      $region45: #{sae_forward.1} parent=5 // pred_check
        %p278 = pneg %p277
      $region46: #{sae_forward.1} parent=5 // pred_check_branch
        %280 = sbr.rel (%p278) target = $region48
      $region47: #{sae_forward.1} parent=5 // pred_region
        // Predicated region
        $region49: #{sae_forward.1} parent=47 // pred_check
          %p281 = pneg %p38
        $region50: #{sae_forward.1} parent=47 // pred_check_branch
          %283 = sbr.rel (%p281) target = $region52
        $region51: #{sae_forward.1} parent=47 // pred_region
          %s284 = smul.u32 32, %s18
          %s285 = ssub.s32 63, %s284
          %p286 = scmp.lt.s32.totalorder %s285, 32
          %s287 = scalar_select %p286, %s285, 32
          %s288 = smul.u32 64, %s287
          %s289 = smul.u32 %s288, 2
          %p290 = scmp.lt.s32.totalorder %s284, 62
          %s291 = scalar_select %p290, %s284, 62
          %s292 = smul.addr %s291, 2
          %s293 = smul.addr %s292, 4
          %s294 = scalar_lea.vmem %s0, %s293
          %s295 = smul.u32 32, %s18
          %s296 = ssub.s32 63, %s295
          %p297 = scmp.lt.s32.totalorder %s296, 32
          %s298 = scalar_select %p297, %s296, 32
          %s299 = smul.u32 64, %s298
          %s300 = smul.u32 %s299, 2
        $region52: #{sae_forward.1} parent=47 // pred_fallthru
          _
      $region48: #{sae_forward.1} parent=5 // pred_fallthru
        _
      %p301 = scmp.le.s32.totalorder 1, %s18
      %p302 = scmp.lt.s32.totalorder %s18, 3
      %p303 = pnand %p301, %p302
      %p304 = pneg %p303
      // Predicated region
      $region53: #{sae_forward.1} parent=5 // pred_check
        _
      $region54: #{sae_forward.1} parent=5 // pred_check_branch
        %306 = sbr.rel (%p303) target = $region56
      $region55: #{sae_forward.1} parent=5 // pred_region
        %s307 = ssub.s32 %s18, 1
        %s308 = smul.u32 32, %s23
        %s309 = ssub.s32 63, %s308
        %p310 = scmp.lt.s32.totalorder %s309, 32
        %s311 = scalar_select %p310, %s309, 32
        %s312 = smul.u32 64, %s311
        %s313 = smul.u32 %s312, 2
        %p314 = scmp.lt.s32.totalorder %s308, 62
        %s315 = scalar_select %p314, %s308, 62
        %s316 = smul.addr %s315, 2
        %s317 = smul.addr %s316, 4
        %s318 = scalar_lea.vmem %s0, %s317
        %p319 = pneg %p44
        %p320 = pneg %p41
        %p321 = pneg %p65
        %p322 = pneg %p62
        %p323 = pneg %p86
        %p324 = pneg %p83
        %p325 = pneg %p107
        %p326 = pneg %p104
        %p327 = pneg %p128
        %p328 = pneg %p125
        %p329 = pneg %p149
        %p330 = pneg %p146
        %p331 = pneg %p170
        %p332 = pneg %p167
        %p333 = pneg %p191
        %p334 = pneg %p188
        %p335 = pneg %p212
        %p336 = pneg %p209
        %p337 = pneg %p238
        %p338 = pneg %p235
        %s339 = sand.u32 %s225, 1
        %s340 = scalar_lea.sflag [#allocation3], %s339
        %s341 = sand.u32 %s225, 1
        %s342 = smul.addr %s341, 512
        %s343 = scalar_lea.vmem [#allocation2], %s342
        %s344 = smul.u32 32, %s23
        %s345 = ssub.s32 63, %s344
        %p346 = scmp.lt.s32.totalorder %s345, 32
        %s347 = scalar_select %p346, %s345, 32
        %s348 = smul.u32 64, %s347
        %s349 = smul.u32 %s348, 2
        %p350 = scmp.lt.s32.totalorder %s344, 62
        %s351 = scalar_select %p350, %s344, 62
        %s352 = smul.addr %s351, 2
        %s353 = smul.addr %s352, 4
        %s354 = scalar_lea.vmem %s0, %s353
        %s355 = smul.u32 32, %s23
        %s356 = ssub.s32 63, %s355
        %p357 = scmp.lt.s32.totalorder %s356, 32
        %s358 = scalar_select %p357, %s356, 32
        %s359 = smul.u32 64, %s358
        %s360 = smul.u32 %s359, 2
        %s361 = smul.u32 32, %s23
        %s362 = ssub.s32 63, %s361
        %p363 = scmp.lt.s32.totalorder %s362, 32
        %s364 = scalar_select %p363, %s362, 32
        %s365 = smul.u32 128, %s364
        %s366 = smul.u32 %s365, 2
        %v368 = vld [vmem:[%s354] sm:$0xff]
        %v369 = vld [vmem:[%s354 + $0x8] sm:$0xff]
        %v370 = vld [vmem:[%s354 + $0x10] sm:$0xff]
        %v371 = vld [vmem:[%s354 + $0x18] sm:$0xff]
        %v372 = vld [vmem:[%s354 + $0x20] sm:$0xff]
        %v373 = vld [vmem:[%s354 + $0x28] sm:$0xff]
        %v374 = vld [vmem:[%s354 + $0x30] sm:$0xff]
        %v375 = vld [vmem:[%s354 + $0x38] sm:$0xff]
        %v376 = vld [vmem:[%s354 + $0x40] sm:$0xff]
        %v377 = vld [vmem:[%s354 + $0x48] sm:$0xff]
        %v378 = vld [vmem:[%s354 + $0x50] sm:$0xff]
        %v379 = vld [vmem:[%s354 + $0x58] sm:$0xff]
        %v380 = vld [vmem:[%s354 + $0x60] sm:$0xff]
        %v381 = vld [vmem:[%s354 + $0x68] sm:$0xff]
        %v382 = vld [vmem:[%s354 + $0x70] sm:$0xff]
        %v383 = vld [vmem:[%s354 + $0x78] sm:$0xff]
        %v384 = vld [vmem:[%s354 + $0x80] sm:$0xff]
        %v385 = vld [vmem:[%s354 + $0x88] sm:$0xff]
        %v386 = vld [vmem:[%s354 + $0x90] sm:$0xff]
        %v387 = vld [vmem:[%s354 + $0x98] sm:$0xff]
        %v388 = vld [vmem:[%s354 + $0xa0] sm:$0xff]
        %v389 = vld [vmem:[%s354 + $0xa8] sm:$0xff]
        %v390 = vld [vmem:[%s354 + $0xb0] sm:$0xff]
        %v391 = vld [vmem:[%s354 + $0xb8] sm:$0xff]
        %v392 = vld [vmem:[%s354 + $0xc0] sm:$0xff]
        %v393 = vld [vmem:[%s354 + $0xc8] sm:$0xff]
        %v394 = vld [vmem:[%s354 + $0xd0] sm:$0xff]
        %v395 = vld [vmem:[%s354 + $0xd8] sm:$0xff]
        %v396 = vld [vmem:[%s354 + $0xe0] sm:$0xff]
        %v397 = vld [vmem:[%s354 + $0xe8] sm:$0xff]
        %v398 = vld [vmem:[%s354 + $0xf0] sm:$0xff]
        %v399 = vld [vmem:[%s354 + $0xf8] sm:$0xff]
        %v400 = vld [vmem:[%s1] sm:$0xf]
        %v401 = vld [vmem:[%s1 + $0x4] sm:$0xf]
        %v402 = vld [vmem:[%s1 + $0x8] sm:$0xf]
        %v403 = vld [vmem:[%s1 + $0xc] sm:$0xf]
        %v404 = vld [vmem:[%s1 + $0x10] sm:$0xf]
        %v405 = vld [vmem:[%s1 + $0x14] sm:$0xf]
        %v406 = vld [vmem:[%s1 + $0x18] sm:$0xf]
        %v407 = vld [vmem:[%s1 + $0x1c] sm:$0xf]
        %v408 = vld [vmem:[%s1 + $0x20] sm:$0xf]
        %v409 = vld [vmem:[%s1 + $0x24] sm:$0xf]
        %v410 = vld [vmem:[%s1 + $0x28] sm:$0xf]
        %v411 = vld [vmem:[%s1 + $0x2c] sm:$0xf]
        %v412 = vld [vmem:[%s1 + $0x30] sm:$0xf]
        %v413 = vld [vmem:[%s1 + $0x34] sm:$0xf]
        %v414 = vld [vmem:[%s1 + $0x38] sm:$0xf]
        %v415 = vld [vmem:[%s1 + $0x3c] sm:$0xf]
        %v416 = vld [vmem:[%s1 + $0x40] sm:$0xf]
        %v417 = vld [vmem:[%s1 + $0x44] sm:$0xf]
        %v418 = vld [vmem:[%s1 + $0x48] sm:$0xf]
        %v419 = vld [vmem:[%s1 + $0x4c] sm:$0xf]
        %v420 = vld [vmem:[%s1 + $0x50] sm:$0xf]
        %v421 = vld [vmem:[%s1 + $0x54] sm:$0xf]
        %v422 = vld [vmem:[%s1 + $0x58] sm:$0xf]
        %v423 = vld [vmem:[%s1 + $0x5c] sm:$0xf]
        %v424 = vld [vmem:[%s1 + $0x60] sm:$0xf]
        %v425 = vld [vmem:[%s1 + $0x64] sm:$0xf]
        %v426 = vld [vmem:[%s1 + $0x68] sm:$0xf]
        %v427 = vld [vmem:[%s1 + $0x6c] sm:$0xf]
        %v428 = vld [vmem:[%s1 + $0x70] sm:$0xf]
        %v429 = vld [vmem:[%s1 + $0x74] sm:$0xf]
        %v430 = vld [vmem:[%s1 + $0x78] sm:$0xf]
        %v431 = vld [vmem:[%s1 + $0x7c] sm:$0xf]
        %v432 = vld [vmem:[%s2] sm:$0x1]
        %v434 = vlaneseq
        %v435 = vshrl.u32 %v434, 7
        %v436 = vsub.s32 0, %v435
        %v437 = vrot.slane %v432, %v436
        %v471 = vunpack.c.l.b16 %v368
        %v472 = vunpack.c.h.b16 %v368
        %v473 = vunpack.c.l.b16 %v369
        %v474 = vunpack.c.h.b16 %v369
        %v475 = vunpack.c.l.b16 %v370
        %v476 = vunpack.c.h.b16 %v370
        %v477 = vunpack.c.l.b16 %v371
        %v478 = vunpack.c.h.b16 %v371
        %v479 = vunpack.c.l.b16 %v372
        %v480 = vunpack.c.h.b16 %v372
        %v481 = vunpack.c.l.b16 %v373
        %v482 = vunpack.c.h.b16 %v373
        %v483 = vunpack.c.l.b16 %v374
        %v484 = vunpack.c.h.b16 %v374
        %v485 = vunpack.c.l.b16 %v375
        %v486 = vunpack.c.h.b16 %v375
        %v487 = vunpack.c.l.b16 %v376
        %v488 = vunpack.c.h.b16 %v376
        %v489 = vunpack.c.l.b16 %v377
        %v490 = vunpack.c.h.b16 %v377
        %v491 = vunpack.c.l.b16 %v378
        %v492 = vunpack.c.h.b16 %v378
        %v493 = vunpack.c.l.b16 %v379
        %v494 = vunpack.c.h.b16 %v379
        %v495 = vunpack.c.l.b16 %v380
        %v496 = vunpack.c.h.b16 %v380
        %v497 = vunpack.c.l.b16 %v381
        %v498 = vunpack.c.h.b16 %v381
        %v499 = vunpack.c.l.b16 %v382
        %v500 = vunpack.c.h.b16 %v382
        %v501 = vunpack.c.l.b16 %v383
        %v502 = vunpack.c.h.b16 %v383
        %v503 = vunpack.c.l.b16 %v384
        %v504 = vunpack.c.h.b16 %v384
        %v505 = vunpack.c.l.b16 %v385
        %v506 = vunpack.c.h.b16 %v385
        %v507 = vunpack.c.l.b16 %v386
        %v508 = vunpack.c.h.b16 %v386
        %v509 = vunpack.c.l.b16 %v387
        %v510 = vunpack.c.h.b16 %v387
        %v511 = vunpack.c.l.b16 %v388
        %v512 = vunpack.c.h.b16 %v388
        %v513 = vunpack.c.l.b16 %v389
        %v514 = vunpack.c.h.b16 %v389
        %v515 = vunpack.c.l.b16 %v390
        %v516 = vunpack.c.h.b16 %v390
        %v517 = vunpack.c.l.b16 %v391
        %v518 = vunpack.c.h.b16 %v391
        %v519 = vunpack.c.l.b16 %v392
        %v520 = vunpack.c.h.b16 %v392
        %v521 = vunpack.c.l.b16 %v393
        %v522 = vunpack.c.h.b16 %v393
        %v523 = vunpack.c.l.b16 %v394
        %v524 = vunpack.c.h.b16 %v394
        %v525 = vunpack.c.l.b16 %v395
        %v526 = vunpack.c.h.b16 %v395
        %v527 = vunpack.c.l.b16 %v396
        %v528 = vunpack.c.h.b16 %v396
        %v529 = vunpack.c.l.b16 %v397
        %v530 = vunpack.c.h.b16 %v397
        %v531 = vunpack.c.l.b16 %v398
        %v532 = vunpack.c.h.b16 %v398
        %v533 = vunpack.c.l.b16 %v399
        %v534 = vunpack.c.h.b16 %v399
        %v535 = vpack.c.b16 %v473, %v471
        %v536 = vpack.c.b16 %v474, %v472
        %v537 = vpack.c.b16 %v477, %v475
        %v538 = vpack.c.b16 %v478, %v476
        %v539 = vpack.c.b16 %v481, %v479
        %v540 = vpack.c.b16 %v482, %v480
        %v541 = vpack.c.b16 %v485, %v483
        %v542 = vpack.c.b16 %v486, %v484
        %v543 = vpack.c.b16 %v489, %v487
        %v544 = vpack.c.b16 %v490, %v488
        %v545 = vpack.c.b16 %v493, %v491
        %v546 = vpack.c.b16 %v494, %v492
        %v547 = vpack.c.b16 %v497, %v495
        %v548 = vpack.c.b16 %v498, %v496
        %v549 = vpack.c.b16 %v501, %v499
        %v550 = vpack.c.b16 %v502, %v500
        %v551 = vpack.c.b16 %v505, %v503
        %v552 = vpack.c.b16 %v506, %v504
        %v553 = vpack.c.b16 %v509, %v507
        %v554 = vpack.c.b16 %v510, %v508
        %v555 = vpack.c.b16 %v513, %v511
        %v556 = vpack.c.b16 %v514, %v512
        %v557 = vpack.c.b16 %v517, %v515
        %v558 = vpack.c.b16 %v518, %v516
        %v559 = vpack.c.b16 %v521, %v519
        %v560 = vpack.c.b16 %v522, %v520
        %v561 = vpack.c.b16 %v525, %v523
        %v562 = vpack.c.b16 %v526, %v524
        %v563 = vpack.c.b16 %v529, %v527
        %v564 = vpack.c.b16 %v530, %v528
        %v565 = vpack.c.b16 %v533, %v531
        %v566 = vpack.c.b16 %v534, %v532
        %v631 = vunpack.c.l.b16 %v400
        %v632 = vunpack.c.l.b16 %v401
        %v633 = vunpack.c.l.b16 %v402
        %v634 = vunpack.c.l.b16 %v403
        %v635 = vunpack.c.l.b16 %v404
        %v636 = vunpack.c.l.b16 %v405
        %v637 = vunpack.c.l.b16 %v406
        %v638 = vunpack.c.l.b16 %v407
        %v639 = vunpack.c.l.b16 %v408
        %v640 = vunpack.c.l.b16 %v409
        %v641 = vunpack.c.l.b16 %v410
        %v642 = vunpack.c.l.b16 %v411
        %v643 = vunpack.c.l.b16 %v412
        %v644 = vunpack.c.l.b16 %v413
        %v645 = vunpack.c.l.b16 %v414
        %v646 = vunpack.c.l.b16 %v415
        %v647 = vunpack.c.l.b16 %v416
        %v648 = vunpack.c.l.b16 %v417
        %v649 = vunpack.c.l.b16 %v418
        %v650 = vunpack.c.l.b16 %v419
        %v651 = vunpack.c.l.b16 %v420
        %v652 = vunpack.c.l.b16 %v421
        %v653 = vunpack.c.l.b16 %v422
        %v654 = vunpack.c.l.b16 %v423
        %v655 = vunpack.c.l.b16 %v424
        %v656 = vunpack.c.l.b16 %v425
        %v657 = vunpack.c.l.b16 %v426
        %v658 = vunpack.c.l.b16 %v427
        %v659 = vunpack.c.l.b16 %v428
        %v660 = vunpack.c.l.b16 %v429
        %v661 = vunpack.c.l.b16 %v430
        %v662 = vunpack.c.l.b16 %v431
        %v663 = vpack.c.b16 %v632, %v631
        %v664 = vpack.c.b16 %v634, %v633
        %v665 = vpack.c.b16 %v636, %v635
        %v666 = vpack.c.b16 %v638, %v637
        %v667 = vpack.c.b16 %v640, %v639
        %v668 = vpack.c.b16 %v642, %v641
        %v669 = vpack.c.b16 %v644, %v643
        %v670 = vpack.c.b16 %v646, %v645
        %v671 = vpack.c.b16 %v648, %v647
        %v672 = vpack.c.b16 %v650, %v649
        %v673 = vpack.c.b16 %v652, %v651
        %v674 = vpack.c.b16 %v654, %v653
        %v675 = vpack.c.b16 %v656, %v655
        %v676 = vpack.c.b16 %v658, %v657
        %v677 = vpack.c.b16 %v660, %v659
        %v678 = vpack.c.b16 %v662, %v661
        %695 = vmatprep.subr.bf16.mxu0 0
        %696 = vmatpush1.bf16.msra.mxu0 %v670
        %697 = vmatprep.subr.bf16.mxu0 0
        %698 = vmatpush1.bf16.msra.mxu0 %v669
        %699 = vmatprep.subr.bf16.mxu0 0
        %700 = vmatpush1.bf16.msra.mxu0 %v668
        %701 = vmatprep.subr.bf16.mxu0 0
        %702 = vmatpush1.bf16.msra.mxu0 %v667
        %703 = vmatprep.subr.bf16.mxu0 0
        %704 = vmatpush1.bf16.msra.mxu0 %v666
        %705 = vmatprep.subr.bf16.mxu0 0
        %706 = vmatpush1.bf16.msra.mxu0 %v665
        %707 = vmatprep.subr.bf16.mxu0 0
        %708 = vmatpush1.bf16.msra.mxu0 %v664
        %709 = vmatprep.subr.bf16.mxu0 0
        %710 = vmatpush1.bf16.msra.mxu0 %v663
        %711 = vmatprep.subr.bf16.mxu0 0
        %712 = vmatpush2.bf16.msra.mxu0 %v678
        %713 = vmatprep.subr.bf16.mxu0 0
        %714 = vmatpush2.bf16.msra.mxu0 %v677
        %715 = vmatprep.subr.bf16.mxu0 0
        %716 = vmatpush2.bf16.msra.mxu0 %v676
        %717 = vmatprep.subr.bf16.mxu0 0
        %718 = vmatpush2.bf16.msra.mxu0 %v675
        %719 = vmatprep.subr.bf16.mxu0 0
        %720 = vmatpush2.bf16.msra.mxu0 %v674
        %721 = vmatprep.subr.bf16.mxu0 0
        %722 = vmatpush2.bf16.msra.mxu0 %v673
        %723 = vmatprep.subr.bf16.mxu0 0
        %724 = vmatpush2.bf16.msra.mxu0 %v672
        %725 = vmatprep.subr.bf16.mxu0 0
        %726 = vmatpush2.bf16.msra.mxu0 %v671
        %727 = vmatprep.mubr.bf16.mxu0 %v536
        %728 = vmatmul.mubr.bf16.gmra.mxu0 %v535
        %v729 = vpop.f32.mrf.mxu0
        %v730 = vadd.f32 %v437, %v729
        %v731 = vpop.f32.mrf.mxu0
        %v732 = vpop.f32.mrf.mxu0
        %v733 = vadd.f32 %v437, %v732
        %v734 = vpop.f32.mrf.mxu0
        %735 = vmatprep.mubr.bf16.mxu0 %v538
        %736 = vmatmul.mubr.bf16.gmra.mxu0 %v537
        %v737 = vpop.f32.mrf.mxu0
        %v738 = vadd.f32 %v437, %v737
        %v739 = vpop.f32.mrf.mxu0
        %v740 = vpop.f32.mrf.mxu0
        %v741 = vadd.f32 %v437, %v740
        %v742 = vpop.f32.mrf.mxu0
        %743 = vmatprep.mubr.bf16.mxu0 %v540
        %744 = vmatmul.mubr.bf16.gmra.mxu0 %v539
        %v745 = vpop.f32.mrf.mxu0
        %v746 = vadd.f32 %v437, %v745
        %v747 = vpop.f32.mrf.mxu0
        %v748 = vpop.f32.mrf.mxu0
        %v749 = vadd.f32 %v437, %v748
        %v750 = vpop.f32.mrf.mxu0
        %751 = vmatprep.mubr.bf16.mxu0 %v542
        %752 = vmatmul.mubr.bf16.gmra.mxu0 %v541
        %v753 = vpop.f32.mrf.mxu0
        %v754 = vadd.f32 %v437, %v753
        %v755 = vpop.f32.mrf.mxu0
        %v756 = vpop.f32.mrf.mxu0
        %v757 = vadd.f32 %v437, %v756
        %v758 = vpop.f32.mrf.mxu0
        %759 = vmatprep.mubr.bf16.mxu0 %v544
        %760 = vmatmul.mubr.bf16.gmra.mxu0 %v543
        %v761 = vpop.f32.mrf.mxu0
        %v762 = vadd.f32 %v437, %v761
        %v763 = vpop.f32.mrf.mxu0
        %v764 = vpop.f32.mrf.mxu0
        %v765 = vadd.f32 %v437, %v764
        %v766 = vpop.f32.mrf.mxu0
        %767 = vmatprep.mubr.bf16.mxu0 %v546
        %768 = vmatmul.mubr.bf16.gmra.mxu0 %v545
        %v769 = vpop.f32.mrf.mxu0
        %v770 = vadd.f32 %v437, %v769
        %v771 = vpop.f32.mrf.mxu0
        %v772 = vpop.f32.mrf.mxu0
        %v773 = vadd.f32 %v437, %v772
        %v774 = vpop.f32.mrf.mxu0
        %775 = vmatprep.mubr.bf16.mxu0 %v548
        %776 = vmatmul.mubr.bf16.gmra.mxu0 %v547
        %v777 = vpop.f32.mrf.mxu0
        %v778 = vadd.f32 %v437, %v777
        %v779 = vpop.f32.mrf.mxu0
        %v780 = vpop.f32.mrf.mxu0
        %v781 = vadd.f32 %v437, %v780
        %v782 = vpop.f32.mrf.mxu0
        %783 = vmatprep.mubr.bf16.mxu0 %v550
        %784 = vmatmul.mubr.bf16.gmra.mxu0 %v549
        %v785 = vpop.f32.mrf.mxu0
        %v786 = vadd.f32 %v437, %v785
        %v787 = vpop.f32.mrf.mxu0
        %v788 = vpop.f32.mrf.mxu0
        %v789 = vadd.f32 %v437, %v788
        %v790 = vpop.f32.mrf.mxu0
        %791 = vmatprep.mubr.bf16.mxu0 %v552
        %792 = vmatmul.mubr.bf16.gmra.mxu0 %v551
        %v793 = vpop.f32.mrf.mxu0
        %v794 = vadd.f32 %v437, %v793
        %v795 = vpop.f32.mrf.mxu0
        %v796 = vpop.f32.mrf.mxu0
        %v797 = vadd.f32 %v437, %v796
        %v798 = vpop.f32.mrf.mxu0
        %799 = vmatprep.mubr.bf16.mxu0 %v554
        %800 = vmatmul.mubr.bf16.gmra.mxu0 %v553
        %v801 = vpop.f32.mrf.mxu0
        %v802 = vadd.f32 %v437, %v801
        %v803 = vpop.f32.mrf.mxu0
        %v804 = vpop.f32.mrf.mxu0
        %v805 = vadd.f32 %v437, %v804
        %v806 = vpop.f32.mrf.mxu0
        %807 = vmatprep.mubr.bf16.mxu0 %v556
        %808 = vmatmul.mubr.bf16.gmra.mxu0 %v555
        %v809 = vpop.f32.mrf.mxu0
        %v810 = vadd.f32 %v437, %v809
        %v811 = vpop.f32.mrf.mxu0
        %v812 = vpop.f32.mrf.mxu0
        %v813 = vadd.f32 %v437, %v812
        %v814 = vpop.f32.mrf.mxu0
        %815 = vmatprep.mubr.bf16.mxu0 %v558
        %816 = vmatmul.mubr.bf16.gmra.mxu0 %v557
        %v817 = vpop.f32.mrf.mxu0
        %v818 = vadd.f32 %v437, %v817
        %v819 = vpop.f32.mrf.mxu0
        %v820 = vpop.f32.mrf.mxu0
        %v821 = vadd.f32 %v437, %v820
        %v822 = vpop.f32.mrf.mxu0
        %823 = vmatprep.mubr.bf16.mxu0 %v560
        %824 = vmatmul.mubr.bf16.gmra.mxu0 %v559
        %v825 = vpop.f32.mrf.mxu0
        %v826 = vadd.f32 %v437, %v825
        %v827 = vpop.f32.mrf.mxu0
        %v828 = vpop.f32.mrf.mxu0
        %v829 = vadd.f32 %v437, %v828
        %v830 = vpop.f32.mrf.mxu0
        %831 = vmatprep.mubr.bf16.mxu0 %v562
        %832 = vmatmul.mubr.bf16.gmra.mxu0 %v561
        %v833 = vpop.f32.mrf.mxu0
        %v834 = vadd.f32 %v437, %v833
        %v835 = vpop.f32.mrf.mxu0
        %v836 = vpop.f32.mrf.mxu0
        %v837 = vadd.f32 %v437, %v836
        %v838 = vpop.f32.mrf.mxu0
        %839 = vmatprep.mubr.bf16.mxu0 %v564
        %840 = vmatmul.mubr.bf16.gmra.mxu0 %v563
        %v841 = vpop.f32.mrf.mxu0
        %v842 = vadd.f32 %v437, %v841
        %v843 = vpop.f32.mrf.mxu0
        %v844 = vpop.f32.mrf.mxu0
        %v845 = vadd.f32 %v437, %v844
        %v846 = vpop.f32.mrf.mxu0
        %847 = vmatprep.mubr.bf16.mxu0 %v566
        %848 = vmatmul.mubr.bf16.gmra.mxu0 %v565
        %v849 = vpop.f32.mrf.mxu0
        %v850 = vadd.f32 %v437, %v849
        %v851 = vpop.f32.mrf.mxu0
        %v852 = vpop.f32.mrf.mxu0
        %v853 = vadd.f32 %v437, %v852
        %v854 = vpop.f32.mrf.mxu0
        %855 = vdwg.mxu0
        %v856 = vxor.u32 %v730, 2147483648
        %v857 = vxor.u32 %v733, 2147483648
        %v858 = vxor.u32 %v738, 2147483648
        %v859 = vxor.u32 %v741, 2147483648
        %v860 = vxor.u32 %v746, 2147483648
        %v861 = vxor.u32 %v749, 2147483648
        %v862 = vxor.u32 %v754, 2147483648
        %v863 = vxor.u32 %v757, 2147483648
        %v864 = vxor.u32 %v762, 2147483648
        %v865 = vxor.u32 %v765, 2147483648
        %v866 = vxor.u32 %v770, 2147483648
        %v867 = vxor.u32 %v773, 2147483648
        %v868 = vxor.u32 %v778, 2147483648
        %v869 = vxor.u32 %v781, 2147483648
        %v870 = vxor.u32 %v786, 2147483648
        %v871 = vxor.u32 %v789, 2147483648
        %v872 = vxor.u32 %v794, 2147483648
        %v873 = vxor.u32 %v797, 2147483648
        %v874 = vxor.u32 %v802, 2147483648
        %v875 = vxor.u32 %v805, 2147483648
        %v876 = vxor.u32 %v810, 2147483648
        %v877 = vxor.u32 %v813, 2147483648
        %v878 = vxor.u32 %v818, 2147483648
        %v879 = vxor.u32 %v821, 2147483648
        %v880 = vxor.u32 %v826, 2147483648
        %v881 = vxor.u32 %v829, 2147483648
        %v882 = vxor.u32 %v834, 2147483648
        %v883 = vxor.u32 %v837, 2147483648
        %v884 = vxor.u32 %v842, 2147483648
        %v885 = vxor.u32 %v845, 2147483648
        %v886 = vxor.u32 %v850, 2147483648
        %v887 = vxor.u32 %v853, 2147483648
        %v888 = vmul.f32 %v856, 1.442695
        %v889 = vpow.pop %v888
        %v890 = vmul.f32 %v857, 1.442695
        %v891 = vpow.pop %v890
        %v892 = vmul.f32 %v858, 1.442695
        %v893 = vpow.pop %v892
        %v894 = vmul.f32 %v859, 1.442695
        %v895 = vpow.pop %v894
        %v896 = vmul.f32 %v860, 1.442695
        %v897 = vpow.pop %v896
        %v898 = vmul.f32 %v861, 1.442695
        %v899 = vpow.pop %v898
        %v900 = vmul.f32 %v862, 1.442695
        %v901 = vpow.pop %v900
        %v902 = vmul.f32 %v863, 1.442695
        %v903 = vpow.pop %v902
        %v904 = vmul.f32 %v864, 1.442695
        %v905 = vpow.pop %v904
        %v906 = vmul.f32 %v865, 1.442695
        %v907 = vpow.pop %v906
        %v908 = vmul.f32 %v866, 1.442695
        %v909 = vpow.pop %v908
        %v910 = vmul.f32 %v867, 1.442695
        %v911 = vpow.pop %v910
        %v912 = vmul.f32 %v868, 1.442695
        %v913 = vpow.pop %v912
        %v914 = vmul.f32 %v869, 1.442695
        %v915 = vpow.pop %v914
        %v916 = vmul.f32 %v870, 1.442695
        %v917 = vpow.pop %v916
        %v918 = vmul.f32 %v871, 1.442695
        %v919 = vpow.pop %v918
        %v920 = vmul.f32 %v872, 1.442695
        %v921 = vpow.pop %v920
        %v922 = vmul.f32 %v873, 1.442695
        %v923 = vpow.pop %v922
        %v924 = vmul.f32 %v874, 1.442695
        %v925 = vpow.pop %v924
        %v926 = vmul.f32 %v875, 1.442695
        %v927 = vpow.pop %v926
        %v928 = vmul.f32 %v876, 1.442695
        %v929 = vpow.pop %v928
        %v930 = vmul.f32 %v877, 1.442695
        %v931 = vpow.pop %v930
        %v932 = vmul.f32 %v878, 1.442695
        %v933 = vpow.pop %v932
        %v934 = vmul.f32 %v879, 1.442695
        %v935 = vpow.pop %v934
        %v936 = vmul.f32 %v880, 1.442695
        %v937 = vpow.pop %v936
        %v938 = vmul.f32 %v881, 1.442695
        %v939 = vpow.pop %v938
        %v940 = vmul.f32 %v882, 1.442695
        %v941 = vpow.pop %v940
        %v942 = vmul.f32 %v883, 1.442695
        %v943 = vpow.pop %v942
        %v944 = vmul.f32 %v884, 1.442695
        %v945 = vpow.pop %v944
        %v946 = vmul.f32 %v885, 1.442695
        %v947 = vpow.pop %v946
        %v948 = vmul.f32 %v886, 1.442695
        %v949 = vpow.pop %v948
        %v950 = vmul.f32 %v887, 1.442695
        %v951 = vpow.pop %v950
        %v952 = vadd.f32 %v889, 1.0
        %v953 = vadd.f32 %v891, 1.0
        %v954 = vadd.f32 %v893, 1.0
        %v955 = vadd.f32 %v895, 1.0
        %v956 = vadd.f32 %v897, 1.0
        %v957 = vadd.f32 %v899, 1.0
        %v958 = vadd.f32 %v901, 1.0
        %v959 = vadd.f32 %v903, 1.0
        %v960 = vadd.f32 %v905, 1.0
        %v961 = vadd.f32 %v907, 1.0
        %v962 = vadd.f32 %v909, 1.0
        %v963 = vadd.f32 %v911, 1.0
        %v964 = vadd.f32 %v913, 1.0
        %v965 = vadd.f32 %v915, 1.0
        %v966 = vadd.f32 %v917, 1.0
        %v967 = vadd.f32 %v919, 1.0
        %v968 = vadd.f32 %v921, 1.0
        %v969 = vadd.f32 %v923, 1.0
        %v970 = vadd.f32 %v925, 1.0
        %v971 = vadd.f32 %v927, 1.0
        %v972 = vadd.f32 %v929, 1.0
        %v973 = vadd.f32 %v931, 1.0
        %v974 = vadd.f32 %v933, 1.0
        %v975 = vadd.f32 %v935, 1.0
        %v976 = vadd.f32 %v937, 1.0
        %v977 = vadd.f32 %v939, 1.0
        %v978 = vadd.f32 %v941, 1.0
        %v979 = vadd.f32 %v943, 1.0
        %v980 = vadd.f32 %v945, 1.0
        %v981 = vadd.f32 %v947, 1.0
        %v982 = vadd.f32 %v949, 1.0
        %v983 = vadd.f32 %v951, 1.0
        %v984 = vrcp.pop %v952
        %v985 = vmul.f32 1.0, %v984
        %v986 = vrcp.pop %v953
        %v987 = vmul.f32 1.0, %v986
        %v988 = vrcp.pop %v954
        %v989 = vmul.f32 1.0, %v988
        %v990 = vrcp.pop %v955
        %v991 = vmul.f32 1.0, %v990
        %v992 = vrcp.pop %v956
        %v993 = vmul.f32 1.0, %v992
        %v994 = vrcp.pop %v957
        %v995 = vmul.f32 1.0, %v994
        %v996 = vrcp.pop %v958
        %v997 = vmul.f32 1.0, %v996
        %v998 = vrcp.pop %v959
        %v999 = vmul.f32 1.0, %v998
        %v1000 = vrcp.pop %v960
        %v1001 = vmul.f32 1.0, %v1000
        %v1002 = vrcp.pop %v961
        %v1003 = vmul.f32 1.0, %v1002
        %v1004 = vrcp.pop %v962
        %v1005 = vmul.f32 1.0, %v1004
        %v1006 = vrcp.pop %v963
        %v1007 = vmul.f32 1.0, %v1006
        %v1008 = vrcp.pop %v964
        %v1009 = vmul.f32 1.0, %v1008
        %v1010 = vrcp.pop %v965
        %v1011 = vmul.f32 1.0, %v1010
        %v1012 = vrcp.pop %v966
        %v1013 = vmul.f32 1.0, %v1012
        %v1014 = vrcp.pop %v967
        %v1015 = vmul.f32 1.0, %v1014
        %v1016 = vrcp.pop %v968
        %v1017 = vmul.f32 1.0, %v1016
        %v1018 = vrcp.pop %v969
        %v1019 = vmul.f32 1.0, %v1018
        %v1020 = vrcp.pop %v970
        %v1021 = vmul.f32 1.0, %v1020
        %v1022 = vrcp.pop %v971
        %v1023 = vmul.f32 1.0, %v1022
        %v1024 = vrcp.pop %v972
        %v1025 = vmul.f32 1.0, %v1024
        %v1026 = vrcp.pop %v973
        %v1027 = vmul.f32 1.0, %v1026
        %v1028 = vrcp.pop %v974
        %v1029 = vmul.f32 1.0, %v1028
        %v1030 = vrcp.pop %v975
        %v1031 = vmul.f32 1.0, %v1030
        %v1032 = vrcp.pop %v976
        %v1033 = vmul.f32 1.0, %v1032
        %v1034 = vrcp.pop %v977
        %v1035 = vmul.f32 1.0, %v1034
        %v1036 = vrcp.pop %v978
        %v1037 = vmul.f32 1.0, %v1036
        %v1038 = vrcp.pop %v979
        %v1039 = vmul.f32 1.0, %v1038
        %v1040 = vrcp.pop %v980
        %v1041 = vmul.f32 1.0, %v1040
        %v1042 = vrcp.pop %v981
        %v1043 = vmul.f32 1.0, %v1042
        %v1044 = vrcp.pop %v982
        %v1045 = vmul.f32 1.0, %v1044
        %v1046 = vrcp.pop %v983
        %v1047 = vmul.f32 1.0, %v1046
        %v1048 = vpack.c.bf16 %v987, %v985
        %v1049 = vpack.c.bf16 %v991, %v989
        %v1050 = vpack.c.bf16 %v995, %v993
        %v1051 = vpack.c.bf16 %v999, %v997
        %v1052 = vpack.c.bf16 %v1003, %v1001
        %v1053 = vpack.c.bf16 %v1007, %v1005
        %v1054 = vpack.c.bf16 %v1011, %v1009
        %v1055 = vpack.c.bf16 %v1015, %v1013
        %v1056 = vpack.c.bf16 %v1019, %v1017
        %v1057 = vpack.c.bf16 %v1023, %v1021
        %v1058 = vpack.c.bf16 %v1027, %v1025
        %v1059 = vpack.c.bf16 %v1031, %v1029
        %v1060 = vpack.c.bf16 %v1035, %v1033
        %v1061 = vpack.c.bf16 %v1039, %v1037
        %v1062 = vpack.c.bf16 %v1043, %v1041
        %v1063 = vpack.c.bf16 %v1047, %v1045
        %v1064 = vld [vmem:[%s3] sm:$0xf]
        %v1065 = vld [vmem:[%s3 + $0x4] sm:$0xf]
        %v1066 = vld [vmem:[%s3 + $0x8] sm:$0xf]
        %v1067 = vld [vmem:[%s3 + $0xc] sm:$0xf]
        %v1068 = vld [vmem:[%s3 + $0x10] sm:$0xf]
        %v1069 = vld [vmem:[%s3 + $0x14] sm:$0xf]
        %v1070 = vld [vmem:[%s3 + $0x18] sm:$0xf]
        %v1071 = vld [vmem:[%s3 + $0x1c] sm:$0xf]
        %v1072 = vld [vmem:[%s3 + $0x20] sm:$0xf]
        %v1073 = vld [vmem:[%s3 + $0x24] sm:$0xf]
        %v1074 = vld [vmem:[%s3 + $0x28] sm:$0xf]
        %v1075 = vld [vmem:[%s3 + $0x2c] sm:$0xf]
        %v1076 = vld [vmem:[%s3 + $0x30] sm:$0xf]
        %v1077 = vld [vmem:[%s3 + $0x34] sm:$0xf]
        %v1078 = vld [vmem:[%s3 + $0x38] sm:$0xf]
        %v1079 = vld [vmem:[%s3 + $0x3c] sm:$0xf]
        %v1080 = vld [vmem:[%s4] sm:$0x1]
        %v1082 = vlaneseq
        %v1083 = vshrl.u32 %v1082, 7
        %v1084 = vsub.s32 0, %v1083
        %v1085 = vrot.slane %v1080, %v1084
        %v1103 = vunpack.c.l.b16 %v1064
        %v1104 = vunpack.c.l.b16 %v1065
        %v1105 = vunpack.c.l.b16 %v1066
        %v1106 = vunpack.c.l.b16 %v1067
        %v1107 = vunpack.c.l.b16 %v1068
        %v1108 = vunpack.c.l.b16 %v1069
        %v1109 = vunpack.c.l.b16 %v1070
        %v1110 = vunpack.c.l.b16 %v1071
        %v1111 = vunpack.c.l.b16 %v1072
        %v1112 = vunpack.c.l.b16 %v1073
        %v1113 = vunpack.c.l.b16 %v1074
        %v1114 = vunpack.c.l.b16 %v1075
        %v1115 = vunpack.c.l.b16 %v1076
        %v1116 = vunpack.c.l.b16 %v1077
        %v1117 = vunpack.c.l.b16 %v1078
        %v1118 = vunpack.c.l.b16 %v1079
        %v1119 = vpack.c.b16 %v1104, %v1103
        %v1120 = vpack.c.b16 %v1106, %v1105
        %v1121 = vpack.c.b16 %v1108, %v1107
        %v1122 = vpack.c.b16 %v1110, %v1109
        %v1123 = vpack.c.b16 %v1112, %v1111
        %v1124 = vpack.c.b16 %v1114, %v1113
        %v1125 = vpack.c.b16 %v1116, %v1115
        %v1126 = vpack.c.b16 %v1118, %v1117
        %1135 = vmatprep.subr.bf16.mxu0 0
        %1136 = vmatpush1.bf16.msra.mxu0 %v1126
        %1137 = vmatprep.subr.bf16.mxu0 0
        %1138 = vmatpush1.bf16.msra.mxu0 %v1125
        %1139 = vmatprep.subr.bf16.mxu0 0
        %1140 = vmatpush1.bf16.msra.mxu0 %v1124
        %1141 = vmatprep.subr.bf16.mxu0 0
        %1142 = vmatpush1.bf16.msra.mxu0 %v1123
        %1143 = vmatprep.subr.bf16.mxu0 0
        %1144 = vmatpush1.bf16.msra.mxu0 %v1122
        %1145 = vmatprep.subr.bf16.mxu0 0
        %1146 = vmatpush1.bf16.msra.mxu0 %v1121
        %1147 = vmatprep.subr.bf16.mxu0 0
        %1148 = vmatpush1.bf16.msra.mxu0 %v1120
        %1149 = vmatprep.subr.bf16.mxu0 0
        %1150 = vmatpush1.bf16.msra.mxu0 %v1119
        %1151 = vmatprep.subr.bf16.mxu0 0
        %1152 = vmatpush2.bf16.msra.mxu0 0
        %1153 = vmatprep.subr.bf16.mxu0 0
        %1154 = vmatpush2.bf16.msra.mxu0 0
        %1155 = vmatprep.subr.bf16.mxu0 0
        %1156 = vmatpush2.bf16.msra.mxu0 0
        %1157 = vmatprep.subr.bf16.mxu0 0
        %1158 = vmatpush2.bf16.msra.mxu0 0
        %1159 = vmatprep.subr.bf16.mxu0 0
        %1160 = vmatpush2.bf16.msra.mxu0 0
        %1161 = vmatprep.subr.bf16.mxu0 0
        %1162 = vmatpush2.bf16.msra.mxu0 0
        %1163 = vmatprep.subr.bf16.mxu0 0
        %1164 = vmatpush2.bf16.msra.mxu0 0
        %1165 = vmatprep.subr.bf16.mxu0 0
        %1166 = vmatpush2.bf16.msra.mxu0 0
        %1167 = vmatprep.mubr.bf16.mxu0 0
        %1168 = vmatmul.mubr.bf16.gmra.mxu0 %v1048
        %v1169 = vpop.f32.mrf.mxu0
        %v1170 = vadd.f32 %v1085, %v1169
        %v1171 = vpop.f32.mrf.mxu0
        %v1172 = vpop.f32.mrf.mxu0
        %v1173 = vadd.f32 %v1085, %v1172
        %v1174 = vpop.f32.mrf.mxu0
        %1175 = vmatprep.mubr.bf16.mxu0 0
        %1176 = vmatmul.mubr.bf16.gmra.mxu0 %v1049
        %v1177 = vpop.f32.mrf.mxu0
        %v1178 = vadd.f32 %v1085, %v1177
        %v1179 = vpop.f32.mrf.mxu0
        %v1180 = vpop.f32.mrf.mxu0
        %v1181 = vadd.f32 %v1085, %v1180
        %v1182 = vpop.f32.mrf.mxu0
        %1183 = vmatprep.mubr.bf16.mxu0 0
        %1184 = vmatmul.mubr.bf16.gmra.mxu0 %v1050
        %v1185 = vpop.f32.mrf.mxu0
        %v1186 = vadd.f32 %v1085, %v1185
        %v1187 = vpop.f32.mrf.mxu0
        %v1188 = vpop.f32.mrf.mxu0
        %v1189 = vadd.f32 %v1085, %v1188
        %v1190 = vpop.f32.mrf.mxu0
        %1191 = vmatprep.mubr.bf16.mxu0 0
        %1192 = vmatmul.mubr.bf16.gmra.mxu0 %v1051
        %v1193 = vpop.f32.mrf.mxu0
        %v1194 = vadd.f32 %v1085, %v1193
        %v1195 = vpop.f32.mrf.mxu0
        %v1196 = vpop.f32.mrf.mxu0
        %v1197 = vadd.f32 %v1085, %v1196
        %v1198 = vpop.f32.mrf.mxu0
        %1199 = vmatprep.mubr.bf16.mxu0 0
        %1200 = vmatmul.mubr.bf16.gmra.mxu0 %v1052
        %v1201 = vpop.f32.mrf.mxu0
        %v1202 = vadd.f32 %v1085, %v1201
        %v1203 = vpop.f32.mrf.mxu0
        %v1204 = vpop.f32.mrf.mxu0
        %v1205 = vadd.f32 %v1085, %v1204
        %v1206 = vpop.f32.mrf.mxu0
        %1207 = vmatprep.mubr.bf16.mxu0 0
        %1208 = vmatmul.mubr.bf16.gmra.mxu0 %v1053
        %v1209 = vpop.f32.mrf.mxu0
        %v1210 = vadd.f32 %v1085, %v1209
        %v1211 = vpop.f32.mrf.mxu0
        %v1212 = vpop.f32.mrf.mxu0
        %v1213 = vadd.f32 %v1085, %v1212
        %v1214 = vpop.f32.mrf.mxu0
        %1215 = vmatprep.mubr.bf16.mxu0 0
        %1216 = vmatmul.mubr.bf16.gmra.mxu0 %v1054
        %v1217 = vpop.f32.mrf.mxu0
        %v1218 = vadd.f32 %v1085, %v1217
        %v1219 = vpop.f32.mrf.mxu0
        %v1220 = vpop.f32.mrf.mxu0
        %v1221 = vadd.f32 %v1085, %v1220
        %v1222 = vpop.f32.mrf.mxu0
        %1223 = vmatprep.mubr.bf16.mxu0 0
        %1224 = vmatmul.mubr.bf16.gmra.mxu0 %v1055
        %v1225 = vpop.f32.mrf.mxu0
        %v1226 = vadd.f32 %v1085, %v1225
        %v1227 = vpop.f32.mrf.mxu0
        %v1228 = vpop.f32.mrf.mxu0
        %v1229 = vadd.f32 %v1085, %v1228
        %v1230 = vpop.f32.mrf.mxu0
        %1231 = vmatprep.mubr.bf16.mxu0 0
        %1232 = vmatmul.mubr.bf16.gmra.mxu0 %v1056
        %v1233 = vpop.f32.mrf.mxu0
        %v1234 = vadd.f32 %v1085, %v1233
        %v1235 = vpop.f32.mrf.mxu0
        %v1236 = vpop.f32.mrf.mxu0
        %v1237 = vadd.f32 %v1085, %v1236
        %v1238 = vpop.f32.mrf.mxu0
        %1239 = vmatprep.mubr.bf16.mxu0 0
        %1240 = vmatmul.mubr.bf16.gmra.mxu0 %v1057
        %v1241 = vpop.f32.mrf.mxu0
        %v1242 = vadd.f32 %v1085, %v1241
        %v1243 = vpop.f32.mrf.mxu0
        %v1244 = vpop.f32.mrf.mxu0
        %v1245 = vadd.f32 %v1085, %v1244
        %v1246 = vpop.f32.mrf.mxu0
        %1247 = vmatprep.mubr.bf16.mxu0 0
        %1248 = vmatmul.mubr.bf16.gmra.mxu0 %v1058
        %v1249 = vpop.f32.mrf.mxu0
        %v1250 = vadd.f32 %v1085, %v1249
        %v1251 = vpop.f32.mrf.mxu0
        %v1252 = vpop.f32.mrf.mxu0
        %v1253 = vadd.f32 %v1085, %v1252
        %v1254 = vpop.f32.mrf.mxu0
        %1255 = vmatprep.mubr.bf16.mxu0 0
        %1256 = vmatmul.mubr.bf16.gmra.mxu0 %v1059
        %v1257 = vpop.f32.mrf.mxu0
        %v1258 = vadd.f32 %v1085, %v1257
        %v1259 = vpop.f32.mrf.mxu0
        %v1260 = vpop.f32.mrf.mxu0
        %v1261 = vadd.f32 %v1085, %v1260
        %v1262 = vpop.f32.mrf.mxu0
        %1263 = vmatprep.mubr.bf16.mxu0 0
        %1264 = vmatmul.mubr.bf16.gmra.mxu0 %v1060
        %v1265 = vpop.f32.mrf.mxu0
        %v1266 = vadd.f32 %v1085, %v1265
        %v1267 = vpop.f32.mrf.mxu0
        %v1268 = vpop.f32.mrf.mxu0
        %v1269 = vadd.f32 %v1085, %v1268
        %v1270 = vpop.f32.mrf.mxu0
        %1271 = vmatprep.mubr.bf16.mxu0 0
        %1272 = vmatmul.mubr.bf16.gmra.mxu0 %v1061
        %v1273 = vpop.f32.mrf.mxu0
        %v1274 = vadd.f32 %v1085, %v1273
        %v1275 = vpop.f32.mrf.mxu0
        %v1276 = vpop.f32.mrf.mxu0
        %v1277 = vadd.f32 %v1085, %v1276
        %v1278 = vpop.f32.mrf.mxu0
        %1279 = vmatprep.mubr.bf16.mxu0 0
        %1280 = vmatmul.mubr.bf16.gmra.mxu0 %v1062
        %v1281 = vpop.f32.mrf.mxu0
        %v1282 = vadd.f32 %v1085, %v1281
        %v1283 = vpop.f32.mrf.mxu0
        %v1284 = vpop.f32.mrf.mxu0
        %v1285 = vadd.f32 %v1085, %v1284
        %v1286 = vpop.f32.mrf.mxu0
        %1287 = vmatprep.mubr.bf16.mxu0 0
        %1288 = vmatmul.mubr.bf16.gmra.mxu0 %v1063
        %v1289 = vpop.f32.mrf.mxu0
        %v1290 = vadd.f32 %v1085, %v1289
        %v1291 = vpop.f32.mrf.mxu0
        %v1292 = vpop.f32.mrf.mxu0
        %v1293 = vadd.f32 %v1085, %v1292
        %v1294 = vpop.f32.mrf.mxu0
        %1295 = vdwg.mxu0
        %v1296 = vxor.u32 %v1170, 2147483648
        %v1297 = vxor.u32 %v1173, 2147483648
        %v1298 = vxor.u32 %v1178, 2147483648
        %v1299 = vxor.u32 %v1181, 2147483648
        %v1300 = vxor.u32 %v1186, 2147483648
        %v1301 = vxor.u32 %v1189, 2147483648
        %v1302 = vxor.u32 %v1194, 2147483648
        %v1303 = vxor.u32 %v1197, 2147483648
        %v1304 = vxor.u32 %v1202, 2147483648
        %v1305 = vxor.u32 %v1205, 2147483648
        %v1306 = vxor.u32 %v1210, 2147483648
        %v1307 = vxor.u32 %v1213, 2147483648
        %v1308 = vxor.u32 %v1218, 2147483648
        %v1309 = vxor.u32 %v1221, 2147483648
        %v1310 = vxor.u32 %v1226, 2147483648
        %v1311 = vxor.u32 %v1229, 2147483648
        %v1312 = vxor.u32 %v1234, 2147483648
        %v1313 = vxor.u32 %v1237, 2147483648
        %v1314 = vxor.u32 %v1242, 2147483648
        %v1315 = vxor.u32 %v1245, 2147483648
        %v1316 = vxor.u32 %v1250, 2147483648
        %v1317 = vxor.u32 %v1253, 2147483648
        %v1318 = vxor.u32 %v1258, 2147483648
        %v1319 = vxor.u32 %v1261, 2147483648
        %v1320 = vxor.u32 %v1266, 2147483648
        %v1321 = vxor.u32 %v1269, 2147483648
        %v1322 = vxor.u32 %v1274, 2147483648
        %v1323 = vxor.u32 %v1277, 2147483648
        %v1324 = vxor.u32 %v1282, 2147483648
        %v1325 = vxor.u32 %v1285, 2147483648
        %v1326 = vxor.u32 %v1290, 2147483648
        %v1327 = vxor.u32 %v1293, 2147483648
        %v1328 = vmul.f32 %v1296, 1.442695
        %v1329 = vpow.pop %v1328
        %v1330 = vmul.f32 %v1297, 1.442695
        %v1331 = vpow.pop %v1330
        %v1332 = vmul.f32 %v1298, 1.442695
        %v1333 = vpow.pop %v1332
        %v1334 = vmul.f32 %v1299, 1.442695
        %v1335 = vpow.pop %v1334
        %v1336 = vmul.f32 %v1300, 1.442695
        %v1337 = vpow.pop %v1336
        %v1338 = vmul.f32 %v1301, 1.442695
        %v1339 = vpow.pop %v1338
        %v1340 = vmul.f32 %v1302, 1.442695
        %v1341 = vpow.pop %v1340
        %v1342 = vmul.f32 %v1303, 1.442695
        %v1343 = vpow.pop %v1342
        %v1344 = vmul.f32 %v1304, 1.442695
        %v1345 = vpow.pop %v1344
        %v1346 = vmul.f32 %v1305, 1.442695
        %v1347 = vpow.pop %v1346
        %v1348 = vmul.f32 %v1306, 1.442695
        %v1349 = vpow.pop %v1348
        %v1350 = vmul.f32 %v1307, 1.442695
        %v1351 = vpow.pop %v1350
        %v1352 = vmul.f32 %v1308, 1.442695
        %v1353 = vpow.pop %v1352
        %v1354 = vmul.f32 %v1309, 1.442695
        %v1355 = vpow.pop %v1354
        %v1356 = vmul.f32 %v1310, 1.442695
        %v1357 = vpow.pop %v1356
        %v1358 = vmul.f32 %v1311, 1.442695
        %v1359 = vpow.pop %v1358
        %v1360 = vmul.f32 %v1312, 1.442695
        %v1361 = vpow.pop %v1360
        %v1362 = vmul.f32 %v1313, 1.442695
        %v1363 = vpow.pop %v1362
        %v1364 = vmul.f32 %v1314, 1.442695
        %v1365 = vpow.pop %v1364
        %v1366 = vmul.f32 %v1315, 1.442695
        %v1367 = vpow.pop %v1366
        %v1368 = vmul.f32 %v1316, 1.442695
        %v1369 = vpow.pop %v1368
        %v1370 = vmul.f32 %v1317, 1.442695
        %v1371 = vpow.pop %v1370
        %v1372 = vmul.f32 %v1318, 1.442695
        %v1373 = vpow.pop %v1372
        %v1374 = vmul.f32 %v1319, 1.442695
        %v1375 = vpow.pop %v1374
        %v1376 = vmul.f32 %v1320, 1.442695
        %v1377 = vpow.pop %v1376
        %v1378 = vmul.f32 %v1321, 1.442695
        %v1379 = vpow.pop %v1378
        %v1380 = vmul.f32 %v1322, 1.442695
        %v1381 = vpow.pop %v1380
        %v1382 = vmul.f32 %v1323, 1.442695
        %v1383 = vpow.pop %v1382
        %v1384 = vmul.f32 %v1324, 1.442695
        %v1385 = vpow.pop %v1384
        %v1386 = vmul.f32 %v1325, 1.442695
        %v1387 = vpow.pop %v1386
        %v1388 = vmul.f32 %v1326, 1.442695
        %v1389 = vpow.pop %v1388
        %v1390 = vmul.f32 %v1327, 1.442695
        %v1391 = vpow.pop %v1390
        %v1392 = vadd.f32 %v1329, 1.0
        %v1393 = vadd.f32 %v1331, 1.0
        %v1394 = vadd.f32 %v1333, 1.0
        %v1395 = vadd.f32 %v1335, 1.0
        %v1396 = vadd.f32 %v1337, 1.0
        %v1397 = vadd.f32 %v1339, 1.0
        %v1398 = vadd.f32 %v1341, 1.0
        %v1399 = vadd.f32 %v1343, 1.0
        %v1400 = vadd.f32 %v1345, 1.0
        %v1401 = vadd.f32 %v1347, 1.0
        %v1402 = vadd.f32 %v1349, 1.0
        %v1403 = vadd.f32 %v1351, 1.0
        %v1404 = vadd.f32 %v1353, 1.0
        %v1405 = vadd.f32 %v1355, 1.0
        %v1406 = vadd.f32 %v1357, 1.0
        %v1407 = vadd.f32 %v1359, 1.0
        %v1408 = vadd.f32 %v1361, 1.0
        %v1409 = vadd.f32 %v1363, 1.0
        %v1410 = vadd.f32 %v1365, 1.0
        %v1411 = vadd.f32 %v1367, 1.0
        %v1412 = vadd.f32 %v1369, 1.0
        %v1413 = vadd.f32 %v1371, 1.0
        %v1414 = vadd.f32 %v1373, 1.0
        %v1415 = vadd.f32 %v1375, 1.0
        %v1416 = vadd.f32 %v1377, 1.0
        %v1417 = vadd.f32 %v1379, 1.0
        %v1418 = vadd.f32 %v1381, 1.0
        %v1419 = vadd.f32 %v1383, 1.0
        %v1420 = vadd.f32 %v1385, 1.0
        %v1421 = vadd.f32 %v1387, 1.0
        %v1422 = vadd.f32 %v1389, 1.0
        %v1423 = vadd.f32 %v1391, 1.0
        %v1424 = vrcp.pop %v1392
        %v1425 = vmul.f32 1.0, %v1424
        %v1426 = vrcp.pop %v1393
        %v1427 = vmul.f32 1.0, %v1426
        %v1428 = vrcp.pop %v1394
        %v1429 = vmul.f32 1.0, %v1428
        %v1430 = vrcp.pop %v1395
        %v1431 = vmul.f32 1.0, %v1430
        %v1432 = vrcp.pop %v1396
        %v1433 = vmul.f32 1.0, %v1432
        %v1434 = vrcp.pop %v1397
        %v1435 = vmul.f32 1.0, %v1434
        %v1436 = vrcp.pop %v1398
        %v1437 = vmul.f32 1.0, %v1436
        %v1438 = vrcp.pop %v1399
        %v1439 = vmul.f32 1.0, %v1438
        %v1440 = vrcp.pop %v1400
        %v1441 = vmul.f32 1.0, %v1440
        %v1442 = vrcp.pop %v1401
        %v1443 = vmul.f32 1.0, %v1442
        %v1444 = vrcp.pop %v1402
        %v1445 = vmul.f32 1.0, %v1444
        %v1446 = vrcp.pop %v1403
        %v1447 = vmul.f32 1.0, %v1446
        %v1448 = vrcp.pop %v1404
        %v1449 = vmul.f32 1.0, %v1448
        %v1450 = vrcp.pop %v1405
        %v1451 = vmul.f32 1.0, %v1450
        %v1452 = vrcp.pop %v1406
        %v1453 = vmul.f32 1.0, %v1452
        %v1454 = vrcp.pop %v1407
        %v1455 = vmul.f32 1.0, %v1454
        %v1456 = vrcp.pop %v1408
        %v1457 = vmul.f32 1.0, %v1456
        %v1458 = vrcp.pop %v1409
        %v1459 = vmul.f32 1.0, %v1458
        %v1460 = vrcp.pop %v1410
        %v1461 = vmul.f32 1.0, %v1460
        %v1462 = vrcp.pop %v1411
        %v1463 = vmul.f32 1.0, %v1462
        %v1464 = vrcp.pop %v1412
        %v1465 = vmul.f32 1.0, %v1464
        %v1466 = vrcp.pop %v1413
        %v1467 = vmul.f32 1.0, %v1466
        %v1468 = vrcp.pop %v1414
        %v1469 = vmul.f32 1.0, %v1468
        %v1470 = vrcp.pop %v1415
        %v1471 = vmul.f32 1.0, %v1470
        %v1472 = vrcp.pop %v1416
        %v1473 = vmul.f32 1.0, %v1472
        %v1474 = vrcp.pop %v1417
        %v1475 = vmul.f32 1.0, %v1474
        %v1476 = vrcp.pop %v1418
        %v1477 = vmul.f32 1.0, %v1476
        %v1478 = vrcp.pop %v1419
        %v1479 = vmul.f32 1.0, %v1478
        %v1480 = vrcp.pop %v1420
        %v1481 = vmul.f32 1.0, %v1480
        %v1482 = vrcp.pop %v1421
        %v1483 = vmul.f32 1.0, %v1482
        %v1484 = vrcp.pop %v1422
        %v1485 = vmul.f32 1.0, %v1484
        %v1486 = vrcp.pop %v1423
        %v1487 = vmul.f32 1.0, %v1486
        %v1488 = vpack.c.bf16 %v1427, %v1425
        %v1489 = vpack.c.bf16 %v1431, %v1429
        %v1490 = vpack.c.bf16 %v1435, %v1433
        %v1491 = vpack.c.bf16 %v1439, %v1437
        %v1492 = vpack.c.bf16 %v1443, %v1441
        %v1493 = vpack.c.bf16 %v1447, %v1445
        %v1494 = vpack.c.bf16 %v1451, %v1449
        %v1495 = vpack.c.bf16 %v1455, %v1453
        %v1496 = vpack.c.bf16 %v1459, %v1457
        %v1497 = vpack.c.bf16 %v1463, %v1461
        %v1498 = vpack.c.bf16 %v1467, %v1465
        %v1499 = vpack.c.bf16 %v1471, %v1469
        %v1500 = vpack.c.bf16 %v1475, %v1473
        %v1501 = vpack.c.bf16 %v1479, %v1477
        %v1502 = vpack.c.bf16 %v1483, %v1481
        %v1503 = vpack.c.bf16 %v1487, %v1485
        %v1504 = vld [vmem:[%s5] sm:$0xf]
        %v1505 = vld [vmem:[%s5 + $0x4] sm:$0xf]
        %v1506 = vld [vmem:[%s5 + $0x8] sm:$0xf]
        %v1507 = vld [vmem:[%s5 + $0xc] sm:$0xf]
        %v1508 = vld [vmem:[%s5 + $0x10] sm:$0xf]
        %v1509 = vld [vmem:[%s5 + $0x14] sm:$0xf]
        %v1510 = vld [vmem:[%s5 + $0x18] sm:$0xf]
        %v1511 = vld [vmem:[%s5 + $0x1c] sm:$0xf]
        %v1512 = vld [vmem:[%s5 + $0x20] sm:$0xf]
        %v1513 = vld [vmem:[%s5 + $0x24] sm:$0xf]
        %v1514 = vld [vmem:[%s5 + $0x28] sm:$0xf]
        %v1515 = vld [vmem:[%s5 + $0x2c] sm:$0xf]
        %v1516 = vld [vmem:[%s5 + $0x30] sm:$0xf]
        %v1517 = vld [vmem:[%s5 + $0x34] sm:$0xf]
        %v1518 = vld [vmem:[%s5 + $0x38] sm:$0xf]
        %v1519 = vld [vmem:[%s5 + $0x3c] sm:$0xf]
        %v1520 = vld [vmem:[%s6] sm:$0x1]
        %v1522 = vlaneseq
        %v1523 = vshrl.u32 %v1522, 7
        %v1524 = vsub.s32 0, %v1523
        %v1525 = vrot.slane %v1520, %v1524
        %v1543 = vunpack.c.l.b16 %v1504
        %v1544 = vunpack.c.l.b16 %v1505
        %v1545 = vunpack.c.l.b16 %v1506
        %v1546 = vunpack.c.l.b16 %v1507
        %v1547 = vunpack.c.l.b16 %v1508
        %v1548 = vunpack.c.l.b16 %v1509
        %v1549 = vunpack.c.l.b16 %v1510
        %v1550 = vunpack.c.l.b16 %v1511
        %v1551 = vunpack.c.l.b16 %v1512
        %v1552 = vunpack.c.l.b16 %v1513
        %v1553 = vunpack.c.l.b16 %v1514
        %v1554 = vunpack.c.l.b16 %v1515
        %v1555 = vunpack.c.l.b16 %v1516
        %v1556 = vunpack.c.l.b16 %v1517
        %v1557 = vunpack.c.l.b16 %v1518
        %v1558 = vunpack.c.l.b16 %v1519
        %v1559 = vpack.c.b16 %v1544, %v1543
        %v1560 = vpack.c.b16 %v1546, %v1545
        %v1561 = vpack.c.b16 %v1548, %v1547
        %v1562 = vpack.c.b16 %v1550, %v1549
        %v1563 = vpack.c.b16 %v1552, %v1551
        %v1564 = vpack.c.b16 %v1554, %v1553
        %v1565 = vpack.c.b16 %v1556, %v1555
        %v1566 = vpack.c.b16 %v1558, %v1557
        %1575 = vmatprep.subr.bf16.mxu0 0
        %1576 = vmatpush1.bf16.msra.mxu0 %v1566
        %1577 = vmatprep.subr.bf16.mxu0 0
        %1578 = vmatpush1.bf16.msra.mxu0 %v1565
        %1579 = vmatprep.subr.bf16.mxu0 0
        %1580 = vmatpush1.bf16.msra.mxu0 %v1564
        %1581 = vmatprep.subr.bf16.mxu0 0
        %1582 = vmatpush1.bf16.msra.mxu0 %v1563
        %1583 = vmatprep.subr.bf16.mxu0 0
        %1584 = vmatpush1.bf16.msra.mxu0 %v1562
        %1585 = vmatprep.subr.bf16.mxu0 0
        %1586 = vmatpush1.bf16.msra.mxu0 %v1561
        %1587 = vmatprep.subr.bf16.mxu0 0
        %1588 = vmatpush1.bf16.msra.mxu0 %v1560
        %1589 = vmatprep.subr.bf16.mxu0 0
        %1590 = vmatpush1.bf16.msra.mxu0 %v1559
        %1591 = vmatprep.subr.bf16.mxu0 0
        %1592 = vmatpush2.bf16.msra.mxu0 0
        %1593 = vmatprep.subr.bf16.mxu0 0
        %1594 = vmatpush2.bf16.msra.mxu0 0
        %1595 = vmatprep.subr.bf16.mxu0 0
        %1596 = vmatpush2.bf16.msra.mxu0 0
        %1597 = vmatprep.subr.bf16.mxu0 0
        %1598 = vmatpush2.bf16.msra.mxu0 0
        %1599 = vmatprep.subr.bf16.mxu0 0
        %1600 = vmatpush2.bf16.msra.mxu0 0
        %1601 = vmatprep.subr.bf16.mxu0 0
        %1602 = vmatpush2.bf16.msra.mxu0 0
        %1603 = vmatprep.subr.bf16.mxu0 0
        %1604 = vmatpush2.bf16.msra.mxu0 0
        %1605 = vmatprep.subr.bf16.mxu0 0
        %1606 = vmatpush2.bf16.msra.mxu0 0
        %1607 = vmatprep.mubr.bf16.mxu0 0
        %1608 = vmatmul.mubr.bf16.gmra.mxu0 %v1488
        %v1609 = vpop.f32.mrf.mxu0
        %v1610 = vadd.f32 %v1525, %v1609
        %v1611 = vpop.f32.mrf.mxu0
        %v1612 = vpop.f32.mrf.mxu0
        %v1613 = vadd.f32 %v1525, %v1612
        %v1614 = vpop.f32.mrf.mxu0
        %1615 = vmatprep.mubr.bf16.mxu0 0
        %1616 = vmatmul.mubr.bf16.gmra.mxu0 %v1489
        %v1617 = vpop.f32.mrf.mxu0
        %v1618 = vadd.f32 %v1525, %v1617
        %v1619 = vpop.f32.mrf.mxu0
        %v1620 = vpop.f32.mrf.mxu0
        %v1621 = vadd.f32 %v1525, %v1620
        %v1622 = vpop.f32.mrf.mxu0
        %1623 = vmatprep.mubr.bf16.mxu0 0
        %1624 = vmatmul.mubr.bf16.gmra.mxu0 %v1490
        %v1625 = vpop.f32.mrf.mxu0
        %v1626 = vadd.f32 %v1525, %v1625
        %v1627 = vpop.f32.mrf.mxu0
        %v1628 = vpop.f32.mrf.mxu0
        %v1629 = vadd.f32 %v1525, %v1628
        %v1630 = vpop.f32.mrf.mxu0
        %1631 = vmatprep.mubr.bf16.mxu0 0
        %1632 = vmatmul.mubr.bf16.gmra.mxu0 %v1491
        %v1633 = vpop.f32.mrf.mxu0
        %v1634 = vadd.f32 %v1525, %v1633
        %v1635 = vpop.f32.mrf.mxu0
        %v1636 = vpop.f32.mrf.mxu0
        %v1637 = vadd.f32 %v1525, %v1636
        %v1638 = vpop.f32.mrf.mxu0
        %1639 = vmatprep.mubr.bf16.mxu0 0
        %1640 = vmatmul.mubr.bf16.gmra.mxu0 %v1492
        %v1641 = vpop.f32.mrf.mxu0
        %v1642 = vadd.f32 %v1525, %v1641
        %v1643 = vpop.f32.mrf.mxu0
        %v1644 = vpop.f32.mrf.mxu0
        %v1645 = vadd.f32 %v1525, %v1644
        %v1646 = vpop.f32.mrf.mxu0
        %1647 = vmatprep.mubr.bf16.mxu0 0
        %1648 = vmatmul.mubr.bf16.gmra.mxu0 %v1493
        %v1649 = vpop.f32.mrf.mxu0
        %v1650 = vadd.f32 %v1525, %v1649
        %v1651 = vpop.f32.mrf.mxu0
        %v1652 = vpop.f32.mrf.mxu0
        %v1653 = vadd.f32 %v1525, %v1652
        %v1654 = vpop.f32.mrf.mxu0
        %1655 = vmatprep.mubr.bf16.mxu0 0
        %1656 = vmatmul.mubr.bf16.gmra.mxu0 %v1494
        %v1657 = vpop.f32.mrf.mxu0
        %v1658 = vadd.f32 %v1525, %v1657
        %v1659 = vpop.f32.mrf.mxu0
        %v1660 = vpop.f32.mrf.mxu0
        %v1661 = vadd.f32 %v1525, %v1660
        %v1662 = vpop.f32.mrf.mxu0
        %1663 = vmatprep.mubr.bf16.mxu0 0
        %1664 = vmatmul.mubr.bf16.gmra.mxu0 %v1495
        %v1665 = vpop.f32.mrf.mxu0
        %v1666 = vadd.f32 %v1525, %v1665
        %v1667 = vpop.f32.mrf.mxu0
        %v1668 = vpop.f32.mrf.mxu0
        %v1669 = vadd.f32 %v1525, %v1668
        %v1670 = vpop.f32.mrf.mxu0
        %1671 = vmatprep.mubr.bf16.mxu0 0
        %1672 = vmatmul.mubr.bf16.gmra.mxu0 %v1496
        %v1673 = vpop.f32.mrf.mxu0
        %v1674 = vadd.f32 %v1525, %v1673
        %v1675 = vpop.f32.mrf.mxu0
        %v1676 = vpop.f32.mrf.mxu0
        %v1677 = vadd.f32 %v1525, %v1676
        %v1678 = vpop.f32.mrf.mxu0
        %1679 = vmatprep.mubr.bf16.mxu0 0
        %1680 = vmatmul.mubr.bf16.gmra.mxu0 %v1497
        %v1681 = vpop.f32.mrf.mxu0
        %v1682 = vadd.f32 %v1525, %v1681
        %v1683 = vpop.f32.mrf.mxu0
        %v1684 = vpop.f32.mrf.mxu0
        %v1685 = vadd.f32 %v1525, %v1684
        %v1686 = vpop.f32.mrf.mxu0
        %1687 = vmatprep.mubr.bf16.mxu0 0
        %1688 = vmatmul.mubr.bf16.gmra.mxu0 %v1498
        %v1689 = vpop.f32.mrf.mxu0
        %v1690 = vadd.f32 %v1525, %v1689
        %v1691 = vpop.f32.mrf.mxu0
        %v1692 = vpop.f32.mrf.mxu0
        %v1693 = vadd.f32 %v1525, %v1692
        %v1694 = vpop.f32.mrf.mxu0
        %1695 = vmatprep.mubr.bf16.mxu0 0
        %1696 = vmatmul.mubr.bf16.gmra.mxu0 %v1499
        %v1697 = vpop.f32.mrf.mxu0
        %v1698 = vadd.f32 %v1525, %v1697
        %v1699 = vpop.f32.mrf.mxu0
        %v1700 = vpop.f32.mrf.mxu0
        %v1701 = vadd.f32 %v1525, %v1700
        %v1702 = vpop.f32.mrf.mxu0
        %1703 = vmatprep.mubr.bf16.mxu0 0
        %1704 = vmatmul.mubr.bf16.gmra.mxu0 %v1500
        %v1705 = vpop.f32.mrf.mxu0
        %v1706 = vadd.f32 %v1525, %v1705
        %v1707 = vpop.f32.mrf.mxu0
        %v1708 = vpop.f32.mrf.mxu0
        %v1709 = vadd.f32 %v1525, %v1708
        %v1710 = vpop.f32.mrf.mxu0
        %1711 = vmatprep.mubr.bf16.mxu0 0
        %1712 = vmatmul.mubr.bf16.gmra.mxu0 %v1501
        %v1713 = vpop.f32.mrf.mxu0
        %v1714 = vadd.f32 %v1525, %v1713
        %v1715 = vpop.f32.mrf.mxu0
        %v1716 = vpop.f32.mrf.mxu0
        %v1717 = vadd.f32 %v1525, %v1716
        %v1718 = vpop.f32.mrf.mxu0
        %1719 = vmatprep.mubr.bf16.mxu0 0
        %1720 = vmatmul.mubr.bf16.gmra.mxu0 %v1502
        %v1721 = vpop.f32.mrf.mxu0
        %v1722 = vadd.f32 %v1525, %v1721
        %v1723 = vpop.f32.mrf.mxu0
        %v1724 = vpop.f32.mrf.mxu0
        %v1725 = vadd.f32 %v1525, %v1724
        %v1726 = vpop.f32.mrf.mxu0
        %1727 = vmatprep.mubr.bf16.mxu0 0
        %1728 = vmatmul.mubr.bf16.gmra.mxu0 %v1503
        %v1729 = vpop.f32.mrf.mxu0
        %v1730 = vadd.f32 %v1525, %v1729
        %v1731 = vpop.f32.mrf.mxu0
        %v1732 = vpop.f32.mrf.mxu0
        %v1733 = vadd.f32 %v1525, %v1732
        %v1734 = vpop.f32.mrf.mxu0
        %1735 = vdwg.mxu0
        %v1736 = vxor.u32 %v1610, 2147483648
        %v1737 = vxor.u32 %v1613, 2147483648
        %v1738 = vxor.u32 %v1618, 2147483648
        %v1739 = vxor.u32 %v1621, 2147483648
        %v1740 = vxor.u32 %v1626, 2147483648
        %v1741 = vxor.u32 %v1629, 2147483648
        %v1742 = vxor.u32 %v1634, 2147483648
        %v1743 = vxor.u32 %v1637, 2147483648
        %v1744 = vxor.u32 %v1642, 2147483648
        %v1745 = vxor.u32 %v1645, 2147483648
        %v1746 = vxor.u32 %v1650, 2147483648
        %v1747 = vxor.u32 %v1653, 2147483648
        %v1748 = vxor.u32 %v1658, 2147483648
        %v1749 = vxor.u32 %v1661, 2147483648
        %v1750 = vxor.u32 %v1666, 2147483648
        %v1751 = vxor.u32 %v1669, 2147483648
        %v1752 = vxor.u32 %v1674, 2147483648
        %v1753 = vxor.u32 %v1677, 2147483648
        %v1754 = vxor.u32 %v1682, 2147483648
        %v1755 = vxor.u32 %v1685, 2147483648
        %v1756 = vxor.u32 %v1690, 2147483648
        %v1757 = vxor.u32 %v1693, 2147483648
        %v1758 = vxor.u32 %v1698, 2147483648
        %v1759 = vxor.u32 %v1701, 2147483648
        %v1760 = vxor.u32 %v1706, 2147483648
        %v1761 = vxor.u32 %v1709, 2147483648
        %v1762 = vxor.u32 %v1714, 2147483648
        %v1763 = vxor.u32 %v1717, 2147483648
        %v1764 = vxor.u32 %v1722, 2147483648
        %v1765 = vxor.u32 %v1725, 2147483648
        %v1766 = vxor.u32 %v1730, 2147483648
        %v1767 = vxor.u32 %v1733, 2147483648
        %v1768 = vmul.f32 %v1736, 1.442695
        %v1769 = vpow.pop %v1768
        %v1770 = vmul.f32 %v1737, 1.442695
        %v1771 = vpow.pop %v1770
        %v1772 = vmul.f32 %v1738, 1.442695
        %v1773 = vpow.pop %v1772
        %v1774 = vmul.f32 %v1739, 1.442695
        %v1775 = vpow.pop %v1774
        %v1776 = vmul.f32 %v1740, 1.442695
        %v1777 = vpow.pop %v1776
        %v1778 = vmul.f32 %v1741, 1.442695
        %v1779 = vpow.pop %v1778
        %v1780 = vmul.f32 %v1742, 1.442695
        %v1781 = vpow.pop %v1780
        %v1782 = vmul.f32 %v1743, 1.442695
        %v1783 = vpow.pop %v1782
        %v1784 = vmul.f32 %v1744, 1.442695
        %v1785 = vpow.pop %v1784
        %v1786 = vmul.f32 %v1745, 1.442695
        %v1787 = vpow.pop %v1786
        %v1788 = vmul.f32 %v1746, 1.442695
        %v1789 = vpow.pop %v1788
        %v1790 = vmul.f32 %v1747, 1.442695
        %v1791 = vpow.pop %v1790
        %v1792 = vmul.f32 %v1748, 1.442695
        %v1793 = vpow.pop %v1792
        %v1794 = vmul.f32 %v1749, 1.442695
        %v1795 = vpow.pop %v1794
        %v1796 = vmul.f32 %v1750, 1.442695
        %v1797 = vpow.pop %v1796
        %v1798 = vmul.f32 %v1751, 1.442695
        %v1799 = vpow.pop %v1798
        %v1800 = vmul.f32 %v1752, 1.442695
        %v1801 = vpow.pop %v1800
        %v1802 = vmul.f32 %v1753, 1.442695
        %v1803 = vpow.pop %v1802
        %v1804 = vmul.f32 %v1754, 1.442695
        %v1805 = vpow.pop %v1804
        %v1806 = vmul.f32 %v1755, 1.442695
        %v1807 = vpow.pop %v1806
        %v1808 = vmul.f32 %v1756, 1.442695
        %v1809 = vpow.pop %v1808
        %v1810 = vmul.f32 %v1757, 1.442695
        %v1811 = vpow.pop %v1810
        %v1812 = vmul.f32 %v1758, 1.442695
        %v1813 = vpow.pop %v1812
        %v1814 = vmul.f32 %v1759, 1.442695
        %v1815 = vpow.pop %v1814
        %v1816 = vmul.f32 %v1760, 1.442695
        %v1817 = vpow.pop %v1816
        %v1818 = vmul.f32 %v1761, 1.442695
        %v1819 = vpow.pop %v1818
        %v1820 = vmul.f32 %v1762, 1.442695
        %v1821 = vpow.pop %v1820
        %v1822 = vmul.f32 %v1763, 1.442695
        %v1823 = vpow.pop %v1822
        %v1824 = vmul.f32 %v1764, 1.442695
        %v1825 = vpow.pop %v1824
        %v1826 = vmul.f32 %v1765, 1.442695
        %v1827 = vpow.pop %v1826
        %v1828 = vmul.f32 %v1766, 1.442695
        %v1829 = vpow.pop %v1828
        %v1830 = vmul.f32 %v1767, 1.442695
        %v1831 = vpow.pop %v1830
        %v1832 = vadd.f32 %v1769, 1.0
        %v1833 = vadd.f32 %v1771, 1.0
        %v1834 = vadd.f32 %v1773, 1.0
        %v1835 = vadd.f32 %v1775, 1.0
        %v1836 = vadd.f32 %v1777, 1.0
        %v1837 = vadd.f32 %v1779, 1.0
        %v1838 = vadd.f32 %v1781, 1.0
        %v1839 = vadd.f32 %v1783, 1.0
        %v1840 = vadd.f32 %v1785, 1.0
        %v1841 = vadd.f32 %v1787, 1.0
        %v1842 = vadd.f32 %v1789, 1.0
        %v1843 = vadd.f32 %v1791, 1.0
        %v1844 = vadd.f32 %v1793, 1.0
        %v1845 = vadd.f32 %v1795, 1.0
        %v1846 = vadd.f32 %v1797, 1.0
        %v1847 = vadd.f32 %v1799, 1.0
        %v1848 = vadd.f32 %v1801, 1.0
        %v1849 = vadd.f32 %v1803, 1.0
        %v1850 = vadd.f32 %v1805, 1.0
        %v1851 = vadd.f32 %v1807, 1.0
        %v1852 = vadd.f32 %v1809, 1.0
        %v1853 = vadd.f32 %v1811, 1.0
        %v1854 = vadd.f32 %v1813, 1.0
        %v1855 = vadd.f32 %v1815, 1.0
        %v1856 = vadd.f32 %v1817, 1.0
        %v1857 = vadd.f32 %v1819, 1.0
        %v1858 = vadd.f32 %v1821, 1.0
        %v1859 = vadd.f32 %v1823, 1.0
        %v1860 = vadd.f32 %v1825, 1.0
        %v1861 = vadd.f32 %v1827, 1.0
        %v1862 = vadd.f32 %v1829, 1.0
        %v1863 = vadd.f32 %v1831, 1.0
        %v1864 = vrcp.pop %v1832
        %v1865 = vmul.f32 1.0, %v1864
        %v1866 = vrcp.pop %v1833
        %v1867 = vmul.f32 1.0, %v1866
        %v1868 = vrcp.pop %v1834
        %v1869 = vmul.f32 1.0, %v1868
        %v1870 = vrcp.pop %v1835
        %v1871 = vmul.f32 1.0, %v1870
        %v1872 = vrcp.pop %v1836
        %v1873 = vmul.f32 1.0, %v1872
        %v1874 = vrcp.pop %v1837
        %v1875 = vmul.f32 1.0, %v1874
        %v1876 = vrcp.pop %v1838
        %v1877 = vmul.f32 1.0, %v1876
        %v1878 = vrcp.pop %v1839
        %v1879 = vmul.f32 1.0, %v1878
        %v1880 = vrcp.pop %v1840
        %v1881 = vmul.f32 1.0, %v1880
        %v1882 = vrcp.pop %v1841
        %v1883 = vmul.f32 1.0, %v1882
        %v1884 = vrcp.pop %v1842
        %v1885 = vmul.f32 1.0, %v1884
        %v1886 = vrcp.pop %v1843
        %v1887 = vmul.f32 1.0, %v1886
        %v1888 = vrcp.pop %v1844
        %v1889 = vmul.f32 1.0, %v1888
        %v1890 = vrcp.pop %v1845
        %v1891 = vmul.f32 1.0, %v1890
        %v1892 = vrcp.pop %v1846
        %v1893 = vmul.f32 1.0, %v1892
        %v1894 = vrcp.pop %v1847
        %v1895 = vmul.f32 1.0, %v1894
        %v1896 = vrcp.pop %v1848
        %v1897 = vmul.f32 1.0, %v1896
        %v1898 = vrcp.pop %v1849
        %v1899 = vmul.f32 1.0, %v1898
        %v1900 = vrcp.pop %v1850
        %v1901 = vmul.f32 1.0, %v1900
        %v1902 = vrcp.pop %v1851
        %v1903 = vmul.f32 1.0, %v1902
        %v1904 = vrcp.pop %v1852
        %v1905 = vmul.f32 1.0, %v1904
        %v1906 = vrcp.pop %v1853
        %v1907 = vmul.f32 1.0, %v1906
        %v1908 = vrcp.pop %v1854
        %v1909 = vmul.f32 1.0, %v1908
        %v1910 = vrcp.pop %v1855
        %v1911 = vmul.f32 1.0, %v1910
        %v1912 = vrcp.pop %v1856
        %v1913 = vmul.f32 1.0, %v1912
        %v1914 = vrcp.pop %v1857
        %v1915 = vmul.f32 1.0, %v1914
        %v1916 = vrcp.pop %v1858
        %v1917 = vmul.f32 1.0, %v1916
        %v1918 = vrcp.pop %v1859
        %v1919 = vmul.f32 1.0, %v1918
        %v1920 = vrcp.pop %v1860
        %v1921 = vmul.f32 1.0, %v1920
        %v1922 = vrcp.pop %v1861
        %v1923 = vmul.f32 1.0, %v1922
        %v1924 = vrcp.pop %v1862
        %v1925 = vmul.f32 1.0, %v1924
        %v1926 = vrcp.pop %v1863
        %v1927 = vmul.f32 1.0, %v1926
        %v1928 = vpack.c.bf16 %v1867, %v1865
        %v1929 = vpack.c.bf16 %v1871, %v1869
        %v1930 = vpack.c.bf16 %v1875, %v1873
        %v1931 = vpack.c.bf16 %v1879, %v1877
        %v1932 = vpack.c.bf16 %v1883, %v1881
        %v1933 = vpack.c.bf16 %v1887, %v1885
        %v1934 = vpack.c.bf16 %v1891, %v1889
        %v1935 = vpack.c.bf16 %v1895, %v1893
        %v1936 = vpack.c.bf16 %v1899, %v1897
        %v1937 = vpack.c.bf16 %v1903, %v1901
        %v1938 = vpack.c.bf16 %v1907, %v1905
        %v1939 = vpack.c.bf16 %v1911, %v1909
        %v1940 = vpack.c.bf16 %v1915, %v1913
        %v1941 = vpack.c.bf16 %v1919, %v1917
        %v1942 = vpack.c.bf16 %v1923, %v1921
        %v1943 = vpack.c.bf16 %v1927, %v1925
        %v1944 = vld [vmem:[%s7] sm:$0xff]
        %v1945 = vld [vmem:[%s7 + $0x8] sm:$0xff]
        %v1946 = vld [vmem:[%s7 + $0x10] sm:$0xff]
        %v1947 = vld [vmem:[%s7 + $0x18] sm:$0xff]
        %v1948 = vld [vmem:[%s7 + $0x20] sm:$0xff]
        %v1949 = vld [vmem:[%s7 + $0x28] sm:$0xff]
        %v1950 = vld [vmem:[%s7 + $0x30] sm:$0xff]
        %v1951 = vld [vmem:[%s7 + $0x38] sm:$0xff]
        %v1952 = vld [vmem:[%s7 + $0x40] sm:$0xff]
        %v1953 = vld [vmem:[%s7 + $0x48] sm:$0xff]
        %v1954 = vld [vmem:[%s7 + $0x50] sm:$0xff]
        %v1955 = vld [vmem:[%s7 + $0x58] sm:$0xff]
        %v1956 = vld [vmem:[%s7 + $0x60] sm:$0xff]
        %v1957 = vld [vmem:[%s7 + $0x68] sm:$0xff]
        %v1958 = vld [vmem:[%s7 + $0x70] sm:$0xff]
        %v1959 = vld [vmem:[%s7 + $0x78] sm:$0xff]
        %v1960 = vld [vmem:[%s8] sm:$0x3]
        %v1962 = vlaneseq
        %v1963 = vshrl.u32 %v1962, 7
        %v1964 = vsub.s32 0, %v1963
        %v1965 = vrot.slane %v1960, %v1964
        %v1966 = vlaneseq
        %v1967 = vshrl.u32 %v1966, 7
        %v1968 = vsub.s32 1, %v1967
        %v1969 = vrot.slane %v1960, %v1968
        %v1988 = vunpack.c.l.b16 %v1944
        %v1989 = vunpack.c.h.b16 %v1944
        %v1990 = vunpack.c.l.b16 %v1945
        %v1991 = vunpack.c.h.b16 %v1945
        %v1992 = vunpack.c.l.b16 %v1946
        %v1993 = vunpack.c.h.b16 %v1946
        %v1994 = vunpack.c.l.b16 %v1947
        %v1995 = vunpack.c.h.b16 %v1947
        %v1996 = vunpack.c.l.b16 %v1948
        %v1997 = vunpack.c.h.b16 %v1948
        %v1998 = vunpack.c.l.b16 %v1949
        %v1999 = vunpack.c.h.b16 %v1949
        %v2000 = vunpack.c.l.b16 %v1950
        %v2001 = vunpack.c.h.b16 %v1950
        %v2002 = vunpack.c.l.b16 %v1951
        %v2003 = vunpack.c.h.b16 %v1951
        %v2004 = vunpack.c.l.b16 %v1952
        %v2005 = vunpack.c.h.b16 %v1952
        %v2006 = vunpack.c.l.b16 %v1953
        %v2007 = vunpack.c.h.b16 %v1953
        %v2008 = vunpack.c.l.b16 %v1954
        %v2009 = vunpack.c.h.b16 %v1954
        %v2010 = vunpack.c.l.b16 %v1955
        %v2011 = vunpack.c.h.b16 %v1955
        %v2012 = vunpack.c.l.b16 %v1956
        %v2013 = vunpack.c.h.b16 %v1956
        %v2014 = vunpack.c.l.b16 %v1957
        %v2015 = vunpack.c.h.b16 %v1957
        %v2016 = vunpack.c.l.b16 %v1958
        %v2017 = vunpack.c.h.b16 %v1958
        %v2018 = vunpack.c.l.b16 %v1959
        %v2019 = vunpack.c.h.b16 %v1959
        %v2020 = vpack.c.b16 %v1990, %v1988
        %v2021 = vpack.c.b16 %v1991, %v1989
        %v2022 = vpack.c.b16 %v1994, %v1992
        %v2023 = vpack.c.b16 %v1995, %v1993
        %v2024 = vpack.c.b16 %v1998, %v1996
        %v2025 = vpack.c.b16 %v1999, %v1997
        %v2026 = vpack.c.b16 %v2002, %v2000
        %v2027 = vpack.c.b16 %v2003, %v2001
        %v2028 = vpack.c.b16 %v2006, %v2004
        %v2029 = vpack.c.b16 %v2007, %v2005
        %v2030 = vpack.c.b16 %v2010, %v2008
        %v2031 = vpack.c.b16 %v2011, %v2009
        %v2032 = vpack.c.b16 %v2014, %v2012
        %v2033 = vpack.c.b16 %v2015, %v2013
        %v2034 = vpack.c.b16 %v2018, %v2016
        %v2035 = vpack.c.b16 %v2019, %v2017
        %2052 = vmatprep.subr.bf16.mxu0 %v2035
        %2053 = vmatpush1.bf16.msra.mxu0 %v2034
        %2054 = vmatprep.subr.bf16.mxu0 %v2033
        %2055 = vmatpush1.bf16.msra.mxu0 %v2032
        %2056 = vmatprep.subr.bf16.mxu0 %v2031
        %2057 = vmatpush1.bf16.msra.mxu0 %v2030
        %2058 = vmatprep.subr.bf16.mxu0 %v2029
        %2059 = vmatpush1.bf16.msra.mxu0 %v2028
        %2060 = vmatprep.subr.bf16.mxu0 %v2027
        %2061 = vmatpush1.bf16.msra.mxu0 %v2026
        %2062 = vmatprep.subr.bf16.mxu0 %v2025
        %2063 = vmatpush1.bf16.msra.mxu0 %v2024
        %2064 = vmatprep.subr.bf16.mxu0 %v2023
        %2065 = vmatpush1.bf16.msra.mxu0 %v2022
        %2066 = vmatprep.subr.bf16.mxu0 %v2021
        %2067 = vmatpush1.bf16.msra.mxu0 %v2020
        %2068 = vmatprep.subr.bf16.mxu0 0
        %2069 = vmatpush2.bf16.msra.mxu0 0
        %2070 = vmatprep.subr.bf16.mxu0 0
        %2071 = vmatpush2.bf16.msra.mxu0 0
        %2072 = vmatprep.subr.bf16.mxu0 0
        %2073 = vmatpush2.bf16.msra.mxu0 0
        %2074 = vmatprep.subr.bf16.mxu0 0
        %2075 = vmatpush2.bf16.msra.mxu0 0
        %2076 = vmatprep.subr.bf16.mxu0 0
        %2077 = vmatpush2.bf16.msra.mxu0 0
        %2078 = vmatprep.subr.bf16.mxu0 0
        %2079 = vmatpush2.bf16.msra.mxu0 0
        %2080 = vmatprep.subr.bf16.mxu0 0
        %2081 = vmatpush2.bf16.msra.mxu0 0
        %2082 = vmatprep.subr.bf16.mxu0 0
        %2083 = vmatpush2.bf16.msra.mxu0 0
        %2084 = vmatprep.mubr.bf16.mxu0 0
        %2085 = vmatmul.mubr.bf16.gmra.mxu0 %v1928
        %v2086 = vpop.f32.mrf.mxu0
        %v2087 = vadd.f32 %v1965, %v2086
        %v2088 = vpop.f32.mrf.mxu0
        %v2089 = vadd.f32 %v1969, %v2088
        %v2090 = vpop.f32.mrf.mxu0
        %v2091 = vadd.f32 %v1965, %v2090
        %v2092 = vpop.f32.mrf.mxu0
        %v2093 = vadd.f32 %v1969, %v2092
        %2094 = vmatprep.mubr.bf16.mxu0 0
        %2095 = vmatmul.mubr.bf16.gmra.mxu0 %v1929
        %v2096 = vpop.f32.mrf.mxu0
        %v2097 = vadd.f32 %v1965, %v2096
        %v2098 = vpop.f32.mrf.mxu0
        %v2099 = vadd.f32 %v1969, %v2098
        %v2100 = vpop.f32.mrf.mxu0
        %v2101 = vadd.f32 %v1965, %v2100
        %v2102 = vpop.f32.mrf.mxu0
        %v2103 = vadd.f32 %v1969, %v2102
        %2104 = vmatprep.mubr.bf16.mxu0 0
        %2105 = vmatmul.mubr.bf16.gmra.mxu0 %v1930
        %v2106 = vpop.f32.mrf.mxu0
        %v2107 = vadd.f32 %v1965, %v2106
        %v2108 = vpop.f32.mrf.mxu0
        %v2109 = vadd.f32 %v1969, %v2108
        %v2110 = vpop.f32.mrf.mxu0
        %v2111 = vadd.f32 %v1965, %v2110
        %v2112 = vpop.f32.mrf.mxu0
        %v2113 = vadd.f32 %v1969, %v2112
        %2114 = vmatprep.mubr.bf16.mxu0 0
        %2115 = vmatmul.mubr.bf16.gmra.mxu0 %v1931
        %v2116 = vpop.f32.mrf.mxu0
        %v2117 = vadd.f32 %v1965, %v2116
        %v2118 = vpop.f32.mrf.mxu0
        %v2119 = vadd.f32 %v1969, %v2118
        %v2120 = vpop.f32.mrf.mxu0
        %v2121 = vadd.f32 %v1965, %v2120
        %v2122 = vpop.f32.mrf.mxu0
        %v2123 = vadd.f32 %v1969, %v2122
        %2124 = vmatprep.mubr.bf16.mxu0 0
        %2125 = vmatmul.mubr.bf16.gmra.mxu0 %v1932
        %v2126 = vpop.f32.mrf.mxu0
        %v2127 = vadd.f32 %v1965, %v2126
        %v2128 = vpop.f32.mrf.mxu0
        %v2129 = vadd.f32 %v1969, %v2128
        %v2130 = vpop.f32.mrf.mxu0
        %v2131 = vadd.f32 %v1965, %v2130
        %v2132 = vpop.f32.mrf.mxu0
        %v2133 = vadd.f32 %v1969, %v2132
        %2134 = vmatprep.mubr.bf16.mxu0 0
        %2135 = vmatmul.mubr.bf16.gmra.mxu0 %v1933
        %v2136 = vpop.f32.mrf.mxu0
        %v2137 = vadd.f32 %v1965, %v2136
        %v2138 = vpop.f32.mrf.mxu0
        %v2139 = vadd.f32 %v1969, %v2138
        %v2140 = vpop.f32.mrf.mxu0
        %v2141 = vadd.f32 %v1965, %v2140
        %v2142 = vpop.f32.mrf.mxu0
        %v2143 = vadd.f32 %v1969, %v2142
        %2144 = vmatprep.mubr.bf16.mxu0 0
        %2145 = vmatmul.mubr.bf16.gmra.mxu0 %v1934
        %v2146 = vpop.f32.mrf.mxu0
        %v2147 = vadd.f32 %v1965, %v2146
        %v2148 = vpop.f32.mrf.mxu0
        %v2149 = vadd.f32 %v1969, %v2148
        %v2150 = vpop.f32.mrf.mxu0
        %v2151 = vadd.f32 %v1965, %v2150
        %v2152 = vpop.f32.mrf.mxu0
        %v2153 = vadd.f32 %v1969, %v2152
        %2154 = vmatprep.mubr.bf16.mxu0 0
        %2155 = vmatmul.mubr.bf16.gmra.mxu0 %v1935
        %v2156 = vpop.f32.mrf.mxu0
        %v2157 = vadd.f32 %v1965, %v2156
        %v2158 = vpop.f32.mrf.mxu0
        %v2159 = vadd.f32 %v1969, %v2158
        %v2160 = vpop.f32.mrf.mxu0
        %v2161 = vadd.f32 %v1965, %v2160
        %v2162 = vpop.f32.mrf.mxu0
        %v2163 = vadd.f32 %v1969, %v2162
        %2164 = vmatprep.mubr.bf16.mxu0 0
        %2165 = vmatmul.mubr.bf16.gmra.mxu0 %v1936
        %v2166 = vpop.f32.mrf.mxu0
        %v2167 = vadd.f32 %v1965, %v2166
        %v2168 = vpop.f32.mrf.mxu0
        %v2169 = vadd.f32 %v1969, %v2168
        %v2170 = vpop.f32.mrf.mxu0
        %v2171 = vadd.f32 %v1965, %v2170
        %v2172 = vpop.f32.mrf.mxu0
        %v2173 = vadd.f32 %v1969, %v2172
        %2174 = vmatprep.mubr.bf16.mxu0 0
        %2175 = vmatmul.mubr.bf16.gmra.mxu0 %v1937
        %v2176 = vpop.f32.mrf.mxu0
        %v2177 = vadd.f32 %v1965, %v2176
        %v2178 = vpop.f32.mrf.mxu0
        %v2179 = vadd.f32 %v1969, %v2178
        %v2180 = vpop.f32.mrf.mxu0
        %v2181 = vadd.f32 %v1965, %v2180
        %v2182 = vpop.f32.mrf.mxu0
        %v2183 = vadd.f32 %v1969, %v2182
        %2184 = vmatprep.mubr.bf16.mxu0 0
        %2185 = vmatmul.mubr.bf16.gmra.mxu0 %v1938
        %v2186 = vpop.f32.mrf.mxu0
        %v2187 = vadd.f32 %v1965, %v2186
        %v2188 = vpop.f32.mrf.mxu0
        %v2189 = vadd.f32 %v1969, %v2188
        %v2190 = vpop.f32.mrf.mxu0
        %v2191 = vadd.f32 %v1965, %v2190
        %v2192 = vpop.f32.mrf.mxu0
        %v2193 = vadd.f32 %v1969, %v2192
        %2194 = vmatprep.mubr.bf16.mxu0 0
        %2195 = vmatmul.mubr.bf16.gmra.mxu0 %v1939
        %v2196 = vpop.f32.mrf.mxu0
        %v2197 = vadd.f32 %v1965, %v2196
        %v2198 = vpop.f32.mrf.mxu0
        %v2199 = vadd.f32 %v1969, %v2198
        %v2200 = vpop.f32.mrf.mxu0
        %v2201 = vadd.f32 %v1965, %v2200
        %v2202 = vpop.f32.mrf.mxu0
        %v2203 = vadd.f32 %v1969, %v2202
        %2204 = vmatprep.mubr.bf16.mxu0 0
        %2205 = vmatmul.mubr.bf16.gmra.mxu0 %v1940
        %v2206 = vpop.f32.mrf.mxu0
        %v2207 = vadd.f32 %v1965, %v2206
        %v2208 = vpop.f32.mrf.mxu0
        %v2209 = vadd.f32 %v1969, %v2208
        %v2210 = vpop.f32.mrf.mxu0
        %v2211 = vadd.f32 %v1965, %v2210
        %v2212 = vpop.f32.mrf.mxu0
        %v2213 = vadd.f32 %v1969, %v2212
        %2214 = vmatprep.mubr.bf16.mxu0 0
        %2215 = vmatmul.mubr.bf16.gmra.mxu0 %v1941
        %v2216 = vpop.f32.mrf.mxu0
        %v2217 = vadd.f32 %v1965, %v2216
        %v2218 = vpop.f32.mrf.mxu0
        %v2219 = vadd.f32 %v1969, %v2218
        %v2220 = vpop.f32.mrf.mxu0
        %v2221 = vadd.f32 %v1965, %v2220
        %v2222 = vpop.f32.mrf.mxu0
        %v2223 = vadd.f32 %v1969, %v2222
        %2224 = vmatprep.mubr.bf16.mxu0 0
        %2225 = vmatmul.mubr.bf16.gmra.mxu0 %v1942
        %v2226 = vpop.f32.mrf.mxu0
        %v2227 = vadd.f32 %v1965, %v2226
        %v2228 = vpop.f32.mrf.mxu0
        %v2229 = vadd.f32 %v1969, %v2228
        %v2230 = vpop.f32.mrf.mxu0
        %v2231 = vadd.f32 %v1965, %v2230
        %v2232 = vpop.f32.mrf.mxu0
        %v2233 = vadd.f32 %v1969, %v2232
        %2234 = vmatprep.mubr.bf16.mxu0 0
        %2235 = vmatmul.mubr.bf16.gmra.mxu0 %v1943
        %v2236 = vpop.f32.mrf.mxu0
        %v2237 = vadd.f32 %v1965, %v2236
        %v2238 = vpop.f32.mrf.mxu0
        %v2239 = vadd.f32 %v1969, %v2238
        %v2240 = vpop.f32.mrf.mxu0
        %v2241 = vadd.f32 %v1965, %v2240
        %v2242 = vpop.f32.mrf.mxu0
        %v2243 = vadd.f32 %v1969, %v2242
        %2244 = vdwg.mxu0
        %2245 = vst [vmem:[%s343] sm:$0xff] %v2087
        %2246 = vst [vmem:[%s343 + $0x8] sm:$0xff] %v2089
        %2247 = vst [vmem:[%s343 + $0x10] sm:$0xff] %v2091
        %2248 = vst [vmem:[%s343 + $0x18] sm:$0xff] %v2093
        %2249 = vst [vmem:[%s343 + $0x20] sm:$0xff] %v2097
        %2250 = vst [vmem:[%s343 + $0x28] sm:$0xff] %v2099
        %2251 = vst [vmem:[%s343 + $0x30] sm:$0xff] %v2101
        %2252 = vst [vmem:[%s343 + $0x38] sm:$0xff] %v2103
        %2253 = vst [vmem:[%s343 + $0x40] sm:$0xff] %v2107
        %2254 = vst [vmem:[%s343 + $0x48] sm:$0xff] %v2109
        %2255 = vst [vmem:[%s343 + $0x50] sm:$0xff] %v2111
        %2256 = vst [vmem:[%s343 + $0x58] sm:$0xff] %v2113
        %2257 = vst [vmem:[%s343 + $0x60] sm:$0xff] %v2117
        %2258 = vst [vmem:[%s343 + $0x68] sm:$0xff] %v2119
        %2259 = vst [vmem:[%s343 + $0x70] sm:$0xff] %v2121
        %2260 = vst [vmem:[%s343 + $0x78] sm:$0xff] %v2123
        %2261 = vst [vmem:[%s343 + $0x80] sm:$0xff] %v2127
        %2262 = vst [vmem:[%s343 + $0x88] sm:$0xff] %v2129
        %2263 = vst [vmem:[%s343 + $0x90] sm:$0xff] %v2131
        %2264 = vst [vmem:[%s343 + $0x98] sm:$0xff] %v2133
        %2265 = vst [vmem:[%s343 + $0xa0] sm:$0xff] %v2137
        %2266 = vst [vmem:[%s343 + $0xa8] sm:$0xff] %v2139
        %2267 = vst [vmem:[%s343 + $0xb0] sm:$0xff] %v2141
        %2268 = vst [vmem:[%s343 + $0xb8] sm:$0xff] %v2143
        %2269 = vst [vmem:[%s343 + $0xc0] sm:$0xff] %v2147
        %2270 = vst [vmem:[%s343 + $0xc8] sm:$0xff] %v2149
        %2271 = vst [vmem:[%s343 + $0xd0] sm:$0xff] %v2151
        %2272 = vst [vmem:[%s343 + $0xd8] sm:$0xff] %v2153
        %2273 = vst [vmem:[%s343 + $0xe0] sm:$0xff] %v2157
        %2274 = vst [vmem:[%s343 + $0xe8] sm:$0xff] %v2159
        %2275 = vst [vmem:[%s343 + $0xf0] sm:$0xff] %v2161
        %2276 = vst [vmem:[%s343 + $0xf8] sm:$0xff] %v2163
        %2277 = vst [vmem:[%s343 + $0x100] sm:$0xff] %v2167
        %2278 = vst [vmem:[%s343 + $0x108] sm:$0xff] %v2169
        %2279 = vst [vmem:[%s343 + $0x110] sm:$0xff] %v2171
        %2280 = vst [vmem:[%s343 + $0x118] sm:$0xff] %v2173
        %2281 = vst [vmem:[%s343 + $0x120] sm:$0xff] %v2177
        %2282 = vst [vmem:[%s343 + $0x128] sm:$0xff] %v2179
        %2283 = vst [vmem:[%s343 + $0x130] sm:$0xff] %v2181
        %2284 = vst [vmem:[%s343 + $0x138] sm:$0xff] %v2183
        %2285 = vst [vmem:[%s343 + $0x140] sm:$0xff] %v2187
        %2286 = vst [vmem:[%s343 + $0x148] sm:$0xff] %v2189
        %2287 = vst [vmem:[%s343 + $0x150] sm:$0xff] %v2191
        %2288 = vst [vmem:[%s343 + $0x158] sm:$0xff] %v2193
        %2289 = vst [vmem:[%s343 + $0x160] sm:$0xff] %v2197
        %2290 = vst [vmem:[%s343 + $0x168] sm:$0xff] %v2199
        %2291 = vst [vmem:[%s343 + $0x170] sm:$0xff] %v2201
        %2292 = vst [vmem:[%s343 + $0x178] sm:$0xff] %v2203
        %2293 = vst [vmem:[%s343 + $0x180] sm:$0xff] %v2207
        %2294 = vst [vmem:[%s343 + $0x188] sm:$0xff] %v2209
        %2295 = vst [vmem:[%s343 + $0x190] sm:$0xff] %v2211
        %2296 = vst [vmem:[%s343 + $0x198] sm:$0xff] %v2213
        %2297 = vst [vmem:[%s343 + $0x1a0] sm:$0xff] %v2217
        %2298 = vst [vmem:[%s343 + $0x1a8] sm:$0xff] %v2219
        %2299 = vst [vmem:[%s343 + $0x1b0] sm:$0xff] %v2221
        %2300 = vst [vmem:[%s343 + $0x1b8] sm:$0xff] %v2223
        %2301 = vst [vmem:[%s343 + $0x1c0] sm:$0xff] %v2227
        %2302 = vst [vmem:[%s343 + $0x1c8] sm:$0xff] %v2229
        %2303 = vst [vmem:[%s343 + $0x1d0] sm:$0xff] %v2231
        %2304 = vst [vmem:[%s343 + $0x1d8] sm:$0xff] %v2233
        %2305 = vst [vmem:[%s343 + $0x1e0] sm:$0xff] %v2237
        %2306 = vst [vmem:[%s343 + $0x1e8] sm:$0xff] %v2239
        %2307 = vst [vmem:[%s343 + $0x1f0] sm:$0xff] %v2241
        %2308 = vst [vmem:[%s343 + $0x1f8] sm:$0xff] %v2243
        %s2309 = sand.u32 %s225, 1
        %s2310 = scalar_lea.sflag [#allocation3], %s2309
        %s2311 = sand.u32 %s225, 1
        %s2312 = smul.addr %s2311, 512
        %s2313 = scalar_lea.vmem [#allocation2], %s2312
        // Predicated region
        $region57: #{sae_forward.1} parent=55 // pred_check
          %p2314 = pneg %p235
        $region58: #{sae_forward.1} parent=55 // pred_check_branch
          %2316 = sbr.rel (%p2314) target = $region60
        $region59: #{sae_forward.1} parent=55 // pred_region
          %s2317 = smul.u32 32, %s23
          %s2318 = ssub.s32 63, %s2317
          %p2319 = scmp.lt.s32.totalorder %s2318, 32
          %s2320 = scalar_select %p2319, %s2318, 32
          %s2321 = smul.u32 128, %s2320
          %s2322 = smul.u32 %s2321, 2
          %s2324 = ssub.s32 8192, %s2322
          %2325 = vsyncadd %s2310, %s2324
          %p2326 = scmp.ne.s32.totalorder 0, %s2322
          %s2327 = smul.addr %s2317, 2
          %s2328 = smul.addr %s2327, 128
          %s2329 = scalar_lea.hbm %s9, %s2328
          %s2330 = smul.u32 16, %s2320
          %s2331 = sshll.u32 %s2313, 4
          %s2332 = int_to_ptr.vmem [resolvable:$true] %s2331
          %s2333 = sshll.u32 %s2330, 4
          %2337 = dma.vmem_to_hbm [thread:$0]  (%p2326), %s2332, %s2333, %s2329, %s2310, 256, 256, 16
        $region60: #{sae_forward.1} parent=55 // pred_fallthru
          _
      $region56: #{sae_forward.1} parent=5 // pred_fallthru
        _
      %p2338 = scmp.le.s32.totalorder 2, %s18
      // Predicated region
      $region61: #{sae_forward.1} parent=5 // pred_check
        %p2339 = pneg %p2338
      $region62: #{sae_forward.1} parent=5 // pred_check_branch
        %2341 = sbr.rel (%p2339) target = $region64
      $region63: #{sae_forward.1} parent=5 // pred_region
        %s2342 = ssub.s32 %s18, 2
        // Predicated region
        $region65: #{sae_forward.1} parent=63 // pred_check
          %p2343 = pneg %p241
        $region66: #{sae_forward.1} parent=63 // pred_check_branch
          %2345 = sbr.rel (%p2343) target = $region68
        $region67: #{sae_forward.1} parent=63 // pred_region
          %s2346 = sand.u32 %s226, 1
          %s2347 = scalar_lea.sflag [#allocation3], %s2346
          %s2348 = sand.u32 %s226, 1
          %s2349 = smul.addr %s2348, 512
          %s2350 = scalar_lea.vmem [#allocation2], %s2349
          %2351 = dma.done %s2347, 8192
        $region68: #{sae_forward.1} parent=63 // pred_fallthru
          _
      $region64: #{sae_forward.1} parent=5 // pred_fallthru
        _
    $region6: #{sae_forward.1} parent=1 // loop_footer
      %s22 = sadd.s32 1, %s18
    $region7: #{sae_forward.1} parent=1 // loop_footer_branch
      %17 = sbr.rel target = $region3
    $region8: #{sae_forward.1} parent=1 // loop_exit
      _
    %2352 = vsyncpa [#allocation3], 1
    %s2353 = scalar_lea.sflag [#allocation3], 1
    %2354 = vsyncpa %s2353, 1

// kernel: sae_forward.1
$region0: #{sae_forward.1}
  #allocation0 [shape = 'u32[]', space=smem, size = 0x4, offset = 0x4, fixed_abs, tag = 'smem constant byte address 0x4 - core index']
  #allocation1 [shape = 'u32[144,128]{1,0:T(1,128)}', space=vmem, size = 0x12000, scoped, tag = 'internal scratch']
  %s0 = inlined_call_operand.vmem [shape: bf16[500,256], index: 0, kind: input, shape index: {}]
  %s1 = inlined_call_operand.vmem [shape: bf16[256,128], index: 1, kind: input, shape index: {}]
  %s2 = inlined_call_operand.vmem [shape: f32[1,128], index: 2, kind: input, shape index: {}]
  %s3 = inlined_call_operand.vmem [shape: bf16[128,128], index: 3, kind: input, shape index: {}]
  %s4 = inlined_call_operand.vmem [shape: f32[1,128], index: 4, kind: input, shape index: {}]
  %s5 = inlined_call_operand.vmem [shape: bf16[128,128], index: 5, kind: input, shape index: {}]
  %s6 = inlined_call_operand.vmem [shape: f32[1,128], index: 6, kind: input, shape index: {}]
  %s7 = inlined_call_operand.vmem [shape: bf16[128,256], index: 7, kind: input, shape index: {}]
  %s8 = inlined_call_operand.vmem [shape: f32[1,256], index: 8, kind: input, shape index: {}]
  %s9 = inlined_call_operand.hbm [shape: f32[500,256], index: 9, kind: output, shape index: {}]
  %s10 = sld [smem:[#allocation0]]
  $region69: #{sae_forward.1} parent=0
    _
  %s12 = ssub.s32 1, %s10
  %s13 = scalar_select 0, %s12, %s10
  $region1: #{sae_forward.1} parent=0
    #allocation2 [shape = 'u8[524288]{0}', space=vmem, size = 0x80000, scoped, tag = 'output window, operand 0']
    #allocation3 [shape = 's32[2]{0}', space=sflag, size = 0x8, scoped, tag = 'scoped memory for sae_forward.1']
    %14 = vsyncpa [#allocation3], 0
    %s15 = scalar_lea.sflag [#allocation3], 1
    %16 = vsyncpa %s15, 0
    loop: start=0, step=1, limit=4
    $region2: #{sae_forward.1} parent=1 // loop_pre_header
      _
    $region3: #{sae_forward.1} parent=1 // loop_header
      %s18 = sphi 0, %s22
      %p19 = scmp.ge.s32.totalorder %s18, 4
      %s28 = sphi 0, %s30
      %s31 = sphi 0, %s28
      %s32 = sphi 0, %s31
      %s48 = sphi 0, %s32
      %s52 = sphi 0, %s52
      %s54 = sphi 0, %s52
      %s55 = sphi 0, %s54
      %s69 = sphi 0, %s55
      %s73 = sphi 0, %s73
      %s75 = sphi 0, %s73
      %s76 = sphi 0, %s75
      %s90 = sphi 0, %s76
      %s94 = sphi 0, %s94
      %s96 = sphi 0, %s94
      %s97 = sphi 0, %s96
      %s111 = sphi 0, %s97
      %s115 = sphi 0, %s115
      %s117 = sphi 0, %s115
      %s118 = sphi 0, %s117
      %s132 = sphi 0, %s118
      %s136 = sphi 0, %s136
      %s138 = sphi 0, %s136
      %s139 = sphi 0, %s138
      %s153 = sphi 0, %s139
      %s157 = sphi 0, %s157
      %s159 = sphi 0, %s157
      %s160 = sphi 0, %s159
      %s174 = sphi 0, %s160
      %s178 = sphi 0, %s178
      %s180 = sphi 0, %s178
      %s181 = sphi 0, %s180
      %s195 = sphi 0, %s181
      %s199 = sphi 0, %s199
      %s201 = sphi 0, %s199
      %s202 = sphi 0, %s201
      %s216 = sphi 0, %s202
      %s222 = sphi 0, %s224
      %s225 = sphi 0, %s222
      %s226 = sphi 0, %s225
      %s242 = sphi 0, %s226
    $region4: #{sae_forward.1} parent=1 // loop_header_branch
      %21 = sbr.rel (%p19) target = $region8
    $region5: #{sae_forward.1} parent=1 // loop_body
      %s23 = ssub.s32 %s18, 1
      %s24 = ssub.s32 %s18, 2
      %s25 = sadd.s32 %s18, 1
      %s26 = ssub.s32 %s18, %s25
      %p27 = scmp.eq.s32.totalorder %s26, 0
      %s29 = sadd.s32 %s28, 1
      %s30 = scalar_select %p27, %s28, %s29
      %p33 = pneg %p27
      %p34 = scmp.eq.s32.totalorder %s18, 1
      %p35 = por %p33, %p34
      %p36 = scmp.ne.s32.totalorder %s28, %s31
      %p37 = scmp.eq.s32.totalorder %s18, 0
      %p38 = por %p36, %p37
      %p39 = scmp.ne.s32.totalorder %s28, %s31
      %p40 = scmp.eq.s32.totalorder %s23, 1
      %p41 = por %p39, %p40
      %p42 = scmp.ne.s32.totalorder %s31, %s32
      %p43 = scmp.eq.s32.totalorder %s23, 0
      %p44 = por %p42, %p43
      %p45 = scmp.ne.s32.totalorder %s31, %s32
      %p46 = scmp.eq.s32.totalorder %s24, 1
      %p47 = por %p45, %p46
      %p49 = scmp.ne.s32.totalorder %s32, %s48
      %p50 = scmp.eq.s32.totalorder %s24, 0
      %p51 = por %p49, %p50
      %s53 = sadd.s32 %s52, 1
      %p56 = scmp.eq.s32.totalorder %s18, 1
      %p57 = scmp.ne.s32.totalorder %s52, %s54
      %p58 = scmp.eq.s32.totalorder %s18, 0
      %p59 = por %p57, %p58
      %p60 = scmp.ne.s32.totalorder %s52, %s54
      %p61 = scmp.eq.s32.totalorder %s23, 1
      %p62 = por %p60, %p61
      %p63 = scmp.ne.s32.totalorder %s54, %s55
      %p64 = scmp.eq.s32.totalorder %s23, 0
      %p65 = por %p63, %p64
      %p66 = scmp.ne.s32.totalorder %s54, %s55
      %p67 = scmp.eq.s32.totalorder %s24, 1
      %p68 = por %p66, %p67
      %p70 = scmp.ne.s32.totalorder %s55, %s69
      %p71 = scmp.eq.s32.totalorder %s24, 0
      %p72 = por %p70, %p71
      %s74 = sadd.s32 %s73, 1
      %p77 = scmp.eq.s32.totalorder %s18, 1
      %p78 = scmp.ne.s32.totalorder %s73, %s75
      %p79 = scmp.eq.s32.totalorder %s18, 0
      %p80 = por %p78, %p79
      %p81 = scmp.ne.s32.totalorder %s73, %s75
      %p82 = scmp.eq.s32.totalorder %s23, 1
      %p83 = por %p81, %p82
      %p84 = scmp.ne.s32.totalorder %s75, %s76
      %p85 = scmp.eq.s32.totalorder %s23, 0
      %p86 = por %p84, %p85
      %p87 = scmp.ne.s32.totalorder %s75, %s76
      %p88 = scmp.eq.s32.totalorder %s24, 1
      %p89 = por %p87, %p88
      %p91 = scmp.ne.s32.totalorder %s76, %s90
      %p92 = scmp.eq.s32.totalorder %s24, 0
      %p93 = por %p91, %p92
      %s95 = sadd.s32 %s94, 1
      %p98 = scmp.eq.s32.totalorder %s18, 1
      %p99 = scmp.ne.s32.totalorder %s94, %s96
      %p100 = scmp.eq.s32.totalorder %s18, 0
      %p101 = por %p99, %p100
      %p102 = scmp.ne.s32.totalorder %s94, %s96
      %p103 = scmp.eq.s32.totalorder %s23, 1
      %p104 = por %p102, %p103
      %p105 = scmp.ne.s32.totalorder %s96, %s97
      %p106 = scmp.eq.s32.totalorder %s23, 0
      %p107 = por %p105, %p106
      %p108 = scmp.ne.s32.totalorder %s96, %s97
      %p109 = scmp.eq.s32.totalorder %s24, 1
      %p110 = por %p108, %p109
      %p112 = scmp.ne.s32.totalorder %s97, %s111
      %p113 = scmp.eq.s32.totalorder %s24, 0
      %p114 = por %p112, %p113
      %s116 = sadd.s32 %s115, 1
      %p119 = scmp.eq.s32.totalorder %s18, 1
      %p120 = scmp.ne.s32.totalorder %s115, %s117
      %p121 = scmp.eq.s32.totalorder %s18, 0
      %p122 = por %p120, %p121
      %p123 = scmp.ne.s32.totalorder %s115, %s117
      %p124 = scmp.eq.s32.totalorder %s23, 1
      %p125 = por %p123, %p124
      %p126 = scmp.ne.s32.totalorder %s117, %s118
      %p127 = scmp.eq.s32.totalorder %s23, 0
      %p128 = por %p126, %p127
      %p129 = scmp.ne.s32.totalorder %s117, %s118
      %p130 = scmp.eq.s32.totalorder %s24, 1
      %p131 = por %p129, %p130
      %p133 = scmp.ne.s32.totalorder %s118, %s132
      %p134 = scmp.eq.s32.totalorder %s24, 0
      %p135 = por %p133, %p134
      %s137 = sadd.s32 %s136, 1
      %p140 = scmp.eq.s32.totalorder %s18, 1
      %p141 = scmp.ne.s32.totalorder %s136, %s138
      %p142 = scmp.eq.s32.totalorder %s18, 0
      %p143 = por %p141, %p142
      %p144 = scmp.ne.s32.totalorder %s136, %s138
      %p145 = scmp.eq.s32.totalorder %s23, 1
      %p146 = por %p144, %p145
      %p147 = scmp.ne.s32.totalorder %s138, %s139
      %p148 = scmp.eq.s32.totalorder %s23, 0
      %p149 = por %p147, %p148
      %p150 = scmp.ne.s32.totalorder %s138, %s139
      %p151 = scmp.eq.s32.totalorder %s24, 1
      %p152 = por %p150, %p151
      %p154 = scmp.ne.s32.totalorder %s139, %s153
      %p155 = scmp.eq.s32.totalorder %s24, 0
      %p156 = por %p154, %p155
      %s158 = sadd.s32 %s157, 1
      %p161 = scmp.eq.s32.totalorder %s18, 1
      %p162 = scmp.ne.s32.totalorder %s157, %s159
      %p163 = scmp.eq.s32.totalorder %s18, 0
      %p164 = por %p162, %p163
      %p165 = scmp.ne.s32.totalorder %s157, %s159
      %p166 = scmp.eq.s32.totalorder %s23, 1
      %p167 = por %p165, %p166
      %p168 = scmp.ne.s32.totalorder %s159, %s160
      %p169 = scmp.eq.s32.totalorder %s23, 0
      %p170 = por %p168, %p169
      %p171 = scmp.ne.s32.totalorder %s159, %s160
      %p172 = scmp.eq.s32.totalorder %s24, 1
      %p173 = por %p171, %p172
      %p175 = scmp.ne.s32.totalorder %s160, %s174
      %p176 = scmp.eq.s32.totalorder %s24, 0
      %p177 = por %p175, %p176
      %s179 = sadd.s32 %s178, 1
      %p182 = scmp.eq.s32.totalorder %s18, 1
      %p183 = scmp.ne.s32.totalorder %s178, %s180
      %p184 = scmp.eq.s32.totalorder %s18, 0
      %p185 = por %p183, %p184
      %p186 = scmp.ne.s32.totalorder %s178, %s180
      %p187 = scmp.eq.s32.totalorder %s23, 1
      %p188 = por %p186, %p187
      %p189 = scmp.ne.s32.totalorder %s180, %s181
      %p190 = scmp.eq.s32.totalorder %s23, 0
      %p191 = por %p189, %p190
      %p192 = scmp.ne.s32.totalorder %s180, %s181
      %p193 = scmp.eq.s32.totalorder %s24, 1
      %p194 = por %p192, %p193
      %p196 = scmp.ne.s32.totalorder %s181, %s195
      %p197 = scmp.eq.s32.totalorder %s24, 0
      %p198 = por %p196, %p197
      %s200 = sadd.s32 %s199, 1
      %p203 = scmp.eq.s32.totalorder %s18, 1
      %p204 = scmp.ne.s32.totalorder %s199, %s201
      %p205 = scmp.eq.s32.totalorder %s18, 0
      %p206 = por %p204, %p205
      %p207 = scmp.ne.s32.totalorder %s199, %s201
      %p208 = scmp.eq.s32.totalorder %s23, 1
      %p209 = por %p207, %p208
      %p210 = scmp.ne.s32.totalorder %s201, %s202
      %p211 = scmp.eq.s32.totalorder %s23, 0
      %p212 = por %p210, %p211
      %p213 = scmp.ne.s32.totalorder %s201, %s202
      %p214 = scmp.eq.s32.totalorder %s24, 1
      %p215 = por %p213, %p214
      %p217 = scmp.ne.s32.totalorder %s202, %s216
      %p218 = scmp.eq.s32.totalorder %s24, 0
      %p219 = por %p217, %p218
      %s220 = ssub.s32 %s18, %s25
      %p221 = scmp.eq.s32.totalorder %s220, 0
      %s223 = sadd.s32 %s222, 1
      %s224 = scalar_select %p221, %s222, %s223
      %p227 = pneg %p221
      %p228 = scmp.eq.s32.totalorder %s18, 1
      %p229 = por %p227, %p228
      %p230 = scmp.ne.s32.totalorder %s222, %s225
      %p231 = scmp.eq.s32.totalorder %s18, 0
      %p232 = por %p230, %p231
      %p233 = scmp.ne.s32.totalorder %s222, %s225
      %p234 = scmp.eq.s32.totalorder %s23, 1
      %p235 = por %p233, %p234
      %p236 = scmp.ne.s32.totalorder %s225, %s226
      %p237 = scmp.eq.s32.totalorder %s23, 0
      %p238 = por %p236, %p237
      %p239 = scmp.ne.s32.totalorder %s225, %s226
      %p240 = scmp.eq.s32.totalorder %s24, 1
      %p241 = por %p239, %p240
      %p243 = scmp.ne.s32.totalorder %s226, %s242
      %p244 = scmp.eq.s32.totalorder %s24, 0
      %p245 = por %p243, %p244
      %p246 = scmp.le.s32.totalorder 1, %s18
      %p247 = scmp.lt.s32.totalorder %s18, 3
      %p248 = pnand %p246, %p247
      %p249 = pneg %p248
      // Predicated region
      $region9: #{sae_forward.1} parent=5 // pred_check
        _
      $region10: #{sae_forward.1} parent=5 // pred_check_branch
        %251 = sbr.rel (%p248) target = $region12
      $region11: #{sae_forward.1} parent=5 // pred_region
        %s252 = ssub.s32 %s18, 1
        // Predicated region
        $region13: #{sae_forward.1} parent=11 // pred_check
          %p253 = pneg %p65
        $region14: #{sae_forward.1} parent=11 // pred_check_branch
          %255 = sbr.rel (%p253) target = $region16
        $region15: #{sae_forward.1} parent=11 // pred_region
          _
        $region16: #{sae_forward.1} parent=11 // pred_fallthru
          _
        // Predicated region
        $region17: #{sae_forward.1} parent=11 // pred_check
          %p256 = pneg %p86
        $region18: #{sae_forward.1} parent=11 // pred_check_branch
          %258 = sbr.rel (%p256) target = $region20
        $region19: #{sae_forward.1} parent=11 // pred_region
          _
        $region20: #{sae_forward.1} parent=11 // pred_fallthru
          _
        // Predicated region
        $region21: #{sae_forward.1} parent=11 // pred_check
          %p259 = pneg %p107
        $region22: #{sae_forward.1} parent=11 // pred_check_branch
          %261 = sbr.rel (%p259) target = $region24
        $region23: #{sae_forward.1} parent=11 // pred_region
          _
        $region24: #{sae_forward.1} parent=11 // pred_fallthru
          _
        // Predicated region
        $region25: #{sae_forward.1} parent=11 // pred_check
          %p262 = pneg %p128
        $region26: #{sae_forward.1} parent=11 // pred_check_branch
          %264 = sbr.rel (%p262) target = $region28
        $region27: #{sae_forward.1} parent=11 // pred_region
          _
        $region28: #{sae_forward.1} parent=11 // pred_fallthru
          _
        // Predicated region
        $region29: #{sae_forward.1} parent=11 // pred_check
          %p265 = pneg %p149
        $region30: #{sae_forward.1} parent=11 // pred_check_branch
          %267 = sbr.rel (%p265) target = $region32
        $region31: #{sae_forward.1} parent=11 // pred_region
          _
        $region32: #{sae_forward.1} parent=11 // pred_fallthru
          _
        // Predicated region
        $region33: #{sae_forward.1} parent=11 // pred_check
          %p268 = pneg %p170
        $region34: #{sae_forward.1} parent=11 // pred_check_branch
          %270 = sbr.rel (%p268) target = $region36
        $region35: #{sae_forward.1} parent=11 // pred_region
          _
        $region36: #{sae_forward.1} parent=11 // pred_fallthru
          _
        // Predicated region
        $region37: #{sae_forward.1} parent=11 // pred_check
          %p271 = pneg %p191
        $region38: #{sae_forward.1} parent=11 // pred_check_branch
          %273 = sbr.rel (%p271) target = $region40
        $region39: #{sae_forward.1} parent=11 // pred_region
          _
        $region40: #{sae_forward.1} parent=11 // pred_fallthru
          _
        // Predicated region
        $region41: #{sae_forward.1} parent=11 // pred_check
          %p274 = pneg %p212
        $region42: #{sae_forward.1} parent=11 // pred_check_branch
          %276 = sbr.rel (%p274) target = $region44
        $region43: #{sae_forward.1} parent=11 // pred_region
          _
        $region44: #{sae_forward.1} parent=11 // pred_fallthru
          _
      $region12: #{sae_forward.1} parent=5 // pred_fallthru
        _
      %p277 = scmp.lt.s32.totalorder %s18, 2
      // Predicated region
      $region45: #{sae_forward.1} parent=5 // pred_check
        %p278 = pneg %p277
      $region46: #{sae_forward.1} parent=5 // pred_check_branch
        %280 = sbr.rel (%p278) target = $region48
      $region47: #{sae_forward.1} parent=5 // pred_region
        // Predicated region
        $region49: #{sae_forward.1} parent=47 // pred_check
          %p281 = pneg %p38
        $region50: #{sae_forward.1} parent=47 // pred_check_branch
          %283 = sbr.rel (%p281) target = $region52
        $region51: #{sae_forward.1} parent=47 // pred_region
          %s284 = smul.u32 32, %s18
          %s285 = ssub.s32 63, %s284
          %p286 = scmp.lt.s32.totalorder %s285, 32
          %s287 = scalar_select %p286, %s285, 32
          %s288 = smul.u32 64, %s287
          %s289 = smul.u32 %s288, 2
          %p290 = scmp.lt.s32.totalorder %s284, 62
          %s291 = scalar_select %p290, %s284, 62
          %s292 = smul.addr %s291, 2
          %s293 = smul.addr %s292, 4
          %s294 = scalar_lea.vmem %s0, %s293
          %s295 = smul.u32 32, %s18
          %s296 = ssub.s32 63, %s295
          %p297 = scmp.lt.s32.totalorder %s296, 32
          %s298 = scalar_select %p297, %s296, 32
          %s299 = smul.u32 64, %s298
          %s300 = smul.u32 %s299, 2
        $region52: #{sae_forward.1} parent=47 // pred_fallthru
          _
      $region48: #{sae_forward.1} parent=5 // pred_fallthru
        _
      %p301 = scmp.le.s32.totalorder 1, %s18
      %p302 = scmp.lt.s32.totalorder %s18, 3
      %p303 = pnand %p301, %p302
      %p304 = pneg %p303
      // Predicated region
      $region53: #{sae_forward.1} parent=5 // pred_check
        _
      $region54: #{sae_forward.1} parent=5 // pred_check_branch
        %306 = sbr.rel (%p303) target = $region56
      $region55: #{sae_forward.1} parent=5 // pred_region
        %s307 = ssub.s32 %s18, 1
        %s308 = smul.u32 32, %s23
        %s309 = ssub.s32 63, %s308
        %p310 = scmp.lt.s32.totalorder %s309, 32
        %s311 = scalar_select %p310, %s309, 32
        %s312 = smul.u32 64, %s311
        %s313 = smul.u32 %s312, 2
        %p314 = scmp.lt.s32.totalorder %s308, 62
        %s315 = scalar_select %p314, %s308, 62
        %s316 = smul.addr %s315, 2
        %s317 = smul.addr %s316, 4
        %s318 = scalar_lea.vmem %s0, %s317
        %p319 = pneg %p44
        %p320 = pneg %p41
        %p321 = pneg %p65
        %p322 = pneg %p62
        %p323 = pneg %p86
        %p324 = pneg %p83
        %p325 = pneg %p107
        %p326 = pneg %p104
        %p327 = pneg %p128
        %p328 = pneg %p125
        %p329 = pneg %p149
        %p330 = pneg %p146
        %p331 = pneg %p170
        %p332 = pneg %p167
        %p333 = pneg %p191
        %p334 = pneg %p188
        %p335 = pneg %p212
        %p336 = pneg %p209
        %p337 = pneg %p238
        %p338 = pneg %p235
        %s339 = sand.u32 %s225, 1
        %s340 = scalar_lea.sflag [#allocation3], %s339
        %s341 = sand.u32 %s225, 1
        %s342 = smul.addr %s341, 512
        %s343 = scalar_lea.vmem [#allocation2], %s342
        %s344 = smul.u32 32, %s23
        %s345 = ssub.s32 63, %s344
        %p346 = scmp.lt.s32.totalorder %s345, 32
        %s347 = scalar_select %p346, %s345, 32
        %s348 = smul.u32 64, %s347
        %s349 = smul.u32 %s348, 2
        %p350 = scmp.lt.s32.totalorder %s344, 62
        %s351 = scalar_select %p350, %s344, 62
        %s352 = smul.addr %s351, 2
        %s353 = smul.addr %s352, 4
        %s354 = scalar_lea.vmem %s0, %s353
        %s355 = smul.u32 32, %s23
        %s356 = ssub.s32 63, %s355
        %p357 = scmp.lt.s32.totalorder %s356, 32
        %s358 = scalar_select %p357, %s356, 32
        %s359 = smul.u32 64, %s358
        %s360 = smul.u32 %s359, 2
        %s361 = smul.u32 32, %s23
        %s362 = ssub.s32 63, %s361
        %p363 = scmp.lt.s32.totalorder %s362, 32
        %s364 = scalar_select %p363, %s362, 32
        %s365 = smul.u32 128, %s364
        %s366 = smul.u32 %s365, 2
        %v368 = vld [vmem:[%s354] sm:$0xff]
        %v369 = vld [vmem:[%s354 + $0x8] sm:$0xff]
        %v370 = vld [vmem:[%s354 + $0x10] sm:$0xff]
        %v371 = vld [vmem:[%s354 + $0x18] sm:$0xff]
        %v372 = vld [vmem:[%s354 + $0x20] sm:$0xff]
        %v373 = vld [vmem:[%s354 + $0x28] sm:$0xff]
        %v374 = vld [vmem:[%s354 + $0x30] sm:$0xff]
        %v375 = vld [vmem:[%s354 + $0x38] sm:$0xff]
        %v376 = vld [vmem:[%s354 + $0x40] sm:$0xff]
        %v377 = vld [vmem:[%s354 + $0x48] sm:$0xff]
        %v378 = vld [vmem:[%s354 + $0x50] sm:$0xff]
        %v379 = vld [vmem:[%s354 + $0x58] sm:$0xff]
        %v380 = vld [vmem:[%s354 + $0x60] sm:$0xff]
        %v381 = vld [vmem:[%s354 + $0x68] sm:$0xff]
        %v382 = vld [vmem:[%s354 + $0x70] sm:$0xff]
        %v383 = vld [vmem:[%s354 + $0x78] sm:$0xff]
        %v384 = vld [vmem:[%s354 + $0x80] sm:$0xff]
        %v385 = vld [vmem:[%s354 + $0x88] sm:$0xff]
        %v386 = vld [vmem:[%s354 + $0x90] sm:$0xff]
        %v387 = vld [vmem:[%s354 + $0x98] sm:$0xff]
        %v388 = vld [vmem:[%s354 + $0xa0] sm:$0xff]
        %v389 = vld [vmem:[%s354 + $0xa8] sm:$0xff]
        %v390 = vld [vmem:[%s354 + $0xb0] sm:$0xff]
        %v391 = vld [vmem:[%s354 + $0xb8] sm:$0xff]
        %v392 = vld [vmem:[%s354 + $0xc0] sm:$0xff]
        %v393 = vld [vmem:[%s354 + $0xc8] sm:$0xff]
        %v394 = vld [vmem:[%s354 + $0xd0] sm:$0xff]
        %v395 = vld [vmem:[%s354 + $0xd8] sm:$0xff]
        %v396 = vld [vmem:[%s354 + $0xe0] sm:$0xff]
        %v397 = vld [vmem:[%s354 + $0xe8] sm:$0xff]
        %v398 = vld [vmem:[%s354 + $0xf0] sm:$0xff]
        %v399 = vld [vmem:[%s354 + $0xf8] sm:$0xff]
        %v400 = vld [vmem:[%s1] sm:$0xf]
        %v401 = vld [vmem:[%s1 + $0x4] sm:$0xf]
        %v402 = vld [vmem:[%s1 + $0x8] sm:$0xf]
        %v403 = vld [vmem:[%s1 + $0xc] sm:$0xf]
        %v404 = vld [vmem:[%s1 + $0x10] sm:$0xf]
        %v405 = vld [vmem:[%s1 + $0x14] sm:$0xf]
        %v406 = vld [vmem:[%s1 + $0x18] sm:$0xf]
        %v407 = vld [vmem:[%s1 + $0x1c] sm:$0xf]
        %v408 = vld [vmem:[%s1 + $0x20] sm:$0xf]
        %v409 = vld [vmem:[%s1 + $0x24] sm:$0xf]
        %v410 = vld [vmem:[%s1 + $0x28] sm:$0xf]
        %v411 = vld [vmem:[%s1 + $0x2c] sm:$0xf]
        %v412 = vld [vmem:[%s1 + $0x30] sm:$0xf]
        %v413 = vld [vmem:[%s1 + $0x34] sm:$0xf]
        %v414 = vld [vmem:[%s1 + $0x38] sm:$0xf]
        %v415 = vld [vmem:[%s1 + $0x3c] sm:$0xf]
        %v416 = vld [vmem:[%s1 + $0x40] sm:$0xf]
        %v417 = vld [vmem:[%s1 + $0x44] sm:$0xf]
        %v418 = vld [vmem:[%s1 + $0x48] sm:$0xf]
        %v419 = vld [vmem:[%s1 + $0x4c] sm:$0xf]
        %v420 = vld [vmem:[%s1 + $0x50] sm:$0xf]
        %v421 = vld [vmem:[%s1 + $0x54] sm:$0xf]
        %v422 = vld [vmem:[%s1 + $0x58] sm:$0xf]
        %v423 = vld [vmem:[%s1 + $0x5c] sm:$0xf]
        %v424 = vld [vmem:[%s1 + $0x60] sm:$0xf]
        %v425 = vld [vmem:[%s1 + $0x64] sm:$0xf]
        %v426 = vld [vmem:[%s1 + $0x68] sm:$0xf]
        %v427 = vld [vmem:[%s1 + $0x6c] sm:$0xf]
        %v428 = vld [vmem:[%s1 + $0x70] sm:$0xf]
        %v429 = vld [vmem:[%s1 + $0x74] sm:$0xf]
        %v430 = vld [vmem:[%s1 + $0x78] sm:$0xf]
        %v431 = vld [vmem:[%s1 + $0x7c] sm:$0xf]
        %v432 = vld [vmem:[%s2] sm:$0x1]
        %v434 = vlaneseq
        %v435 = vshrl.u32 %v434, 7
        %v436 = vsub.s32 0, %v435
        %v437 = vrot.slane %v432, %v436
        %v471 = vunpack.c.l.b16 %v368
        %v472 = vunpack.c.h.b16 %v368
        %v473 = vunpack.c.l.b16 %v369
        %v474 = vunpack.c.h.b16 %v369
        %v475 = vunpack.c.l.b16 %v370
        %v476 = vunpack.c.h.b16 %v370
        %v477 = vunpack.c.l.b16 %v371
        %v478 = vunpack.c.h.b16 %v371
        %v479 = vunpack.c.l.b16 %v372
        %v480 = vunpack.c.h.b16 %v372
        %v481 = vunpack.c.l.b16 %v373
        %v482 = vunpack.c.h.b16 %v373
        %v483 = vunpack.c.l.b16 %v374
        %v484 = vunpack.c.h.b16 %v374
        %v485 = vunpack.c.l.b16 %v375
        %v486 = vunpack.c.h.b16 %v375
        %v487 = vunpack.c.l.b16 %v376
        %v488 = vunpack.c.h.b16 %v376
        %v489 = vunpack.c.l.b16 %v377
        %v490 = vunpack.c.h.b16 %v377
        %v491 = vunpack.c.l.b16 %v378
        %v492 = vunpack.c.h.b16 %v378
        %v493 = vunpack.c.l.b16 %v379
        %v494 = vunpack.c.h.b16 %v379
        %v495 = vunpack.c.l.b16 %v380
        %v496 = vunpack.c.h.b16 %v380
        %v497 = vunpack.c.l.b16 %v381
        %v498 = vunpack.c.h.b16 %v381
        %v499 = vunpack.c.l.b16 %v382
        %v500 = vunpack.c.h.b16 %v382
        %v501 = vunpack.c.l.b16 %v383
        %v502 = vunpack.c.h.b16 %v383
        %v503 = vunpack.c.l.b16 %v384
        %v504 = vunpack.c.h.b16 %v384
        %v505 = vunpack.c.l.b16 %v385
        %v506 = vunpack.c.h.b16 %v385
        %v507 = vunpack.c.l.b16 %v386
        %v508 = vunpack.c.h.b16 %v386
        %v509 = vunpack.c.l.b16 %v387
        %v510 = vunpack.c.h.b16 %v387
        %v511 = vunpack.c.l.b16 %v388
        %v512 = vunpack.c.h.b16 %v388
        %v513 = vunpack.c.l.b16 %v389
        %v514 = vunpack.c.h.b16 %v389
        %v515 = vunpack.c.l.b16 %v390
        %v516 = vunpack.c.h.b16 %v390
        %v517 = vunpack.c.l.b16 %v391
        %v518 = vunpack.c.h.b16 %v391
        %v519 = vunpack.c.l.b16 %v392
        %v520 = vunpack.c.h.b16 %v392
        %v521 = vunpack.c.l.b16 %v393
        %v522 = vunpack.c.h.b16 %v393
        %v523 = vunpack.c.l.b16 %v394
        %v524 = vunpack.c.h.b16 %v394
        %v525 = vunpack.c.l.b16 %v395
        %v526 = vunpack.c.h.b16 %v395
        %v527 = vunpack.c.l.b16 %v396
        %v528 = vunpack.c.h.b16 %v396
        %v529 = vunpack.c.l.b16 %v397
        %v530 = vunpack.c.h.b16 %v397
        %v531 = vunpack.c.l.b16 %v398
        %v532 = vunpack.c.h.b16 %v398
        %v533 = vunpack.c.l.b16 %v399
        %v534 = vunpack.c.h.b16 %v399
        %v535 = vpack.c.b16 %v473, %v471
        %v536 = vpack.c.b16 %v474, %v472
        %v537 = vpack.c.b16 %v477, %v475
        %v538 = vpack.c.b16 %v478, %v476
        %v539 = vpack.c.b16 %v481, %v479
        %v540 = vpack.c.b16 %v482, %v480
        %v541 = vpack.c.b16 %v485, %v483
        %v542 = vpack.c.b16 %v486, %v484
        %v543 = vpack.c.b16 %v489, %v487
        %v544 = vpack.c.b16 %v490, %v488
        %v545 = vpack.c.b16 %v493, %v491
        %v546 = vpack.c.b16 %v494, %v492
        %v547 = vpack.c.b16 %v497, %v495
        %v548 = vpack.c.b16 %v498, %v496
        %v549 = vpack.c.b16 %v501, %v499
        %v550 = vpack.c.b16 %v502, %v500
        %v551 = vpack.c.b16 %v505, %v503
        %v552 = vpack.c.b16 %v506, %v504
        %v553 = vpack.c.b16 %v509, %v507
        %v554 = vpack.c.b16 %v510, %v508
        %v555 = vpack.c.b16 %v513, %v511
        %v556 = vpack.c.b16 %v514, %v512
        %v557 = vpack.c.b16 %v517, %v515
        %v558 = vpack.c.b16 %v518, %v516
        %v559 = vpack.c.b16 %v521, %v519
        %v560 = vpack.c.b16 %v522, %v520
        %v561 = vpack.c.b16 %v525, %v523
        %v562 = vpack.c.b16 %v526, %v524
        %v563 = vpack.c.b16 %v529, %v527
        %v564 = vpack.c.b16 %v530, %v528
        %v565 = vpack.c.b16 %v533, %v531
        %v566 = vpack.c.b16 %v534, %v532
        %v631 = vunpack.c.l.b16 %v400
        %v632 = vunpack.c.l.b16 %v401
        %v633 = vunpack.c.l.b16 %v402
        %v634 = vunpack.c.l.b16 %v403
        %v635 = vunpack.c.l.b16 %v404
        %v636 = vunpack.c.l.b16 %v405
        %v637 = vunpack.c.l.b16 %v406
        %v638 = vunpack.c.l.b16 %v407
        %v639 = vunpack.c.l.b16 %v408
        %v640 = vunpack.c.l.b16 %v409
        %v641 = vunpack.c.l.b16 %v410
        %v642 = vunpack.c.l.b16 %v411
        %v643 = vunpack.c.l.b16 %v412
        %v644 = vunpack.c.l.b16 %v413
        %v645 = vunpack.c.l.b16 %v414
        %v646 = vunpack.c.l.b16 %v415
        %v647 = vunpack.c.l.b16 %v416
        %v648 = vunpack.c.l.b16 %v417
        %v649 = vunpack.c.l.b16 %v418
        %v650 = vunpack.c.l.b16 %v419
        %v651 = vunpack.c.l.b16 %v420
        %v652 = vunpack.c.l.b16 %v421
        %v653 = vunpack.c.l.b16 %v422
        %v654 = vunpack.c.l.b16 %v423
        %v655 = vunpack.c.l.b16 %v424
        %v656 = vunpack.c.l.b16 %v425
        %v657 = vunpack.c.l.b16 %v426
        %v658 = vunpack.c.l.b16 %v427
        %v659 = vunpack.c.l.b16 %v428
        %v660 = vunpack.c.l.b16 %v429
        %v661 = vunpack.c.l.b16 %v430
        %v662 = vunpack.c.l.b16 %v431
        %v663 = vpack.c.b16 %v632, %v631
        %v664 = vpack.c.b16 %v634, %v633
        %v665 = vpack.c.b16 %v636, %v635
        %v666 = vpack.c.b16 %v638, %v637
        %v667 = vpack.c.b16 %v640, %v639
        %v668 = vpack.c.b16 %v642, %v641
        %v669 = vpack.c.b16 %v644, %v643
        %v670 = vpack.c.b16 %v646, %v645
        %v671 = vpack.c.b16 %v648, %v647
        %v672 = vpack.c.b16 %v650, %v649
        %v673 = vpack.c.b16 %v652, %v651
        %v674 = vpack.c.b16 %v654, %v653
        %v675 = vpack.c.b16 %v656, %v655
        %v676 = vpack.c.b16 %v658, %v657
        %v677 = vpack.c.b16 %v660, %v659
        %v678 = vpack.c.b16 %v662, %v661
        %695 = vmatprep.subr.bf16.mxu0 0
        %696 = vmatpush1.bf16.msra.mxu0 %v670
        %697 = vmatprep.subr.bf16.mxu0 0
        %698 = vmatpush1.bf16.msra.mxu0 %v669
        %699 = vmatprep.subr.bf16.mxu0 0
        %700 = vmatpush1.bf16.msra.mxu0 %v668
        %701 = vmatprep.subr.bf16.mxu0 0
        %702 = vmatpush1.bf16.msra.mxu0 %v667
        %703 = vmatprep.subr.bf16.mxu0 0
        %704 = vmatpush1.bf16.msra.mxu0 %v666
        %705 = vmatprep.subr.bf16.mxu0 0
        %706 = vmatpush1.bf16.msra.mxu0 %v665
        %707 = vmatprep.subr.bf16.mxu0 0
        %708 = vmatpush1.bf16.msra.mxu0 %v664
        %709 = vmatprep.subr.bf16.mxu0 0
        %710 = vmatpush1.bf16.msra.mxu0 %v663
        %711 = vmatprep.subr.bf16.mxu0 0
        %712 = vmatpush2.bf16.msra.mxu0 %v678
        %713 = vmatprep.subr.bf16.mxu0 0
        %714 = vmatpush2.bf16.msra.mxu0 %v677
        %715 = vmatprep.subr.bf16.mxu0 0
        %716 = vmatpush2.bf16.msra.mxu0 %v676
        %717 = vmatprep.subr.bf16.mxu0 0
        %718 = vmatpush2.bf16.msra.mxu0 %v675
        %719 = vmatprep.subr.bf16.mxu0 0
        %720 = vmatpush2.bf16.msra.mxu0 %v674
        %721 = vmatprep.subr.bf16.mxu0 0
        %722 = vmatpush2.bf16.msra.mxu0 %v673
        %723 = vmatprep.subr.bf16.mxu0 0
        %724 = vmatpush2.bf16.msra.mxu0 %v672
        %725 = vmatprep.subr.bf16.mxu0 0
        %726 = vmatpush2.bf16.msra.mxu0 %v671
        %727 = vmatprep.mubr.bf16.mxu0 %v536
        %728 = vmatmul.mubr.bf16.gmra.mxu0 %v535
        %v729 = vpop.f32.mrf.mxu0
        %v730 = vadd.f32 %v437, %v729
        %v731 = vpop.f32.mrf.mxu0
        %v732 = vpop.f32.mrf.mxu0
        %v733 = vadd.f32 %v437, %v732
        %v734 = vpop.f32.mrf.mxu0
        %735 = vmatprep.mubr.bf16.mxu0 %v538
        %736 = vmatmul.mubr.bf16.gmra.mxu0 %v537
        %v737 = vpop.f32.mrf.mxu0
        %v738 = vadd.f32 %v437, %v737
        %v739 = vpop.f32.mrf.mxu0
        %v740 = vpop.f32.mrf.mxu0
        %v741 = vadd.f32 %v437, %v740
        %v742 = vpop.f32.mrf.mxu0
        %743 = vmatprep.mubr.bf16.mxu0 %v540
        %744 = vmatmul.mubr.bf16.gmra.mxu0 %v539
        %v745 = vpop.f32.mrf.mxu0
        %v746 = vadd.f32 %v437, %v745
        %v747 = vpop.f32.mrf.mxu0
        %v748 = vpop.f32.mrf.mxu0
        %v749 = vadd.f32 %v437, %v748
        %v750 = vpop.f32.mrf.mxu0
        %751 = vmatprep.mubr.bf16.mxu0 %v542
        %752 = vmatmul.mubr.bf16.gmra.mxu0 %v541
        %v753 = vpop.f32.mrf.mxu0
        %v754 = vadd.f32 %v437, %v753
        %v755 = vpop.f32.mrf.mxu0
        %v756 = vpop.f32.mrf.mxu0
        %v757 = vadd.f32 %v437, %v756
        %v758 = vpop.f32.mrf.mxu0
        %759 = vmatprep.mubr.bf16.mxu0 %v544
        %760 = vmatmul.mubr.bf16.gmra.mxu0 %v543
        %v761 = vpop.f32.mrf.mxu0
        %v762 = vadd.f32 %v437, %v761
        %v763 = vpop.f32.mrf.mxu0
        %v764 = vpop.f32.mrf.mxu0
        %v765 = vadd.f32 %v437, %v764
        %v766 = vpop.f32.mrf.mxu0
        %767 = vmatprep.mubr.bf16.mxu0 %v546
        %768 = vmatmul.mubr.bf16.gmra.mxu0 %v545
        %v769 = vpop.f32.mrf.mxu0
        %v770 = vadd.f32 %v437, %v769
        %v771 = vpop.f32.mrf.mxu0
        %v772 = vpop.f32.mrf.mxu0
        %v773 = vadd.f32 %v437, %v772
        %v774 = vpop.f32.mrf.mxu0
        %775 = vmatprep.mubr.bf16.mxu0 %v548
        %776 = vmatmul.mubr.bf16.gmra.mxu0 %v547
        %v777 = vpop.f32.mrf.mxu0
        %v778 = vadd.f32 %v437, %v777
        %v779 = vpop.f32.mrf.mxu0
        %v780 = vpop.f32.mrf.mxu0
        %v781 = vadd.f32 %v437, %v780
        %v782 = vpop.f32.mrf.mxu0
        %783 = vmatprep.mubr.bf16.mxu0 %v550
        %784 = vmatmul.mubr.bf16.gmra.mxu0 %v549
        %v785 = vpop.f32.mrf.mxu0
        %v786 = vadd.f32 %v437, %v785
        %v787 = vpop.f32.mrf.mxu0
        %v788 = vpop.f32.mrf.mxu0
        %v789 = vadd.f32 %v437, %v788
        %v790 = vpop.f32.mrf.mxu0
        %791 = vmatprep.mubr.bf16.mxu0 %v552
        %792 = vmatmul.mubr.bf16.gmra.mxu0 %v551
        %v793 = vpop.f32.mrf.mxu0
        %v794 = vadd.f32 %v437, %v793
        %v795 = vpop.f32.mrf.mxu0
        %v796 = vpop.f32.mrf.mxu0
        %v797 = vadd.f32 %v437, %v796
        %v798 = vpop.f32.mrf.mxu0
        %799 = vmatprep.mubr.bf16.mxu0 %v554
        %800 = vmatmul.mubr.bf16.gmra.mxu0 %v553
        %v801 = vpop.f32.mrf.mxu0
        %v802 = vadd.f32 %v437, %v801
        %v803 = vpop.f32.mrf.mxu0
        %v804 = vpop.f32.mrf.mxu0
        %v805 = vadd.f32 %v437, %v804
        %v806 = vpop.f32.mrf.mxu0
        %807 = vmatprep.mubr.bf16.mxu0 %v556
        %808 = vmatmul.mubr.bf16.gmra.mxu0 %v555
        %v809 = vpop.f32.mrf.mxu0
        %v810 = vadd.f32 %v437, %v809
        %v811 = vpop.f32.mrf.mxu0
        %v812 = vpop.f32.mrf.mxu0
        %v813 = vadd.f32 %v437, %v812
        %v814 = vpop.f32.mrf.mxu0
        %815 = vmatprep.mubr.bf16.mxu0 %v558
        %816 = vmatmul.mubr.bf16.gmra.mxu0 %v557
        %v817 = vpop.f32.mrf.mxu0
        %v818 = vadd.f32 %v437, %v817
        %v819 = vpop.f32.mrf.mxu0
        %v820 = vpop.f32.mrf.mxu0
        %v821 = vadd.f32 %v437, %v820
        %v822 = vpop.f32.mrf.mxu0
        %823 = vmatprep.mubr.bf16.mxu0 %v560
        %824 = vmatmul.mubr.bf16.gmra.mxu0 %v559
        %v825 = vpop.f32.mrf.mxu0
        %v826 = vadd.f32 %v437, %v825
        %v827 = vpop.f32.mrf.mxu0
        %v828 = vpop.f32.mrf.mxu0
        %v829 = vadd.f32 %v437, %v828
        %v830 = vpop.f32.mrf.mxu0
        %831 = vmatprep.mubr.bf16.mxu0 %v562
        %832 = vmatmul.mubr.bf16.gmra.mxu0 %v561
        %v833 = vpop.f32.mrf.mxu0
        %v834 = vadd.f32 %v437, %v833
        %v835 = vpop.f32.mrf.mxu0
        %v836 = vpop.f32.mrf.mxu0
        %v837 = vadd.f32 %v437, %v836
        %v838 = vpop.f32.mrf.mxu0
        %839 = vmatprep.mubr.bf16.mxu0 %v564
        %840 = vmatmul.mubr.bf16.gmra.mxu0 %v563
        %v841 = vpop.f32.mrf.mxu0
        %v842 = vadd.f32 %v437, %v841
        %v843 = vpop.f32.mrf.mxu0
        %v844 = vpop.f32.mrf.mxu0
        %v845 = vadd.f32 %v437, %v844
        %v846 = vpop.f32.mrf.mxu0
        %847 = vmatprep.mubr.bf16.mxu0 %v566
        %848 = vmatmul.mubr.bf16.gmra.mxu0 %v565
        %v849 = vpop.f32.mrf.mxu0
        %v850 = vadd.f32 %v437, %v849
        %v851 = vpop.f32.mrf.mxu0
        %v852 = vpop.f32.mrf.mxu0
        %v853 = vadd.f32 %v437, %v852
        %v854 = vpop.f32.mrf.mxu0
        %855 = vdwg.mxu0
        %v856 = vxor.u32 %v730, 2147483648
        %v857 = vxor.u32 %v733, 2147483648
        %v858 = vxor.u32 %v738, 2147483648
        %v859 = vxor.u32 %v741, 2147483648
        %v860 = vxor.u32 %v746, 2147483648
        %v861 = vxor.u32 %v749, 2147483648
        %v862 = vxor.u32 %v754, 2147483648
        %v863 = vxor.u32 %v757, 2147483648
        %v864 = vxor.u32 %v762, 2147483648
        %v865 = vxor.u32 %v765, 2147483648
        %v866 = vxor.u32 %v770, 2147483648
        %v867 = vxor.u32 %v773, 2147483648
        %v868 = vxor.u32 %v778, 2147483648
        %v869 = vxor.u32 %v781, 2147483648
        %v870 = vxor.u32 %v786, 2147483648
        %v871 = vxor.u32 %v789, 2147483648
        %v872 = vxor.u32 %v794, 2147483648
        %v873 = vxor.u32 %v797, 2147483648
        %v874 = vxor.u32 %v802, 2147483648
        %v875 = vxor.u32 %v805, 2147483648
        %v876 = vxor.u32 %v810, 2147483648
        %v877 = vxor.u32 %v813, 2147483648
        %v878 = vxor.u32 %v818, 2147483648
        %v879 = vxor.u32 %v821, 2147483648
        %v880 = vxor.u32 %v826, 2147483648
        %v881 = vxor.u32 %v829, 2147483648
        %v882 = vxor.u32 %v834, 2147483648
        %v883 = vxor.u32 %v837, 2147483648
        %v884 = vxor.u32 %v842, 2147483648
        %v885 = vxor.u32 %v845, 2147483648
        %v886 = vxor.u32 %v850, 2147483648
        %v887 = vxor.u32 %v853, 2147483648
        %v888 = vmul.f32 %v856, 1.442695
        %v889 = vpow.pop %v888
        %v890 = vmul.f32 %v857, 1.442695
        %v891 = vpow.pop %v890
        %v892 = vmul.f32 %v858, 1.442695
        %v893 = vpow.pop %v892
        %v894 = vmul.f32 %v859, 1.442695
        %v895 = vpow.pop %v894
        %v896 = vmul.f32 %v860, 1.442695
        %v897 = vpow.pop %v896
        %v898 = vmul.f32 %v861, 1.442695
        %v899 = vpow.pop %v898
        %v900 = vmul.f32 %v862, 1.442695
        %v901 = vpow.pop %v900
        %v902 = vmul.f32 %v863, 1.442695
        %v903 = vpow.pop %v902
        %v904 = vmul.f32 %v864, 1.442695
        %v905 = vpow.pop %v904
        %v906 = vmul.f32 %v865, 1.442695
        %v907 = vpow.pop %v906
        %v908 = vmul.f32 %v866, 1.442695
        %v909 = vpow.pop %v908
        %v910 = vmul.f32 %v867, 1.442695
        %v911 = vpow.pop %v910
        %v912 = vmul.f32 %v868, 1.442695
        %v913 = vpow.pop %v912
        %v914 = vmul.f32 %v869, 1.442695
        %v915 = vpow.pop %v914
        %v916 = vmul.f32 %v870, 1.442695
        %v917 = vpow.pop %v916
        %v918 = vmul.f32 %v871, 1.442695
        %v919 = vpow.pop %v918
        %v920 = vmul.f32 %v872, 1.442695
        %v921 = vpow.pop %v920
        %v922 = vmul.f32 %v873, 1.442695
        %v923 = vpow.pop %v922
        %v924 = vmul.f32 %v874, 1.442695
        %v925 = vpow.pop %v924
        %v926 = vmul.f32 %v875, 1.442695
        %v927 = vpow.pop %v926
        %v928 = vmul.f32 %v876, 1.442695
        %v929 = vpow.pop %v928
        %v930 = vmul.f32 %v877, 1.442695
        %v931 = vpow.pop %v930
        %v932 = vmul.f32 %v878, 1.442695
        %v933 = vpow.pop %v932
        %v934 = vmul.f32 %v879, 1.442695
        %v935 = vpow.pop %v934
        %v936 = vmul.f32 %v880, 1.442695
        %v937 = vpow.pop %v936
        %v938 = vmul.f32 %v881, 1.442695
        %v939 = vpow.pop %v938
        %v940 = vmul.f32 %v882, 1.442695
        %v941 = vpow.pop %v940
        %v942 = vmul.f32 %v883, 1.442695
        %v943 = vpow.pop %v942
        %v944 = vmul.f32 %v884, 1.442695
        %v945 = vpow.pop %v944
        %v946 = vmul.f32 %v885, 1.442695
        %v947 = vpow.pop %v946
        %v948 = vmul.f32 %v886, 1.442695
        %v949 = vpow.pop %v948
        %v950 = vmul.f32 %v887, 1.442695
        %v951 = vpow.pop %v950
        %v952 = vadd.f32 %v889, 1.0
        %v953 = vadd.f32 %v891, 1.0
        %v954 = vadd.f32 %v893, 1.0
        %v955 = vadd.f32 %v895, 1.0
        %v956 = vadd.f32 %v897, 1.0
        %v957 = vadd.f32 %v899, 1.0
        %v958 = vadd.f32 %v901, 1.0
        %v959 = vadd.f32 %v903, 1.0
        %v960 = vadd.f32 %v905, 1.0
        %v961 = vadd.f32 %v907, 1.0
        %v962 = vadd.f32 %v909, 1.0
        %v963 = vadd.f32 %v911, 1.0
        %v964 = vadd.f32 %v913, 1.0
        %v965 = vadd.f32 %v915, 1.0
        %v966 = vadd.f32 %v917, 1.0
        %v967 = vadd.f32 %v919, 1.0
        %v968 = vadd.f32 %v921, 1.0
        %v969 = vadd.f32 %v923, 1.0
        %v970 = vadd.f32 %v925, 1.0
        %v971 = vadd.f32 %v927, 1.0
        %v972 = vadd.f32 %v929, 1.0
        %v973 = vadd.f32 %v931, 1.0
        %v974 = vadd.f32 %v933, 1.0
        %v975 = vadd.f32 %v935, 1.0
        %v976 = vadd.f32 %v937, 1.0
        %v977 = vadd.f32 %v939, 1.0
        %v978 = vadd.f32 %v941, 1.0
        %v979 = vadd.f32 %v943, 1.0
        %v980 = vadd.f32 %v945, 1.0
        %v981 = vadd.f32 %v947, 1.0
        %v982 = vadd.f32 %v949, 1.0
        %v983 = vadd.f32 %v951, 1.0
        %v984 = vrcp.pop %v952
        %v985 = vmul.f32 1.0, %v984
        %v986 = vrcp.pop %v953
        %v987 = vmul.f32 1.0, %v986
        %v988 = vrcp.pop %v954
        %v989 = vmul.f32 1.0, %v988
        %v990 = vrcp.pop %v955
        %v991 = vmul.f32 1.0, %v990
        %v992 = vrcp.pop %v956
        %v993 = vmul.f32 1.0, %v992
        %v994 = vrcp.pop %v957
        %v995 = vmul.f32 1.0, %v994
        %v996 = vrcp.pop %v958
        %v997 = vmul.f32 1.0, %v996
        %v998 = vrcp.pop %v959
        %v999 = vmul.f32 1.0, %v998
        %v1000 = vrcp.pop %v960
        %v1001 = vmul.f32 1.0, %v1000
        %v1002 = vrcp.pop %v961
        %v1003 = vmul.f32 1.0, %v1002
        %v1004 = vrcp.pop %v962
        %v1005 = vmul.f32 1.0, %v1004
        %v1006 = vrcp.pop %v963
        %v1007 = vmul.f32 1.0, %v1006
        %v1008 = vrcp.pop %v964
        %v1009 = vmul.f32 1.0, %v1008
        %v1010 = vrcp.pop %v965
        %v1011 = vmul.f32 1.0, %v1010
        %v1012 = vrcp.pop %v966
        %v1013 = vmul.f32 1.0, %v1012
        %v1014 = vrcp.pop %v967
        %v1015 = vmul.f32 1.0, %v1014
        %v1016 = vrcp.pop %v968
        %v1017 = vmul.f32 1.0, %v1016
        %v1018 = vrcp.pop %v969
        %v1019 = vmul.f32 1.0, %v1018
        %v1020 = vrcp.pop %v970
        %v1021 = vmul.f32 1.0, %v1020
        %v1022 = vrcp.pop %v971
        %v1023 = vmul.f32 1.0, %v1022
        %v1024 = vrcp.pop %v972
        %v1025 = vmul.f32 1.0, %v1024
        %v1026 = vrcp.pop %v973
        %v1027 = vmul.f32 1.0, %v1026
        %v1028 = vrcp.pop %v974
        %v1029 = vmul.f32 1.0, %v1028
        %v1030 = vrcp.pop %v975
        %v1031 = vmul.f32 1.0, %v1030
        %v1032 = vrcp.pop %v976
        %v1033 = vmul.f32 1.0, %v1032
        %v1034 = vrcp.pop %v977
        %v1035 = vmul.f32 1.0, %v1034
        %v1036 = vrcp.pop %v978
        %v1037 = vmul.f32 1.0, %v1036
        %v1038 = vrcp.pop %v979
        %v1039 = vmul.f32 1.0, %v1038
        %v1040 = vrcp.pop %v980
        %v1041 = vmul.f32 1.0, %v1040
        %v1042 = vrcp.pop %v981
        %v1043 = vmul.f32 1.0, %v1042
        %v1044 = vrcp.pop %v982
        %v1045 = vmul.f32 1.0, %v1044
        %v1046 = vrcp.pop %v983
        %v1047 = vmul.f32 1.0, %v1046
        %v1048 = vpack.c.bf16 %v987, %v985
        %v1049 = vpack.c.bf16 %v991, %v989
        %v1050 = vpack.c.bf16 %v995, %v993
        %v1051 = vpack.c.bf16 %v999, %v997
        %v1052 = vpack.c.bf16 %v1003, %v1001
        %v1053 = vpack.c.bf16 %v1007, %v1005
        %v1054 = vpack.c.bf16 %v1011, %v1009
        %v1055 = vpack.c.bf16 %v1015, %v1013
        %v1056 = vpack.c.bf16 %v1019, %v1017
        %v1057 = vpack.c.bf16 %v1023, %v1021
        %v1058 = vpack.c.bf16 %v1027, %v1025
        %v1059 = vpack.c.bf16 %v1031, %v1029
        %v1060 = vpack.c.bf16 %v1035, %v1033
        %v1061 = vpack.c.bf16 %v1039, %v1037
        %v1062 = vpack.c.bf16 %v1043, %v1041
        %v1063 = vpack.c.bf16 %v1047, %v1045
        %v1064 = vld [vmem:[%s3] sm:$0xf]
        %v1065 = vld [vmem:[%s3 + $0x4] sm:$0xf]
        %v1066 = vld [vmem:[%s3 + $0x8] sm:$0xf]
        %v1067 = vld [vmem:[%s3 + $0xc] sm:$0xf]
        %v1068 = vld [vmem:[%s3 + $0x10] sm:$0xf]
        %v1069 = vld [vmem:[%s3 + $0x14] sm:$0xf]
        %v1070 = vld [vmem:[%s3 + $0x18] sm:$0xf]
        %v1071 = vld [vmem:[%s3 + $0x1c] sm:$0xf]
        %v1072 = vld [vmem:[%s3 + $0x20] sm:$0xf]
        %v1073 = vld [vmem:[%s3 + $0x24] sm:$0xf]
        %v1074 = vld [vmem:[%s3 + $0x28] sm:$0xf]
        %v1075 = vld [vmem:[%s3 + $0x2c] sm:$0xf]
        %v1076 = vld [vmem:[%s3 + $0x30] sm:$0xf]
        %v1077 = vld [vmem:[%s3 + $0x34] sm:$0xf]
        %v1078 = vld [vmem:[%s3 + $0x38] sm:$0xf]
        %v1079 = vld [vmem:[%s3 + $0x3c] sm:$0xf]
        %v1080 = vld [vmem:[%s4] sm:$0x1]
        %v1082 = vlaneseq
        %v1083 = vshrl.u32 %v1082, 7
        %v1084 = vsub.s32 0, %v1083
        %v1085 = vrot.slane %v1080, %v1084
        %v1103 = vunpack.c.l.b16 %v1064
        %v1104 = vunpack.c.l.b16 %v1065
        %v1105 = vunpack.c.l.b16 %v1066
        %v1106 = vunpack.c.l.b16 %v1067
        %v1107 = vunpack.c.l.b16 %v1068
        %v1108 = vunpack.c.l.b16 %v1069
        %v1109 = vunpack.c.l.b16 %v1070
        %v1110 = vunpack.c.l.b16 %v1071
        %v1111 = vunpack.c.l.b16 %v1072
        %v1112 = vunpack.c.l.b16 %v1073
        %v1113 = vunpack.c.l.b16 %v1074
        %v1114 = vunpack.c.l.b16 %v1075
        %v1115 = vunpack.c.l.b16 %v1076
        %v1116 = vunpack.c.l.b16 %v1077
        %v1117 = vunpack.c.l.b16 %v1078
        %v1118 = vunpack.c.l.b16 %v1079
        %v1119 = vpack.c.b16 %v1104, %v1103
        %v1120 = vpack.c.b16 %v1106, %v1105
        %v1121 = vpack.c.b16 %v1108, %v1107
        %v1122 = vpack.c.b16 %v1110, %v1109
        %v1123 = vpack.c.b16 %v1112, %v1111
        %v1124 = vpack.c.b16 %v1114, %v1113
        %v1125 = vpack.c.b16 %v1116, %v1115
        %v1126 = vpack.c.b16 %v1118, %v1117
        %1135 = vmatprep.subr.bf16.mxu0 0
        %1136 = vmatpush1.bf16.msra.mxu0 %v1126
        %1137 = vmatprep.subr.bf16.mxu0 0
        %1138 = vmatpush1.bf16.msra.mxu0 %v1125
        %1139 = vmatprep.subr.bf16.mxu0 0
        %1140 = vmatpush1.bf16.msra.mxu0 %v1124
        %1141 = vmatprep.subr.bf16.mxu0 0
        %1142 = vmatpush1.bf16.msra.mxu0 %v1123
        %1143 = vmatprep.subr.bf16.mxu0 0
        %1144 = vmatpush1.bf16.msra.mxu0 %v1122
        %1145 = vmatprep.subr.bf16.mxu0 0
        %1146 = vmatpush1.bf16.msra.mxu0 %v1121
        %1147 = vmatprep.subr.bf16.mxu0 0
        %1148 = vmatpush1.bf16.msra.mxu0 %v1120
        %1149 = vmatprep.subr.bf16.mxu0 0
        %1150 = vmatpush1.bf16.msra.mxu0 %v1119
        %1151 = vmatprep.subr.bf16.mxu0 0
        %1152 = vmatpush2.bf16.msra.mxu0 0
        %1153 = vmatprep.subr.bf16.mxu0 0
        %1154 = vmatpush2.bf16.msra.mxu0 0
        %1155 = vmatprep.subr.bf16.mxu0 0
        %1156 = vmatpush2.bf16.msra.mxu0 0
        %1157 = vmatprep.subr.bf16.mxu0 0
        %1158 = vmatpush2.bf16.msra.mxu0 0
        %1159 = vmatprep.subr.bf16.mxu0 0
        %1160 = vmatpush2.bf16.msra.mxu0 0
        %1161 = vmatprep.subr.bf16.mxu0 0
        %1162 = vmatpush2.bf16.msra.mxu0 0
        %1163 = vmatprep.subr.bf16.mxu0 0
        %1164 = vmatpush2.bf16.msra.mxu0 0
        %1165 = vmatprep.subr.bf16.mxu0 0
        %1166 = vmatpush2.bf16.msra.mxu0 0
        %1167 = vmatprep.mubr.bf16.mxu0 0
        %1168 = vmatmul.mubr.bf16.gmra.mxu0 %v1048
        %v1169 = vpop.f32.mrf.mxu0
        %v1170 = vadd.f32 %v1085, %v1169
        %v1171 = vpop.f32.mrf.mxu0
        %v1172 = vpop.f32.mrf.mxu0
        %v1173 = vadd.f32 %v1085, %v1172
        %v1174 = vpop.f32.mrf.mxu0
        %1175 = vmatprep.mubr.bf16.mxu0 0
        %1176 = vmatmul.mubr.bf16.gmra.mxu0 %v1049
        %v1177 = vpop.f32.mrf.mxu0
        %v1178 = vadd.f32 %v1085, %v1177
        %v1179 = vpop.f32.mrf.mxu0
        %v1180 = vpop.f32.mrf.mxu0
        %v1181 = vadd.f32 %v1085, %v1180
        %v1182 = vpop.f32.mrf.mxu0
        %1183 = vmatprep.mubr.bf16.mxu0 0
        %1184 = vmatmul.mubr.bf16.gmra.mxu0 %v1050
        %v1185 = vpop.f32.mrf.mxu0
        %v1186 = vadd.f32 %v1085, %v1185
        %v1187 = vpop.f32.mrf.mxu0
        %v1188 = vpop.f32.mrf.mxu0
        %v1189 = vadd.f32 %v1085, %v1188
        %v1190 = vpop.f32.mrf.mxu0
        %1191 = vmatprep.mubr.bf16.mxu0 0
        %1192 = vmatmul.mubr.bf16.gmra.mxu0 %v1051
        %v1193 = vpop.f32.mrf.mxu0
        %v1194 = vadd.f32 %v1085, %v1193
        %v1195 = vpop.f32.mrf.mxu0
        %v1196 = vpop.f32.mrf.mxu0
        %v1197 = vadd.f32 %v1085, %v1196
        %v1198 = vpop.f32.mrf.mxu0
        %1199 = vmatprep.mubr.bf16.mxu0 0
        %1200 = vmatmul.mubr.bf16.gmra.mxu0 %v1052
        %v1201 = vpop.f32.mrf.mxu0
        %v1202 = vadd.f32 %v1085, %v1201
        %v1203 = vpop.f32.mrf.mxu0
        %v1204 = vpop.f32.mrf.mxu0
        %v1205 = vadd.f32 %v1085, %v1204
        %v1206 = vpop.f32.mrf.mxu0
        %1207 = vmatprep.mubr.bf16.mxu0 0
        %1208 = vmatmul.mubr.bf16.gmra.mxu0 %v1053
        %v1209 = vpop.f32.mrf.mxu0
        %v1210 = vadd.f32 %v1085, %v1209
        %v1211 = vpop.f32.mrf.mxu0
        %v1212 = vpop.f32.mrf.mxu0
        %v1213 = vadd.f32 %v1085, %v1212
        %v1214 = vpop.f32.mrf.mxu0
        %1215 = vmatprep.mubr.bf16.mxu0 0
        %1216 = vmatmul.mubr.bf16.gmra.mxu0 %v1054
        %v1217 = vpop.f32.mrf.mxu0
        %v1218 = vadd.f32 %v1085, %v1217
        %v1219 = vpop.f32.mrf.mxu0
        %v1220 = vpop.f32.mrf.mxu0
        %v1221 = vadd.f32 %v1085, %v1220
        %v1222 = vpop.f32.mrf.mxu0
        %1223 = vmatprep.mubr.bf16.mxu0 0
        %1224 = vmatmul.mubr.bf16.gmra.mxu0 %v1055
        %v1225 = vpop.f32.mrf.mxu0
        %v1226 = vadd.f32 %v1085, %v1225
        %v1227 = vpop.f32.mrf.mxu0
        %v1228 = vpop.f32.mrf.mxu0
        %v1229 = vadd.f32 %v1085, %v1228
        %v1230 = vpop.f32.mrf.mxu0
        %1231 = vmatprep.mubr.bf16.mxu0 0
        %1232 = vmatmul.mubr.bf16.gmra.mxu0 %v1056
        %v1233 = vpop.f32.mrf.mxu0
        %v1234 = vadd.f32 %v1085, %v1233
        %v1235 = vpop.f32.mrf.mxu0
        %v1236 = vpop.f32.mrf.mxu0
        %v1237 = vadd.f32 %v1085, %v1236
        %v1238 = vpop.f32.mrf.mxu0
        %1239 = vmatprep.mubr.bf16.mxu0 0
        %1240 = vmatmul.mubr.bf16.gmra.mxu0 %v1057
        %v1241 = vpop.f32.mrf.mxu0
        %v1242 = vadd.f32 %v1085, %v1241
        %v1243 = vpop.f32.mrf.mxu0
        %v1244 = vpop.f32.mrf.mxu0
        %v1245 = vadd.f32 %v1085, %v1244
        %v1246 = vpop.f32.mrf.mxu0
        %1247 = vmatprep.mubr.bf16.mxu0 0
        %1248 = vmatmul.mubr.bf16.gmra.mxu0 %v1058
        %v1249 = vpop.f32.mrf.mxu0
        %v1250 = vadd.f32 %v1085, %v1249
        %v1251 = vpop.f32.mrf.mxu0
        %v1252 = vpop.f32.mrf.mxu0
        %v1253 = vadd.f32 %v1085, %v1252
        %v1254 = vpop.f32.mrf.mxu0
        %1255 = vmatprep.mubr.bf16.mxu0 0
        %1256 = vmatmul.mubr.bf16.gmra.mxu0 %v1059
        %v1257 = vpop.f32.mrf.mxu0
        %v1258 = vadd.f32 %v1085, %v1257
        %v1259 = vpop.f32.mrf.mxu0
        %v1260 = vpop.f32.mrf.mxu0
        %v1261 = vadd.f32 %v1085, %v1260
        %v1262 = vpop.f32.mrf.mxu0
        %1263 = vmatprep.mubr.bf16.mxu0 0
        %1264 = vmatmul.mubr.bf16.gmra.mxu0 %v1060
        %v1265 = vpop.f32.mrf.mxu0
        %v1266 = vadd.f32 %v1085, %v1265
        %v1267 = vpop.f32.mrf.mxu0
        %v1268 = vpop.f32.mrf.mxu0
        %v1269 = vadd.f32 %v1085, %v1268
        %v1270 = vpop.f32.mrf.mxu0
        %1271 = vmatprep.mubr.bf16.mxu0 0
        %1272 = vmatmul.mubr.bf16.gmra.mxu0 %v1061
        %v1273 = vpop.f32.mrf.mxu0
        %v1274 = vadd.f32 %v1085, %v1273
        %v1275 = vpop.f32.mrf.mxu0
        %v1276 = vpop.f32.mrf.mxu0
        %v1277 = vadd.f32 %v1085, %v1276
        %v1278 = vpop.f32.mrf.mxu0
        %1279 = vmatprep.mubr.bf16.mxu0 0
        %1280 = vmatmul.mubr.bf16.gmra.mxu0 %v1062
        %v1281 = vpop.f32.mrf.mxu0
        %v1282 = vadd.f32 %v1085, %v1281
        %v1283 = vpop.f32.mrf.mxu0
        %v1284 = vpop.f32.mrf.mxu0
        %v1285 = vadd.f32 %v1085, %v1284
        %v1286 = vpop.f32.mrf.mxu0
        %1287 = vmatprep.mubr.bf16.mxu0 0
        %1288 = vmatmul.mubr.bf16.gmra.mxu0 %v1063
        %v1289 = vpop.f32.mrf.mxu0
        %v1290 = vadd.f32 %v1085, %v1289
        %v1291 = vpop.f32.mrf.mxu0
        %v1292 = vpop.f32.mrf.mxu0
        %v1293 = vadd.f32 %v1085, %v1292
        %v1294 = vpop.f32.mrf.mxu0
        %1295 = vdwg.mxu0
        %v1296 = vxor.u32 %v1170, 2147483648
        %v1297 = vxor.u32 %v1173, 2147483648
        %v1298 = vxor.u32 %v1178, 2147483648
        %v1299 = vxor.u32 %v1181, 2147483648
        %v1300 = vxor.u32 %v1186, 2147483648
        %v1301 = vxor.u32 %v1189, 2147483648
        %v1302 = vxor.u32 %v1194, 2147483648
        %v1303 = vxor.u32 %v1197, 2147483648
        %v1304 = vxor.u32 %v1202, 2147483648
        %v1305 = vxor.u32 %v1205, 2147483648
        %v1306 = vxor.u32 %v1210, 2147483648
        %v1307 = vxor.u32 %v1213, 2147483648
        %v1308 = vxor.u32 %v1218, 2147483648
        %v1309 = vxor.u32 %v1221, 2147483648
        %v1310 = vxor.u32 %v1226, 2147483648
        %v1311 = vxor.u32 %v1229, 2147483648
        %v1312 = vxor.u32 %v1234, 2147483648
        %v1313 = vxor.u32 %v1237, 2147483648
        %v1314 = vxor.u32 %v1242, 2147483648
        %v1315 = vxor.u32 %v1245, 2147483648
        %v1316 = vxor.u32 %v1250, 2147483648
        %v1317 = vxor.u32 %v1253, 2147483648
        %v1318 = vxor.u32 %v1258, 2147483648
        %v1319 = vxor.u32 %v1261, 2147483648
        %v1320 = vxor.u32 %v1266, 2147483648
        %v1321 = vxor.u32 %v1269, 2147483648
        %v1322 = vxor.u32 %v1274, 2147483648
        %v1323 = vxor.u32 %v1277, 2147483648
        %v1324 = vxor.u32 %v1282, 2147483648
        %v1325 = vxor.u32 %v1285, 2147483648
        %v1326 = vxor.u32 %v1290, 2147483648
        %v1327 = vxor.u32 %v1293, 2147483648
        %v1328 = vmul.f32 %v1296, 1.442695
        %v1329 = vpow.pop %v1328
        %v1330 = vmul.f32 %v1297, 1.442695
        %v1331 = vpow.pop %v1330
        %v1332 = vmul.f32 %v1298, 1.442695
        %v1333 = vpow.pop %v1332
        %v1334 = vmul.f32 %v1299, 1.442695
        %v1335 = vpow.pop %v1334
        %v1336 = vmul.f32 %v1300, 1.442695
        %v1337 = vpow.pop %v1336
        %v1338 = vmul.f32 %v1301, 1.442695
        %v1339 = vpow.pop %v1338
        %v1340 = vmul.f32 %v1302, 1.442695
        %v1341 = vpow.pop %v1340
        %v1342 = vmul.f32 %v1303, 1.442695
        %v1343 = vpow.pop %v1342
        %v1344 = vmul.f32 %v1304, 1.442695
        %v1345 = vpow.pop %v1344
        %v1346 = vmul.f32 %v1305, 1.442695
        %v1347 = vpow.pop %v1346
        %v1348 = vmul.f32 %v1306, 1.442695
        %v1349 = vpow.pop %v1348
        %v1350 = vmul.f32 %v1307, 1.442695
        %v1351 = vpow.pop %v1350
        %v1352 = vmul.f32 %v1308, 1.442695
        %v1353 = vpow.pop %v1352
        %v1354 = vmul.f32 %v1309, 1.442695
        %v1355 = vpow.pop %v1354
        %v1356 = vmul.f32 %v1310, 1.442695
        %v1357 = vpow.pop %v1356
        %v1358 = vmul.f32 %v1311, 1.442695
        %v1359 = vpow.pop %v1358
        %v1360 = vmul.f32 %v1312, 1.442695
        %v1361 = vpow.pop %v1360
        %v1362 = vmul.f32 %v1313, 1.442695
        %v1363 = vpow.pop %v1362
        %v1364 = vmul.f32 %v1314, 1.442695
        %v1365 = vpow.pop %v1364
        %v1366 = vmul.f32 %v1315, 1.442695
        %v1367 = vpow.pop %v1366
        %v1368 = vmul.f32 %v1316, 1.442695
        %v1369 = vpow.pop %v1368
        %v1370 = vmul.f32 %v1317, 1.442695
        %v1371 = vpow.pop %v1370
        %v1372 = vmul.f32 %v1318, 1.442695
        %v1373 = vpow.pop %v1372
        %v1374 = vmul.f32 %v1319, 1.442695
        %v1375 = vpow.pop %v1374
        %v1376 = vmul.f32 %v1320, 1.442695
        %v1377 = vpow.pop %v1376
        %v1378 = vmul.f32 %v1321, 1.442695
        %v1379 = vpow.pop %v1378
        %v1380 = vmul.f32 %v1322, 1.442695
        %v1381 = vpow.pop %v1380
        %v1382 = vmul.f32 %v1323, 1.442695
        %v1383 = vpow.pop %v1382
        %v1384 = vmul.f32 %v1324, 1.442695
        %v1385 = vpow.pop %v1384
        %v1386 = vmul.f32 %v1325, 1.442695
        %v1387 = vpow.pop %v1386
        %v1388 = vmul.f32 %v1326, 1.442695
        %v1389 = vpow.pop %v1388
        %v1390 = vmul.f32 %v1327, 1.442695
        %v1391 = vpow.pop %v1390
        %v1392 = vadd.f32 %v1329, 1.0
        %v1393 = vadd.f32 %v1331, 1.0
        %v1394 = vadd.f32 %v1333, 1.0
        %v1395 = vadd.f32 %v1335, 1.0
        %v1396 = vadd.f32 %v1337, 1.0
        %v1397 = vadd.f32 %v1339, 1.0
        %v1398 = vadd.f32 %v1341, 1.0
        %v1399 = vadd.f32 %v1343, 1.0
        %v1400 = vadd.f32 %v1345, 1.0
        %v1401 = vadd.f32 %v1347, 1.0
        %v1402 = vadd.f32 %v1349, 1.0
        %v1403 = vadd.f32 %v1351, 1.0
        %v1404 = vadd.f32 %v1353, 1.0
        %v1405 = vadd.f32 %v1355, 1.0
        %v1406 = vadd.f32 %v1357, 1.0
        %v1407 = vadd.f32 %v1359, 1.0
        %v1408 = vadd.f32 %v1361, 1.0
        %v1409 = vadd.f32 %v1363, 1.0
        %v1410 = vadd.f32 %v1365, 1.0
        %v1411 = vadd.f32 %v1367, 1.0
        %v1412 = vadd.f32 %v1369, 1.0
        %v1413 = vadd.f32 %v1371, 1.0
        %v1414 = vadd.f32 %v1373, 1.0
        %v1415 = vadd.f32 %v1375, 1.0
        %v1416 = vadd.f32 %v1377, 1.0
        %v1417 = vadd.f32 %v1379, 1.0
        %v1418 = vadd.f32 %v1381, 1.0
        %v1419 = vadd.f32 %v1383, 1.0
        %v1420 = vadd.f32 %v1385, 1.0
        %v1421 = vadd.f32 %v1387, 1.0
        %v1422 = vadd.f32 %v1389, 1.0
        %v1423 = vadd.f32 %v1391, 1.0
        %v1424 = vrcp.pop %v1392
        %v1425 = vmul.f32 1.0, %v1424
        %v1426 = vrcp.pop %v1393
        %v1427 = vmul.f32 1.0, %v1426
        %v1428 = vrcp.pop %v1394
        %v1429 = vmul.f32 1.0, %v1428
        %v1430 = vrcp.pop %v1395
        %v1431 = vmul.f32 1.0, %v1430
        %v1432 = vrcp.pop %v1396
        %v1433 = vmul.f32 1.0, %v1432
        %v1434 = vrcp.pop %v1397
        %v1435 = vmul.f32 1.0, %v1434
        %v1436 = vrcp.pop %v1398
        %v1437 = vmul.f32 1.0, %v1436
        %v1438 = vrcp.pop %v1399
        %v1439 = vmul.f32 1.0, %v1438
        %v1440 = vrcp.pop %v1400
        %v1441 = vmul.f32 1.0, %v1440
        %v1442 = vrcp.pop %v1401
        %v1443 = vmul.f32 1.0, %v1442
        %v1444 = vrcp.pop %v1402
        %v1445 = vmul.f32 1.0, %v1444
        %v1446 = vrcp.pop %v1403
        %v1447 = vmul.f32 1.0, %v1446
        %v1448 = vrcp.pop %v1404
        %v1449 = vmul.f32 1.0, %v1448
        %v1450 = vrcp.pop %v1405
        %v1451 = vmul.f32 1.0, %v1450
        %v1452 = vrcp.pop %v1406
        %v1453 = vmul.f32 1.0, %v1452
        %v1454 = vrcp.pop %v1407
        %v1455 = vmul.f32 1.0, %v1454
        %v1456 = vrcp.pop %v1408
        %v1457 = vmul.f32 1.0, %v1456
        %v1458 = vrcp.pop %v1409
        %v1459 = vmul.f32 1.0, %v1458
        %v1460 = vrcp.pop %v1410
        %v1461 = vmul.f32 1.0, %v1460
        %v1462 = vrcp.pop %v1411
        %v1463 = vmul.f32 1.0, %v1462
        %v1464 = vrcp.pop %v1412
        %v1465 = vmul.f32 1.0, %v1464
        %v1466 = vrcp.pop %v1413
        %v1467 = vmul.f32 1.0, %v1466
        %v1468 = vrcp.pop %v1414
        %v1469 = vmul.f32 1.0, %v1468
        %v1470 = vrcp.pop %v1415
        %v1471 = vmul.f32 1.0, %v1470
        %v1472 = vrcp.pop %v1416
        %v1473 = vmul.f32 1.0, %v1472
        %v1474 = vrcp.pop %v1417
        %v1475 = vmul.f32 1.0, %v1474
        %v1476 = vrcp.pop %v1418
        %v1477 = vmul.f32 1.0, %v1476
        %v1478 = vrcp.pop %v1419
        %v1479 = vmul.f32 1.0, %v1478
        %v1480 = vrcp.pop %v1420
        %v1481 = vmul.f32 1.0, %v1480
        %v1482 = vrcp.pop %v1421
        %v1483 = vmul.f32 1.0, %v1482
        %v1484 = vrcp.pop %v1422
        %v1485 = vmul.f32 1.0, %v1484
        %v1486 = vrcp.pop %v1423
        %v1487 = vmul.f32 1.0, %v1486
        %v1488 = vpack.c.bf16 %v1427, %v1425
        %v1489 = vpack.c.bf16 %v1431, %v1429
        %v1490 = vpack.c.bf16 %v1435, %v1433
        %v1491 = vpack.c.bf16 %v1439, %v1437
        %v1492 = vpack.c.bf16 %v1443, %v1441
        %v1493 = vpack.c.bf16 %v1447, %v1445
        %v1494 = vpack.c.bf16 %v1451, %v1449
        %v1495 = vpack.c.bf16 %v1455, %v1453
        %v1496 = vpack.c.bf16 %v1459, %v1457
        %v1497 = vpack.c.bf16 %v1463, %v1461
        %v1498 = vpack.c.bf16 %v1467, %v1465
        %v1499 = vpack.c.bf16 %v1471, %v1469
        %v1500 = vpack.c.bf16 %v1475, %v1473
        %v1501 = vpack.c.bf16 %v1479, %v1477
        %v1502 = vpack.c.bf16 %v1483, %v1481
        %v1503 = vpack.c.bf16 %v1487, %v1485
        %v1504 = vld [vmem:[%s5] sm:$0xf]
        %v1505 = vld [vmem:[%s5 + $0x4] sm:$0xf]
        %v1506 = vld [vmem:[%s5 + $0x8] sm:$0xf]
        %v1507 = vld [vmem:[%s5 + $0xc] sm:$0xf]
        %v1508 = vld [vmem:[%s5 + $0x10] sm:$0xf]
        %v1509 = vld [vmem:[%s5 + $0x14] sm:$0xf]
        %v1510 = vld [vmem:[%s5 + $0x18] sm:$0xf]
        %v1511 = vld [vmem:[%s5 + $0x1c] sm:$0xf]
        %v1512 = vld [vmem:[%s5 + $0x20] sm:$0xf]
        %v1513 = vld [vmem:[%s5 + $0x24] sm:$0xf]
        %v1514 = vld [vmem:[%s5 + $0x28] sm:$0xf]
        %v1515 = vld [vmem:[%s5 + $0x2c] sm:$0xf]
        %v1516 = vld [vmem:[%s5 + $0x30] sm:$0xf]
        %v1517 = vld [vmem:[%s5 + $0x34] sm:$0xf]
        %v1518 = vld [vmem:[%s5 + $0x38] sm:$0xf]
        %v1519 = vld [vmem:[%s5 + $0x3c] sm:$0xf]
        %v1520 = vld [vmem:[%s6] sm:$0x1]
        %v1522 = vlaneseq
        %v1523 = vshrl.u32 %v1522, 7
        %v1524 = vsub.s32 0, %v1523
        %v1525 = vrot.slane %v1520, %v1524
        %v1543 = vunpack.c.l.b16 %v1504
        %v1544 = vunpack.c.l.b16 %v1505
        %v1545 = vunpack.c.l.b16 %v1506
        %v1546 = vunpack.c.l.b16 %v1507
        %v1547 = vunpack.c.l.b16 %v1508
        %v1548 = vunpack.c.l.b16 %v1509
        %v1549 = vunpack.c.l.b16 %v1510
        %v1550 = vunpack.c.l.b16 %v1511
        %v1551 = vunpack.c.l.b16 %v1512
        %v1552 = vunpack.c.l.b16 %v1513
        %v1553 = vunpack.c.l.b16 %v1514
        %v1554 = vunpack.c.l.b16 %v1515
        %v1555 = vunpack.c.l.b16 %v1516
        %v1556 = vunpack.c.l.b16 %v1517
        %v1557 = vunpack.c.l.b16 %v1518
        %v1558 = vunpack.c.l.b16 %v1519
        %v1559 = vpack.c.b16 %v1544, %v1543
        %v1560 = vpack.c.b16 %v1546, %v1545
        %v1561 = vpack.c.b16 %v1548, %v1547
        %v1562 = vpack.c.b16 %v1550, %v1549
        %v1563 = vpack.c.b16 %v1552, %v1551
        %v1564 = vpack.c.b16 %v1554, %v1553
        %v1565 = vpack.c.b16 %v1556, %v1555
        %v1566 = vpack.c.b16 %v1558, %v1557
        %1575 = vmatprep.subr.bf16.mxu0 0
        %1576 = vmatpush1.bf16.msra.mxu0 %v1566
        %1577 = vmatprep.subr.bf16.mxu0 0
        %1578 = vmatpush1.bf16.msra.mxu0 %v1565
        %1579 = vmatprep.subr.bf16.mxu0 0
        %1580 = vmatpush1.bf16.msra.mxu0 %v1564
        %1581 = vmatprep.subr.bf16.mxu0 0
        %1582 = vmatpush1.bf16.msra.mxu0 %v1563
        %1583 = vmatprep.subr.bf16.mxu0 0
        %1584 = vmatpush1.bf16.msra.mxu0 %v1562
        %1585 = vmatprep.subr.bf16.mxu0 0
        %1586 = vmatpush1.bf16.msra.mxu0 %v1561
        %1587 = vmatprep.subr.bf16.mxu0 0
        %1588 = vmatpush1.bf16.msra.mxu0 %v1560
        %1589 = vmatprep.subr.bf16.mxu0 0
        %1590 = vmatpush1.bf16.msra.mxu0 %v1559
        %1591 = vmatprep.subr.bf16.mxu0 0
        %1592 = vmatpush2.bf16.msra.mxu0 0
        %1593 = vmatprep.subr.bf16.mxu0 0
        %1594 = vmatpush2.bf16.msra.mxu0 0
        %1595 = vmatprep.subr.bf16.mxu0 0
        %1596 = vmatpush2.bf16.msra.mxu0 0
        %1597 = vmatprep.subr.bf16.mxu0 0
        %1598 = vmatpush2.bf16.msra.mxu0 0
        %1599 = vmatprep.subr.bf16.mxu0 0
        %1600 = vmatpush2.bf16.msra.mxu0 0
        %1601 = vmatprep.subr.bf16.mxu0 0
        %1602 = vmatpush2.bf16.msra.mxu0 0
        %1603 = vmatprep.subr.bf16.mxu0 0
        %1604 = vmatpush2.bf16.msra.mxu0 0
        %1605 = vmatprep.subr.bf16.mxu0 0
        %1606 = vmatpush2.bf16.msra.mxu0 0
        %1607 = vmatprep.mubr.bf16.mxu0 0
        %1608 = vmatmul.mubr.bf16.gmra.mxu0 %v1488
        %v1609 = vpop.f32.mrf.mxu0
        %v1610 = vadd.f32 %v1525, %v1609
        %v1611 = vpop.f32.mrf.mxu0
        %v1612 = vpop.f32.mrf.mxu0
        %v1613 = vadd.f32 %v1525, %v1612
        %v1614 = vpop.f32.mrf.mxu0
        %1615 = vmatprep.mubr.bf16.mxu0 0
        %1616 = vmatmul.mubr.bf16.gmra.mxu0 %v1489
        %v1617 = vpop.f32.mrf.mxu0
        %v1618 = vadd.f32 %v1525, %v1617
        %v1619 = vpop.f32.mrf.mxu0
        %v1620 = vpop.f32.mrf.mxu0
        %v1621 = vadd.f32 %v1525, %v1620
        %v1622 = vpop.f32.mrf.mxu0
        %1623 = vmatprep.mubr.bf16.mxu0 0
        %1624 = vmatmul.mubr.bf16.gmra.mxu0 %v1490
        %v1625 = vpop.f32.mrf.mxu0
        %v1626 = vadd.f32 %v1525, %v1625
        %v1627 = vpop.f32.mrf.mxu0
        %v1628 = vpop.f32.mrf.mxu0
        %v1629 = vadd.f32 %v1525, %v1628
        %v1630 = vpop.f32.mrf.mxu0
        %1631 = vmatprep.mubr.bf16.mxu0 0
        %1632 = vmatmul.mubr.bf16.gmra.mxu0 %v1491
        %v1633 = vpop.f32.mrf.mxu0
        %v1634 = vadd.f32 %v1525, %v1633
        %v1635 = vpop.f32.mrf.mxu0
        %v1636 = vpop.f32.mrf.mxu0
        %v1637 = vadd.f32 %v1525, %v1636
        %v1638 = vpop.f32.mrf.mxu0
        %1639 = vmatprep.mubr.bf16.mxu0 0
        %1640 = vmatmul.mubr.bf16.gmra.mxu0 %v1492
        %v1641 = vpop.f32.mrf.mxu0
        %v1642 = vadd.f32 %v1525, %v1641
        %v1643 = vpop.f32.mrf.mxu0
        %v1644 = vpop.f32.mrf.mxu0
        %v1645 = vadd.f32 %v1525, %v1644
        %v1646 = vpop.f32.mrf.mxu0
        %1647 = vmatprep.mubr.bf16.mxu0 0
        %1648 = vmatmul.mubr.bf16.gmra.mxu0 %v1493
        %v1649 = vpop.f32.mrf.mxu0
        %v1650 = vadd.f32 %v1525, %v1649
        %v1651 = vpop.f32.mrf.mxu0
        %v1652 = vpop.f32.mrf.mxu0
        %v1653 = vadd.f32 %v1525, %v1652
        %v1654 = vpop.f32.mrf.mxu0
        %1655 = vmatprep.mubr.bf16.mxu0 0
        %1656 = vmatmul.mubr.bf16.gmra.mxu0 %v1494
        %v1657 = vpop.f32.mrf.mxu0
        %v1658 = vadd.f32 %v1525, %v1657
        %v1659 = vpop.f32.mrf.mxu0
        %v1660 = vpop.f32.mrf.mxu0
        %v1661 = vadd.f32 %v1525, %v1660
        %v1662 = vpop.f32.mrf.mxu0
        %1663 = vmatprep.mubr.bf16.mxu0 0
        %1664 = vmatmul.mubr.bf16.gmra.mxu0 %v1495
        %v1665 = vpop.f32.mrf.mxu0
        %v1666 = vadd.f32 %v1525, %v1665
        %v1667 = vpop.f32.mrf.mxu0
        %v1668 = vpop.f32.mrf.mxu0
        %v1669 = vadd.f32 %v1525, %v1668
        %v1670 = vpop.f32.mrf.mxu0
        %1671 = vmatprep.mubr.bf16.mxu0 0
        %1672 = vmatmul.mubr.bf16.gmra.mxu0 %v1496
        %v1673 = vpop.f32.mrf.mxu0
        %v1674 = vadd.f32 %v1525, %v1673
        %v1675 = vpop.f32.mrf.mxu0
        %v1676 = vpop.f32.mrf.mxu0
        %v1677 = vadd.f32 %v1525, %v1676
        %v1678 = vpop.f32.mrf.mxu0
        %1679 = vmatprep.mubr.bf16.mxu0 0
        %1680 = vmatmul.mubr.bf16.gmra.mxu0 %v1497
        %v1681 = vpop.f32.mrf.mxu0
        %v1682 = vadd.f32 %v1525, %v1681
        %v1683 = vpop.f32.mrf.mxu0
        %v1684 = vpop.f32.mrf.mxu0
        %v1685 = vadd.f32 %v1525, %v1684
        %v1686 = vpop.f32.mrf.mxu0
        %1687 = vmatprep.mubr.bf16.mxu0 0
        %1688 = vmatmul.mubr.bf16.gmra.mxu0 %v1498
        %v1689 = vpop.f32.mrf.mxu0
        %v1690 = vadd.f32 %v1525, %v1689
        %v1691 = vpop.f32.mrf.mxu0
        %v1692 = vpop.f32.mrf.mxu0
        %v1693 = vadd.f32 %v1525, %v1692
        %v1694 = vpop.f32.mrf.mxu0
        %1695 = vmatprep.mubr.bf16.mxu0 0
        %1696 = vmatmul.mubr.bf16.gmra.mxu0 %v1499
        %v1697 = vpop.f32.mrf.mxu0
        %v1698 = vadd.f32 %v1525, %v1697
        %v1699 = vpop.f32.mrf.mxu0
        %v1700 = vpop.f32.mrf.mxu0
        %v1701 = vadd.f32 %v1525, %v1700
        %v1702 = vpop.f32.mrf.mxu0
        %1703 = vmatprep.mubr.bf16.mxu0 0
        %1704 = vmatmul.mubr.bf16.gmra.mxu0 %v1500
        %v1705 = vpop.f32.mrf.mxu0
        %v1706 = vadd.f32 %v1525, %v1705
        %v1707 = vpop.f32.mrf.mxu0
        %v1708 = vpop.f32.mrf.mxu0
        %v1709 = vadd.f32 %v1525, %v1708
        %v1710 = vpop.f32.mrf.mxu0
        %1711 = vmatprep.mubr.bf16.mxu0 0
        %1712 = vmatmul.mubr.bf16.gmra.mxu0 %v1501
        %v1713 = vpop.f32.mrf.mxu0
        %v1714 = vadd.f32 %v1525, %v1713
        %v1715 = vpop.f32.mrf.mxu0
        %v1716 = vpop.f32.mrf.mxu0
        %v1717 = vadd.f32 %v1525, %v1716
        %v1718 = vpop.f32.mrf.mxu0
        %1719 = vmatprep.mubr.bf16.mxu0 0
        %1720 = vmatmul.mubr.bf16.gmra.mxu0 %v1502
        %v1721 = vpop.f32.mrf.mxu0
        %v1722 = vadd.f32 %v1525, %v1721
        %v1723 = vpop.f32.mrf.mxu0
        %v1724 = vpop.f32.mrf.mxu0
        %v1725 = vadd.f32 %v1525, %v1724
        %v1726 = vpop.f32.mrf.mxu0
        %1727 = vmatprep.mubr.bf16.mxu0 0
        %1728 = vmatmul.mubr.bf16.gmra.mxu0 %v1503
        %v1729 = vpop.f32.mrf.mxu0
        %v1730 = vadd.f32 %v1525, %v1729
        %v1731 = vpop.f32.mrf.mxu0
        %v1732 = vpop.f32.mrf.mxu0
        %v1733 = vadd.f32 %v1525, %v1732
        %v1734 = vpop.f32.mrf.mxu0
        %1735 = vdwg.mxu0
        %v1736 = vxor.u32 %v1610, 2147483648
        %v1737 = vxor.u32 %v1613, 2147483648
        %v1738 = vxor.u32 %v1618, 2147483648
        %v1739 = vxor.u32 %v1621, 2147483648
        %v1740 = vxor.u32 %v1626, 2147483648
        %v1741 = vxor.u32 %v1629, 2147483648
        %v1742 = vxor.u32 %v1634, 2147483648
        %v1743 = vxor.u32 %v1637, 2147483648
        %v1744 = vxor.u32 %v1642, 2147483648
        %v1745 = vxor.u32 %v1645, 2147483648
        %v1746 = vxor.u32 %v1650, 2147483648
        %v1747 = vxor.u32 %v1653, 2147483648
        %v1748 = vxor.u32 %v1658, 2147483648
        %v1749 = vxor.u32 %v1661, 2147483648
        %v1750 = vxor.u32 %v1666, 2147483648
        %v1751 = vxor.u32 %v1669, 2147483648
        %v1752 = vxor.u32 %v1674, 2147483648
        %v1753 = vxor.u32 %v1677, 2147483648
        %v1754 = vxor.u32 %v1682, 2147483648
        %v1755 = vxor.u32 %v1685, 2147483648
        %v1756 = vxor.u32 %v1690, 2147483648
        %v1757 = vxor.u32 %v1693, 2147483648
        %v1758 = vxor.u32 %v1698, 2147483648
        %v1759 = vxor.u32 %v1701, 2147483648
        %v1760 = vxor.u32 %v1706, 2147483648
        %v1761 = vxor.u32 %v1709, 2147483648
        %v1762 = vxor.u32 %v1714, 2147483648
        %v1763 = vxor.u32 %v1717, 2147483648
        %v1764 = vxor.u32 %v1722, 2147483648
        %v1765 = vxor.u32 %v1725, 2147483648
        %v1766 = vxor.u32 %v1730, 2147483648
        %v1767 = vxor.u32 %v1733, 2147483648
        %v1768 = vmul.f32 %v1736, 1.442695
        %v1769 = vpow.pop %v1768
        %v1770 = vmul.f32 %v1737, 1.442695
        %v1771 = vpow.pop %v1770
        %v1772 = vmul.f32 %v1738, 1.442695
        %v1773 = vpow.pop %v1772
        %v1774 = vmul.f32 %v1739, 1.442695
        %v1775 = vpow.pop %v1774
        %v1776 = vmul.f32 %v1740, 1.442695
        %v1777 = vpow.pop %v1776
        %v1778 = vmul.f32 %v1741, 1.442695
        %v1779 = vpow.pop %v1778
        %v1780 = vmul.f32 %v1742, 1.442695
        %v1781 = vpow.pop %v1780
        %v1782 = vmul.f32 %v1743, 1.442695
        %v1783 = vpow.pop %v1782
        %v1784 = vmul.f32 %v1744, 1.442695
        %v1785 = vpow.pop %v1784
        %v1786 = vmul.f32 %v1745, 1.442695
        %v1787 = vpow.pop %v1786
        %v1788 = vmul.f32 %v1746, 1.442695
        %v1789 = vpow.pop %v1788
        %v1790 = vmul.f32 %v1747, 1.442695
        %v1791 = vpow.pop %v1790
        %v1792 = vmul.f32 %v1748, 1.442695
        %v1793 = vpow.pop %v1792
        %v1794 = vmul.f32 %v1749, 1.442695
        %v1795 = vpow.pop %v1794
        %v1796 = vmul.f32 %v1750, 1.442695
        %v1797 = vpow.pop %v1796
        %v1798 = vmul.f32 %v1751, 1.442695
        %v1799 = vpow.pop %v1798
        %v1800 = vmul.f32 %v1752, 1.442695
        %v1801 = vpow.pop %v1800
        %v1802 = vmul.f32 %v1753, 1.442695
        %v1803 = vpow.pop %v1802
        %v1804 = vmul.f32 %v1754, 1.442695
        %v1805 = vpow.pop %v1804
        %v1806 = vmul.f32 %v1755, 1.442695
        %v1807 = vpow.pop %v1806
        %v1808 = vmul.f32 %v1756, 1.442695
        %v1809 = vpow.pop %v1808
        %v1810 = vmul.f32 %v1757, 1.442695
        %v1811 = vpow.pop %v1810
        %v1812 = vmul.f32 %v1758, 1.442695
        %v1813 = vpow.pop %v1812
        %v1814 = vmul.f32 %v1759, 1.442695
        %v1815 = vpow.pop %v1814
        %v1816 = vmul.f32 %v1760, 1.442695
        %v1817 = vpow.pop %v1816
        %v1818 = vmul.f32 %v1761, 1.442695
        %v1819 = vpow.pop %v1818
        %v1820 = vmul.f32 %v1762, 1.442695
        %v1821 = vpow.pop %v1820
        %v1822 = vmul.f32 %v1763, 1.442695
        %v1823 = vpow.pop %v1822
        %v1824 = vmul.f32 %v1764, 1.442695
        %v1825 = vpow.pop %v1824
        %v1826 = vmul.f32 %v1765, 1.442695
        %v1827 = vpow.pop %v1826
        %v1828 = vmul.f32 %v1766, 1.442695
        %v1829 = vpow.pop %v1828
        %v1830 = vmul.f32 %v1767, 1.442695
        %v1831 = vpow.pop %v1830
        %v1832 = vadd.f32 %v1769, 1.0
        %v1833 = vadd.f32 %v1771, 1.0
        %v1834 = vadd.f32 %v1773, 1.0
        %v1835 = vadd.f32 %v1775, 1.0
        %v1836 = vadd.f32 %v1777, 1.0
        %v1837 = vadd.f32 %v1779, 1.0
        %v1838 = vadd.f32 %v1781, 1.0
        %v1839 = vadd.f32 %v1783, 1.0
        %v1840 = vadd.f32 %v1785, 1.0
        %v1841 = vadd.f32 %v1787, 1.0
        %v1842 = vadd.f32 %v1789, 1.0
        %v1843 = vadd.f32 %v1791, 1.0
        %v1844 = vadd.f32 %v1793, 1.0
        %v1845 = vadd.f32 %v1795, 1.0
        %v1846 = vadd.f32 %v1797, 1.0
        %v1847 = vadd.f32 %v1799, 1.0
        %v1848 = vadd.f32 %v1801, 1.0
        %v1849 = vadd.f32 %v1803, 1.0
        %v1850 = vadd.f32 %v1805, 1.0
        %v1851 = vadd.f32 %v1807, 1.0
        %v1852 = vadd.f32 %v1809, 1.0
        %v1853 = vadd.f32 %v1811, 1.0
        %v1854 = vadd.f32 %v1813, 1.0
        %v1855 = vadd.f32 %v1815, 1.0
        %v1856 = vadd.f32 %v1817, 1.0
        %v1857 = vadd.f32 %v1819, 1.0
        %v1858 = vadd.f32 %v1821, 1.0
        %v1859 = vadd.f32 %v1823, 1.0
        %v1860 = vadd.f32 %v1825, 1.0
        %v1861 = vadd.f32 %v1827, 1.0
        %v1862 = vadd.f32 %v1829, 1.0
        %v1863 = vadd.f32 %v1831, 1.0
        %v1864 = vrcp.pop %v1832
        %v1865 = vmul.f32 1.0, %v1864
        %v1866 = vrcp.pop %v1833
        %v1867 = vmul.f32 1.0, %v1866
        %v1868 = vrcp.pop %v1834
        %v1869 = vmul.f32 1.0, %v1868
        %v1870 = vrcp.pop %v1835
        %v1871 = vmul.f32 1.0, %v1870
        %v1872 = vrcp.pop %v1836
        %v1873 = vmul.f32 1.0, %v1872
        %v1874 = vrcp.pop %v1837
        %v1875 = vmul.f32 1.0, %v1874
        %v1876 = vrcp.pop %v1838
        %v1877 = vmul.f32 1.0, %v1876
        %v1878 = vrcp.pop %v1839
        %v1879 = vmul.f32 1.0, %v1878
        %v1880 = vrcp.pop %v1840
        %v1881 = vmul.f32 1.0, %v1880
        %v1882 = vrcp.pop %v1841
        %v1883 = vmul.f32 1.0, %v1882
        %v1884 = vrcp.pop %v1842
        %v1885 = vmul.f32 1.0, %v1884
        %v1886 = vrcp.pop %v1843
        %v1887 = vmul.f32 1.0, %v1886
        %v1888 = vrcp.pop %v1844
        %v1889 = vmul.f32 1.0, %v1888
        %v1890 = vrcp.pop %v1845
        %v1891 = vmul.f32 1.0, %v1890
        %v1892 = vrcp.pop %v1846
        %v1893 = vmul.f32 1.0, %v1892
        %v1894 = vrcp.pop %v1847
        %v1895 = vmul.f32 1.0, %v1894
        %v1896 = vrcp.pop %v1848
        %v1897 = vmul.f32 1.0, %v1896
        %v1898 = vrcp.pop %v1849
        %v1899 = vmul.f32 1.0, %v1898
        %v1900 = vrcp.pop %v1850
        %v1901 = vmul.f32 1.0, %v1900
        %v1902 = vrcp.pop %v1851
        %v1903 = vmul.f32 1.0, %v1902
        %v1904 = vrcp.pop %v1852
        %v1905 = vmul.f32 1.0, %v1904
        %v1906 = vrcp.pop %v1853
        %v1907 = vmul.f32 1.0, %v1906
        %v1908 = vrcp.pop %v1854
        %v1909 = vmul.f32 1.0, %v1908
        %v1910 = vrcp.pop %v1855
        %v1911 = vmul.f32 1.0, %v1910
        %v1912 = vrcp.pop %v1856
        %v1913 = vmul.f32 1.0, %v1912
        %v1914 = vrcp.pop %v1857
        %v1915 = vmul.f32 1.0, %v1914
        %v1916 = vrcp.pop %v1858
        %v1917 = vmul.f32 1.0, %v1916
        %v1918 = vrcp.pop %v1859
        %v1919 = vmul.f32 1.0, %v1918
        %v1920 = vrcp.pop %v1860
        %v1921 = vmul.f32 1.0, %v1920
        %v1922 = vrcp.pop %v1861
        %v1923 = vmul.f32 1.0, %v1922
        %v1924 = vrcp.pop %v1862
        %v1925 = vmul.f32 1.0, %v1924
        %v1926 = vrcp.pop %v1863
        %v1927 = vmul.f32 1.0, %v1926
        %v1928 = vpack.c.bf16 %v1867, %v1865
        %v1929 = vpack.c.bf16 %v1871, %v1869
        %v1930 = vpack.c.bf16 %v1875, %v1873
        %v1931 = vpack.c.bf16 %v1879, %v1877
        %v1932 = vpack.c.bf16 %v1883, %v1881
        %v1933 = vpack.c.bf16 %v1887, %v1885
        %v1934 = vpack.c.bf16 %v1891, %v1889
        %v1935 = vpack.c.bf16 %v1895, %v1893
        %v1936 = vpack.c.bf16 %v1899, %v1897
        %v1937 = vpack.c.bf16 %v1903, %v1901
        %v1938 = vpack.c.bf16 %v1907, %v1905
        %v1939 = vpack.c.bf16 %v1911, %v1909
        %v1940 = vpack.c.bf16 %v1915, %v1913
        %v1941 = vpack.c.bf16 %v1919, %v1917
        %v1942 = vpack.c.bf16 %v1923, %v1921
        %v1943 = vpack.c.bf16 %v1927, %v1925
        %v1944 = vld [vmem:[%s7] sm:$0xff]
        %v1945 = vld [vmem:[%s7 + $0x8] sm:$0xff]
        %v1946 = vld [vmem:[%s7 + $0x10] sm:$0xff]
        %v1947 = vld [vmem:[%s7 + $0x18] sm:$0xff]
        %v1948 = vld [vmem:[%s7 + $0x20] sm:$0xff]
        %v1949 = vld [vmem:[%s7 + $0x28] sm:$0xff]
        %v1950 = vld [vmem:[%s7 + $0x30] sm:$0xff]
        %v1951 = vld [vmem:[%s7 + $0x38] sm:$0xff]
        %v1952 = vld [vmem:[%s7 + $0x40] sm:$0xff]
        %v1953 = vld [vmem:[%s7 + $0x48] sm:$0xff]
        %v1954 = vld [vmem:[%s7 + $0x50] sm:$0xff]
        %v1955 = vld [vmem:[%s7 + $0x58] sm:$0xff]
        %v1956 = vld [vmem:[%s7 + $0x60] sm:$0xff]
        %v1957 = vld [vmem:[%s7 + $0x68] sm:$0xff]
        %v1958 = vld [vmem:[%s7 + $0x70] sm:$0xff]
        %v1959 = vld [vmem:[%s7 + $0x78] sm:$0xff]
        %v1960 = vld [vmem:[%s8] sm:$0x3]
        %v1962 = vlaneseq
        %v1963 = vshrl.u32 %v1962, 7
        %v1964 = vsub.s32 0, %v1963
        %v1965 = vrot.slane %v1960, %v1964
        %v1966 = vlaneseq
        %v1967 = vshrl.u32 %v1966, 7
        %v1968 = vsub.s32 1, %v1967
        %v1969 = vrot.slane %v1960, %v1968
        %v1988 = vunpack.c.l.b16 %v1944
        %v1989 = vunpack.c.h.b16 %v1944
        %v1990 = vunpack.c.l.b16 %v1945
        %v1991 = vunpack.c.h.b16 %v1945
        %v1992 = vunpack.c.l.b16 %v1946
        %v1993 = vunpack.c.h.b16 %v1946
        %v1994 = vunpack.c.l.b16 %v1947
        %v1995 = vunpack.c.h.b16 %v1947
        %v1996 = vunpack.c.l.b16 %v1948
        %v1997 = vunpack.c.h.b16 %v1948
        %v1998 = vunpack.c.l.b16 %v1949
        %v1999 = vunpack.c.h.b16 %v1949
        %v2000 = vunpack.c.l.b16 %v1950
        %v2001 = vunpack.c.h.b16 %v1950
        %v2002 = vunpack.c.l.b16 %v1951
        %v2003 = vunpack.c.h.b16 %v1951
        %v2004 = vunpack.c.l.b16 %v1952
        %v2005 = vunpack.c.h.b16 %v1952
        %v2006 = vunpack.c.l.b16 %v1953
        %v2007 = vunpack.c.h.b16 %v1953
        %v2008 = vunpack.c.l.b16 %v1954
        %v2009 = vunpack.c.h.b16 %v1954
        %v2010 = vunpack.c.l.b16 %v1955
        %v2011 = vunpack.c.h.b16 %v1955
        %v2012 = vunpack.c.l.b16 %v1956
        %v2013 = vunpack.c.h.b16 %v1956
        %v2014 = vunpack.c.l.b16 %v1957
        %v2015 = vunpack.c.h.b16 %v1957
        %v2016 = vunpack.c.l.b16 %v1958
        %v2017 = vunpack.c.h.b16 %v1958
        %v2018 = vunpack.c.l.b16 %v1959
        %v2019 = vunpack.c.h.b16 %v1959
        %v2020 = vpack.c.b16 %v1990, %v1988
        %v2021 = vpack.c.b16 %v1991, %v1989
        %v2022 = vpack.c.b16 %v1994, %v1992
        %v2023 = vpack.c.b16 %v1995, %v1993
        %v2024 = vpack.c.b16 %v1998, %v1996
        %v2025 = vpack.c.b16 %v1999, %v1997
        %v2026 = vpack.c.b16 %v2002, %v2000
        %v2027 = vpack.c.b16 %v2003, %v2001
        %v2028 = vpack.c.b16 %v2006, %v2004
        %v2029 = vpack.c.b16 %v2007, %v2005
        %v2030 = vpack.c.b16 %v2010, %v2008
        %v2031 = vpack.c.b16 %v2011, %v2009
        %v2032 = vpack.c.b16 %v2014, %v2012
        %v2033 = vpack.c.b16 %v2015, %v2013
        %v2034 = vpack.c.b16 %v2018, %v2016
        %v2035 = vpack.c.b16 %v2019, %v2017
        %2052 = vmatprep.subr.bf16.mxu0 %v2035
        %2053 = vmatpush1.bf16.msra.mxu0 %v2034
        %2054 = vmatprep.subr.bf16.mxu0 %v2033
        %2055 = vmatpush1.bf16.msra.mxu0 %v2032
        %2056 = vmatprep.subr.bf16.mxu0 %v2031
        %2057 = vmatpush1.bf16.msra.mxu0 %v2030
        %2058 = vmatprep.subr.bf16.mxu0 %v2029
        %2059 = vmatpush1.bf16.msra.mxu0 %v2028
        %2060 = vmatprep.subr.bf16.mxu0 %v2027
        %2061 = vmatpush1.bf16.msra.mxu0 %v2026
        %2062 = vmatprep.subr.bf16.mxu0 %v2025
        %2063 = vmatpush1.bf16.msra.mxu0 %v2024
        %2064 = vmatprep.subr.bf16.mxu0 %v2023
        %2065 = vmatpush1.bf16.msra.mxu0 %v2022
        %2066 = vmatprep.subr.bf16.mxu0 %v2021
        %2067 = vmatpush1.bf16.msra.mxu0 %v2020
        %2068 = vmatprep.subr.bf16.mxu0 0
        %2069 = vmatpush2.bf16.msra.mxu0 0
        %2070 = vmatprep.subr.bf16.mxu0 0
        %2071 = vmatpush2.bf16.msra.mxu0 0
        %2072 = vmatprep.subr.bf16.mxu0 0
        %2073 = vmatpush2.bf16.msra.mxu0 0
        %2074 = vmatprep.subr.bf16.mxu0 0
        %2075 = vmatpush2.bf16.msra.mxu0 0
        %2076 = vmatprep.subr.bf16.mxu0 0
        %2077 = vmatpush2.bf16.msra.mxu0 0
        %2078 = vmatprep.subr.bf16.mxu0 0
        %2079 = vmatpush2.bf16.msra.mxu0 0
        %2080 = vmatprep.subr.bf16.mxu0 0
        %2081 = vmatpush2.bf16.msra.mxu0 0
        %2082 = vmatprep.subr.bf16.mxu0 0
        %2083 = vmatpush2.bf16.msra.mxu0 0
        %2084 = vmatprep.mubr.bf16.mxu0 0
        %2085 = vmatmul.mubr.bf16.gmra.mxu0 %v1928
        %v2086 = vpop.f32.mrf.mxu0
        %v2087 = vadd.f32 %v1965, %v2086
        %v2088 = vpop.f32.mrf.mxu0
        %v2089 = vadd.f32 %v1969, %v2088
        %v2090 = vpop.f32.mrf.mxu0
        %v2091 = vadd.f32 %v1965, %v2090
        %v2092 = vpop.f32.mrf.mxu0
        %v2093 = vadd.f32 %v1969, %v2092
        %2094 = vmatprep.mubr.bf16.mxu0 0
        %2095 = vmatmul.mubr.bf16.gmra.mxu0 %v1929
        %v2096 = vpop.f32.mrf.mxu0
        %v2097 = vadd.f32 %v1965, %v2096
        %v2098 = vpop.f32.mrf.mxu0
        %v2099 = vadd.f32 %v1969, %v2098
        %v2100 = vpop.f32.mrf.mxu0
        %v2101 = vadd.f32 %v1965, %v2100
        %v2102 = vpop.f32.mrf.mxu0
        %v2103 = vadd.f32 %v1969, %v2102
        %2104 = vmatprep.mubr.bf16.mxu0 0
        %2105 = vmatmul.mubr.bf16.gmra.mxu0 %v1930
        %v2106 = vpop.f32.mrf.mxu0
        %v2107 = vadd.f32 %v1965, %v2106
        %v2108 = vpop.f32.mrf.mxu0
        %v2109 = vadd.f32 %v1969, %v2108
        %v2110 = vpop.f32.mrf.mxu0
        %v2111 = vadd.f32 %v1965, %v2110
        %v2112 = vpop.f32.mrf.mxu0
        %v2113 = vadd.f32 %v1969, %v2112
        %2114 = vmatprep.mubr.bf16.mxu0 0
        %2115 = vmatmul.mubr.bf16.gmra.mxu0 %v1931
        %v2116 = vpop.f32.mrf.mxu0
        %v2117 = vadd.f32 %v1965, %v2116
        %v2118 = vpop.f32.mrf.mxu0
        %v2119 = vadd.f32 %v1969, %v2118
        %v2120 = vpop.f32.mrf.mxu0
        %v2121 = vadd.f32 %v1965, %v2120
        %v2122 = vpop.f32.mrf.mxu0
        %v2123 = vadd.f32 %v1969, %v2122
        %2124 = vmatprep.mubr.bf16.mxu0 0
        %2125 = vmatmul.mubr.bf16.gmra.mxu0 %v1932
        %v2126 = vpop.f32.mrf.mxu0
        %v2127 = vadd.f32 %v1965, %v2126
        %v2128 = vpop.f32.mrf.mxu0
        %v2129 = vadd.f32 %v1969, %v2128
        %v2130 = vpop.f32.mrf.mxu0
        %v2131 = vadd.f32 %v1965, %v2130
        %v2132 = vpop.f32.mrf.mxu0
        %v2133 = vadd.f32 %v1969, %v2132
        %2134 = vmatprep.mubr.bf16.mxu0 0
        %2135 = vmatmul.mubr.bf16.gmra.mxu0 %v1933
        %v2136 = vpop.f32.mrf.mxu0
        %v2137 = vadd.f32 %v1965, %v2136
        %v2138 = vpop.f32.mrf.mxu0
        %v2139 = vadd.f32 %v1969, %v2138
        %v2140 = vpop.f32.mrf.mxu0
        %v2141 = vadd.f32 %v1965, %v2140
        %v2142 = vpop.f32.mrf.mxu0
        %v2143 = vadd.f32 %v1969, %v2142
        %2144 = vmatprep.mubr.bf16.mxu0 0
        %2145 = vmatmul.mubr.bf16.gmra.mxu0 %v1934
        %v2146 = vpop.f32.mrf.mxu0
        %v2147 = vadd.f32 %v1965, %v2146
        %v2148 = vpop.f32.mrf.mxu0
        %v2149 = vadd.f32 %v1969, %v2148
        %v2150 = vpop.f32.mrf.mxu0
        %v2151 = vadd.f32 %v1965, %v2150
        %v2152 = vpop.f32.mrf.mxu0
        %v2153 = vadd.f32 %v1969, %v2152
        %2154 = vmatprep.mubr.bf16.mxu0 0
        %2155 = vmatmul.mubr.bf16.gmra.mxu0 %v1935
        %v2156 = vpop.f32.mrf.mxu0
        %v2157 = vadd.f32 %v1965, %v2156
        %v2158 = vpop.f32.mrf.mxu0
        %v2159 = vadd.f32 %v1969, %v2158
        %v2160 = vpop.f32.mrf.mxu0
        %v2161 = vadd.f32 %v1965, %v2160
        %v2162 = vpop.f32.mrf.mxu0
        %v2163 = vadd.f32 %v1969, %v2162
        %2164 = vmatprep.mubr.bf16.mxu0 0
        %2165 = vmatmul.mubr.bf16.gmra.mxu0 %v1936
        %v2166 = vpop.f32.mrf.mxu0
        %v2167 = vadd.f32 %v1965, %v2166
        %v2168 = vpop.f32.mrf.mxu0
        %v2169 = vadd.f32 %v1969, %v2168
        %v2170 = vpop.f32.mrf.mxu0
        %v2171 = vadd.f32 %v1965, %v2170
        %v2172 = vpop.f32.mrf.mxu0
        %v2173 = vadd.f32 %v1969, %v2172
        %2174 = vmatprep.mubr.bf16.mxu0 0
        %2175 = vmatmul.mubr.bf16.gmra.mxu0 %v1937
        %v2176 = vpop.f32.mrf.mxu0
        %v2177 = vadd.f32 %v1965, %v2176
        %v2178 = vpop.f32.mrf.mxu0
        %v2179 = vadd.f32 %v1969, %v2178
        %v2180 = vpop.f32.mrf.mxu0
        %v2181 = vadd.f32 %v1965, %v2180
        %v2182 = vpop.f32.mrf.mxu0
        %v2183 = vadd.f32 %v1969, %v2182
        %2184 = vmatprep.mubr.bf16.mxu0 0
        %2185 = vmatmul.mubr.bf16.gmra.mxu0 %v1938
        %v2186 = vpop.f32.mrf.mxu0
        %v2187 = vadd.f32 %v1965, %v2186
        %v2188 = vpop.f32.mrf.mxu0
        %v2189 = vadd.f32 %v1969, %v2188
        %v2190 = vpop.f32.mrf.mxu0
        %v2191 = vadd.f32 %v1965, %v2190
        %v2192 = vpop.f32.mrf.mxu0
        %v2193 = vadd.f32 %v1969, %v2192
        %2194 = vmatprep.mubr.bf16.mxu0 0
        %2195 = vmatmul.mubr.bf16.gmra.mxu0 %v1939
        %v2196 = vpop.f32.mrf.mxu0
        %v2197 = vadd.f32 %v1965, %v2196
        %v2198 = vpop.f32.mrf.mxu0
        %v2199 = vadd.f32 %v1969, %v2198
        %v2200 = vpop.f32.mrf.mxu0
        %v2201 = vadd.f32 %v1965, %v2200
        %v2202 = vpop.f32.mrf.mxu0
        %v2203 = vadd.f32 %v1969, %v2202
        %2204 = vmatprep.mubr.bf16.mxu0 0
        %2205 = vmatmul.mubr.bf16.gmra.mxu0 %v1940
        %v2206 = vpop.f32.mrf.mxu0
        %v2207 = vadd.f32 %v1965, %v2206
        %v2208 = vpop.f32.mrf.mxu0
        %v2209 = vadd.f32 %v1969, %v2208
        %v2210 = vpop.f32.mrf.mxu0
        %v2211 = vadd.f32 %v1965, %v2210
        %v2212 = vpop.f32.mrf.mxu0
        %v2213 = vadd.f32 %v1969, %v2212
        %2214 = vmatprep.mubr.bf16.mxu0 0
        %2215 = vmatmul.mubr.bf16.gmra.mxu0 %v1941
        %v2216 = vpop.f32.mrf.mxu0
        %v2217 = vadd.f32 %v1965, %v2216
        %v2218 = vpop.f32.mrf.mxu0
        %v2219 = vadd.f32 %v1969, %v2218
        %v2220 = vpop.f32.mrf.mxu0
        %v2221 = vadd.f32 %v1965, %v2220
        %v2222 = vpop.f32.mrf.mxu0
        %v2223 = vadd.f32 %v1969, %v2222
        %2224 = vmatprep.mubr.bf16.mxu0 0
        %2225 = vmatmul.mubr.bf16.gmra.mxu0 %v1942
        %v2226 = vpop.f32.mrf.mxu0
        %v2227 = vadd.f32 %v1965, %v2226
        %v2228 = vpop.f32.mrf.mxu0
        %v2229 = vadd.f32 %v1969, %v2228
        %v2230 = vpop.f32.mrf.mxu0
        %v2231 = vadd.f32 %v1965, %v2230
        %v2232 = vpop.f32.mrf.mxu0
        %v2233 = vadd.f32 %v1969, %v2232
        %2234 = vmatprep.mubr.bf16.mxu0 0
        %2235 = vmatmul.mubr.bf16.gmra.mxu0 %v1943
        %v2236 = vpop.f32.mrf.mxu0
        %v2237 = vadd.f32 %v1965, %v2236
        %v2238 = vpop.f32.mrf.mxu0
        %v2239 = vadd.f32 %v1969, %v2238
        %v2240 = vpop.f32.mrf.mxu0
        %v2241 = vadd.f32 %v1965, %v2240
        %v2242 = vpop.f32.mrf.mxu0
        %v2243 = vadd.f32 %v1969, %v2242
        %2244 = vdwg.mxu0
        %2245 = vst [vmem:[%s343] sm:$0xff] %v2087
        %2246 = vst [vmem:[%s343 + $0x8] sm:$0xff] %v2089
        %2247 = vst [vmem:[%s343 + $0x10] sm:$0xff] %v2091
        %2248 = vst [vmem:[%s343 + $0x18] sm:$0xff] %v2093
        %2249 = vst [vmem:[%s343 + $0x20] sm:$0xff] %v2097
        %2250 = vst [vmem:[%s343 + $0x28] sm:$0xff] %v2099
        %2251 = vst [vmem:[%s343 + $0x30] sm:$0xff] %v2101
        %2252 = vst [vmem:[%s343 + $0x38] sm:$0xff] %v2103
        %2253 = vst [vmem:[%s343 + $0x40] sm:$0xff] %v2107
        %2254 = vst [vmem:[%s343 + $0x48] sm:$0xff] %v2109
        %2255 = vst [vmem:[%s343 + $0x50] sm:$0xff] %v2111
        %2256 = vst [vmem:[%s343 + $0x58] sm:$0xff] %v2113
        %2257 = vst [vmem:[%s343 + $0x60] sm:$0xff] %v2117
        %2258 = vst [vmem:[%s343 + $0x68] sm:$0xff] %v2119
        %2259 = vst [vmem:[%s343 + $0x70] sm:$0xff] %v2121
        %2260 = vst [vmem:[%s343 + $0x78] sm:$0xff] %v2123
        %2261 = vst [vmem:[%s343 + $0x80] sm:$0xff] %v2127
        %2262 = vst [vmem:[%s343 + $0x88] sm:$0xff] %v2129
        %2263 = vst [vmem:[%s343 + $0x90] sm:$0xff] %v2131
        %2264 = vst [vmem:[%s343 + $0x98] sm:$0xff] %v2133
        %2265 = vst [vmem:[%s343 + $0xa0] sm:$0xff] %v2137
        %2266 = vst [vmem:[%s343 + $0xa8] sm:$0xff] %v2139
        %2267 = vst [vmem:[%s343 + $0xb0] sm:$0xff] %v2141
        %2268 = vst [vmem:[%s343 + $0xb8] sm:$0xff] %v2143
        %2269 = vst [vmem:[%s343 + $0xc0] sm:$0xff] %v2147
        %2270 = vst [vmem:[%s343 + $0xc8] sm:$0xff] %v2149
        %2271 = vst [vmem:[%s343 + $0xd0] sm:$0xff] %v2151
        %2272 = vst [vmem:[%s343 + $0xd8] sm:$0xff] %v2153
        %2273 = vst [vmem:[%s343 + $0xe0] sm:$0xff] %v2157
        %2274 = vst [vmem:[%s343 + $0xe8] sm:$0xff] %v2159
        %2275 = vst [vmem:[%s343 + $0xf0] sm:$0xff] %v2161
        %2276 = vst [vmem:[%s343 + $0xf8] sm:$0xff] %v2163
        %2277 = vst [vmem:[%s343 + $0x100] sm:$0xff] %v2167
        %2278 = vst [vmem:[%s343 + $0x108] sm:$0xff] %v2169
        %2279 = vst [vmem:[%s343 + $0x110] sm:$0xff] %v2171
        %2280 = vst [vmem:[%s343 + $0x118] sm:$0xff] %v2173
        %2281 = vst [vmem:[%s343 + $0x120] sm:$0xff] %v2177
        %2282 = vst [vmem:[%s343 + $0x128] sm:$0xff] %v2179
        %2283 = vst [vmem:[%s343 + $0x130] sm:$0xff] %v2181
        %2284 = vst [vmem:[%s343 + $0x138] sm:$0xff] %v2183
        %2285 = vst [vmem:[%s343 + $0x140] sm:$0xff] %v2187
        %2286 = vst [vmem:[%s343 + $0x148] sm:$0xff] %v2189
        %2287 = vst [vmem:[%s343 + $0x150] sm:$0xff] %v2191
        %2288 = vst [vmem:[%s343 + $0x158] sm:$0xff] %v2193
        %2289 = vst [vmem:[%s343 + $0x160] sm:$0xff] %v2197
        %2290 = vst [vmem:[%s343 + $0x168] sm:$0xff] %v2199
        %2291 = vst [vmem:[%s343 + $0x170] sm:$0xff] %v2201
        %2292 = vst [vmem:[%s343 + $0x178] sm:$0xff] %v2203
        %2293 = vst [vmem:[%s343 + $0x180] sm:$0xff] %v2207
        %2294 = vst [vmem:[%s343 + $0x188] sm:$0xff] %v2209
        %2295 = vst [vmem:[%s343 + $0x190] sm:$0xff] %v2211
        %2296 = vst [vmem:[%s343 + $0x198] sm:$0xff] %v2213
        %2297 = vst [vmem:[%s343 + $0x1a0] sm:$0xff] %v2217
        %2298 = vst [vmem:[%s343 + $0x1a8] sm:$0xff] %v2219
        %2299 = vst [vmem:[%s343 + $0x1b0] sm:$0xff] %v2221
        %2300 = vst [vmem:[%s343 + $0x1b8] sm:$0xff] %v2223
        %2301 = vst [vmem:[%s343 + $0x1c0] sm:$0xff] %v2227
        %2302 = vst [vmem:[%s343 + $0x1c8] sm:$0xff] %v2229
        %2303 = vst [vmem:[%s343 + $0x1d0] sm:$0xff] %v2231
        %2304 = vst [vmem:[%s343 + $0x1d8] sm:$0xff] %v2233
        %2305 = vst [vmem:[%s343 + $0x1e0] sm:$0xff] %v2237
        %2306 = vst [vmem:[%s343 + $0x1e8] sm:$0xff] %v2239
        %2307 = vst [vmem:[%s343 + $0x1f0] sm:$0xff] %v2241
        %2308 = vst [vmem:[%s343 + $0x1f8] sm:$0xff] %v2243
        %s2309 = sand.u32 %s225, 1
        %s2310 = scalar_lea.sflag [#allocation3], %s2309
        %s2311 = sand.u32 %s225, 1
        %s2312 = smul.addr %s2311, 512
        %s2313 = scalar_lea.vmem [#allocation2], %s2312
        // Predicated region
        $region57: #{sae_forward.1} parent=55 // pred_check
          %p2314 = pneg %p235
        $region58: #{sae_forward.1} parent=55 // pred_check_branch
          %2316 = sbr.rel (%p2314) target = $region60
        $region59: #{sae_forward.1} parent=55 // pred_region
          %s2317 = smul.u32 32, %s23
          %s2318 = ssub.s32 63, %s2317
          %p2319 = scmp.lt.s32.totalorder %s2318, 32
          %s2320 = scalar_select %p2319, %s2318, 32
          %s2321 = smul.u32 128, %s2320
          %s2322 = smul.u32 %s2321, 2
          %s2324 = ssub.s32 8192, %s2322
          %2325 = vsyncadd %s2310, %s2324
          %p2326 = scmp.ne.s32.totalorder 0, %s2322
          %s2327 = smul.addr %s2317, 2
          %s2328 = smul.addr %s2327, 128
          %s2329 = scalar_lea.hbm %s9, %s2328
          %s2330 = smul.u32 16, %s2320
          %s2331 = sshll.u32 %s2313, 4
          %s2332 = int_to_ptr.vmem [resolvable:$true] %s2331
          %s2333 = sshll.u32 %s2330, 4
          %2337 = dma.vmem_to_hbm [thread:$0]  (%p2326), %s2332, %s2333, %s2329, %s2310, 256, 256, 16
        $region60: #{sae_forward.1} parent=55 // pred_fallthru
          _
      $region56: #{sae_forward.1} parent=5 // pred_fallthru
        _
      %p2338 = scmp.le.s32.totalorder 2, %s18
      // Predicated region
      $region61: #{sae_forward.1} parent=5 // pred_check
        %p2339 = pneg %p2338
      $region62: #{sae_forward.1} parent=5 // pred_check_branch
        %2341 = sbr.rel (%p2339) target = $region64
      $region63: #{sae_forward.1} parent=5 // pred_region
        %s2342 = ssub.s32 %s18, 2
        // Predicated region
        $region65: #{sae_forward.1} parent=63 // pred_check
          %p2343 = pneg %p241
        $region66: #{sae_forward.1} parent=63 // pred_check_branch
          %2345 = sbr.rel (%p2343) target = $region68
        $region67: #{sae_forward.1} parent=63 // pred_region
          %s2346 = sand.u32 %s226, 1
          %s2347 = scalar_lea.sflag [#allocation3], %s2346
          %s2348 = sand.u32 %s226, 1
          %s2349 = smul.addr %s2348, 512
          %s2350 = scalar_lea.vmem [#allocation2], %s2349
          %2351 = dma.done %s2347, 8192
        $region68: #{sae_forward.1} parent=63 // pred_fallthru
          _
      $region64: #{sae_forward.1} parent=5 // pred_fallthru
        _
    $region6: #{sae_forward.1} parent=1 // loop_footer
      %s22 = sadd.s32 1, %s18
    $region7: #{sae_forward.1} parent=1 // loop_footer_branch
      %17 = sbr.rel target = $region3
    $region8: #{sae_forward.1} parent=1 // loop_exit
      _
    %2352 = vsyncpa [#allocation3], 1
    %s2353 = scalar_lea.sflag [#allocation3], 1
    %2354 = vsyncpa %s2353, 1

</llo_original>
